<compile_context>
chip_gen: v7x
topology: tpu7x:2x2x1
jax: 0.10.0
libtpu: 0.0.40
codegen_flags: <defaults>
</compile_context>

<pallas_src>
import jax
import jax.numpy as jnp
import numpy as np
from jax.experimental import pallas as pl
from jax.experimental.pallas import tpu as pltpu


# ----------------------------------------------------------------------------- kernel
def _affective_attention_kernel(
    # inputs (all f32 unless noted, all zero-padded to lane/sublane tiles)
    words_ref,      # (T, Bp, E)        embedded tokens, time-major
    feat_ref,       # (T, Bp, F)        features, time-major
    len_ref,        # (1, Bp, 1) int32  sequence lengths
    wih_ref,        # (E, 4*Hp)         LSTM W_ih^T, per-gate lane-padded
    whh_ref,        # (Hp, 4*Hp)        LSTM W_hh^T, per-gate lane-padded
    bias_ref,       # (1, 4*Hp)         b_ih + b_hh, per-gate lane-padded
    scale_w_ref,    # (F, Hp)           scale.weight^T
    scale_b_ref,    # (1, Hp)
    shift_w_ref,    # (F, Hp)           shift.weight^T
    shift_b_ref,    # (1, Hp)
    att_w_ref,      # (1, Hp)           SelfAttention Linear(A,1).weight
    att_b_ref,      # (1, 1)
    cls_w_ref,      # (Hp, Cp)          classes.weight^T
    cls_b_ref,      # (1, Cp)
    # output
    out_ref,        # (Bp, Hp + Cp + Tp)   [ reps | logits | attn ] lane-dense slab
    # scratch
    gx_scr,         # VMEM (T, Bp, 4*Hp)   hoisted input-projection gates
    h_scr,          # VMEM (T, Bp, Hp)     LSTM hidden states
):
    T, Bp, E = words_ref.shape
    F = feat_ref.shape[-1]
    Hp = whh_ref.shape[0]
    Cp = cls_w_ref.shape[-1]
    Tp = out_ref.shape[-1] - Hp - Cp
    f32 = jnp.float32

    # ---- hoisted LSTM input projection: one big MXU matmul for all timesteps ----
    words = words_ref[...].reshape(T * Bp, E)
    gx = jnp.dot(words, wih_ref[...], preferred_element_type=f32) + bias_ref[...]
    gx_scr[...] = gx.reshape(T, Bp, 4 * Hp)

    whh = whh_ref[...]

    def sigmoid(x):
        # EUP tanh instead of a VALU divide on the serial recurrence path
        return 0.5 * jnp.tanh(0.5 * x) + 0.5

    # ---- single-layer unidirectional LSTM (PyTorch gate order i,f,g,o) ----------
    # Only the h @ W_hh matmul remains inside the (fully unrolled) recurrence.
    def step(t, carry):
        h, c = carry
        gates = gx_scr[t] + jnp.dot(h, whh, preferred_element_type=f32)   # (Bp, 4Hp)
        i_g = sigmoid(gates[:, 0:Hp])
        f_g = sigmoid(gates[:, Hp:2 * Hp])
        g_g = jnp.tanh(gates[:, 2 * Hp:3 * Hp])
        o_g = sigmoid(gates[:, 3 * Hp:4 * Hp])
        c_new = f_g * c + i_g * g_g
        h_new = o_g * jnp.tanh(c_new)
        h_scr[t] = h_new
        return (h_new, c_new)

    jax.lax.fori_loop(
        0, T, step,
        (jnp.zeros((Bp, Hp), f32), jnp.zeros((Bp, Hp), f32)),
        unroll=True)

    hs = h_scr[...]                                   # (T, Bp, Hp) == attention_input
    feats = feat_ref[...].reshape(T * Bp, F)

    # ---- affine conditioning: c = outputs * scale(features) + shift(features) ---
    b_aff = jnp.dot(feats, scale_w_ref[...], preferred_element_type=f32) + scale_b_ref[...]
    g_aff = jnp.dot(feats, shift_w_ref[...], preferred_element_type=f32) + shift_b_ref[...]
    c_att = hs.reshape(T * Bp, Hp) * b_aff + g_aff                       # (T*Bp, Hp)

    # ---- SelfAttention: tanh(Linear(A->1)) -> masked softmax over time ----------
    # (softmax-then-mask-then-renormalize == masked softmax, the full-softmax
    #  denominator cancels exactly)
    raw = jnp.sum(c_att * att_w_ref[...], axis=-1, keepdims=True) + att_b_ref[...]
    scores = jnp.tanh(raw).reshape(T, Bp, 1)                             # (T, Bp, 1)

    m = jnp.max(scores, axis=0, keepdims=True)
    e = jnp.exp(scores - m)
    tpos = jax.lax.broadcasted_iota(jnp.int32, (T, Bp, 1), 0)
    mask = (tpos < len_ref[...]).astype(f32)
    pm = e * mask
    denom = jnp.sum(pm, axis=0, keepdims=True)                           # (1, Bp, 1)
    attn = pm * pl.reciprocal(denom, approx=True)                        # (T, Bp, 1)

    # representations = sum_t attention_input * attn   (non-'concat' branch)
    reps = jnp.sum(hs * attn, axis=0)                                    # (Bp, Hp)
    logits = jnp.dot(reps, cls_w_ref[...], preferred_element_type=f32) + cls_b_ref[...]

    # ---- lane-dense attention slab: scatter the T (static, small) time steps
    #      onto lanes so the output store is a full, unmasked vst ---------------
    lane = jax.lax.broadcasted_iota(jnp.int32, (Bp, Tp), 1)
    attn_bt = jnp.zeros((Bp, Tp), f32)
    for t in range(T):                         # T is static and tiny; pure VPU work
        attn_bt = attn_bt + jnp.where(lane == t, attn[t], 0.0)

    # single lane-dense output slab, split in the wrapper
    out_ref[:, 0:Hp] = reps
    out_ref[:, Hp:Hp + Cp] = logits
    out_ref[:, Hp + Cp:] = attn_bt


# ----------------------------------------------------------------------------- wrapper
def init_params(key, V, E, H, F, A, C):
    ks = jax.random.split(key, 13)
    s = 0.1
    n = lambda k, shp: (s * jax.random.normal(k, shp)).astype(jnp.float32)
    return dict(
        emb=n(ks[0], (V, E)),
        w_ih=n(ks[1], (4 * H, E)),
        w_hh=n(ks[2], (4 * H, H)),
        b_ih=n(ks[3], (4 * H,)),
        b_hh=n(ks[4], (4 * H,)),
        scale_w=n(ks[5], (A, F)),
        scale_b=n(ks[6], (A,)),
        shift_w=n(ks[7], (A, F)),
        shift_b=n(ks[8], (A,)),
        att_w=n(ks[9], (1, A)),
        att_b=n(ks[10], (1,)),
        cls_w=n(ks[11], (C, A)),
        cls_b=jnp.zeros((C,), jnp.float32),
    )


def affective_attention_forward(params, src, features, lengths):
    B, T = src.shape
    F = features.shape[-1]
    V, E = params["emb"].shape
    H = params["w_hh"].shape[-1]
    A = params["scale_w"].shape[0]
    C = params["cls_w"].shape[0]
    assert A == H, "affine attention_size == rnn feature size in this config"

    f32 = jnp.float32
    B_pad = max(8, ((B + 7) // 8) * 8)          # batch -> sublane tile
    H_pad = max(128, ((H + 127) // 128) * 128)  # hidden/attention -> lane tile
    C_pad = 128                                 # logits lane slab
    T_pad = 128                                 # attention lane slab
    assert C <= C_pad and T <= T_pad

    # ---- glue: embedding gather + layout + zero padding --------------------------
    words = jnp.take(params["emb"].astype(f32), src.astype(jnp.int32), axis=0)  # (B,T,E)
    words_tm = jnp.transpose(words, (1, 0, 2))                                  # (T,B,E)
    words_tm = jnp.pad(words_tm, ((0, 0), (0, B_pad - B), (0, 0)))

    feats_tm = jnp.transpose(features.astype(f32), (1, 0, 2))                   # (T,B,F)
    feats_tm = jnp.pad(feats_tm, ((0, 0), (0, B_pad - B), (0, 0)))

    lens = jnp.pad(lengths.astype(jnp.int32), (0, B_pad - B), constant_values=1)
    len3 = lens.reshape(1, B_pad, 1)

    # ---- glue: parameter packing (pre-transposed, per-gate lane padding) ----------
    def pad_gate_cols(w):                       # (rows, 4H) -> (rows, 4*H_pad)
        r = w.shape[0]
        w4 = w.reshape(r, 4, H)
        w4 = jnp.pad(w4, ((0, 0), (0, 0), (0, H_pad - H)))
        return w4.reshape(r, 4 * H_pad)

    wih_t = pad_gate_cols(params["w_ih"].T.astype(f32))                      # (E, 4Hp)
    whh_t = pad_gate_cols(params["w_hh"].T.astype(f32))                      # (H, 4Hp)
    whh_t = jnp.pad(whh_t, ((0, H_pad - H), (0, 0)))                         # (Hp, 4Hp)
    bias = pad_gate_cols((params["b_ih"] + params["b_hh"]).astype(f32).reshape(1, 4 * H))

    scale_wt = jnp.pad(params["scale_w"].T.astype(f32), ((0, 0), (0, H_pad - A)))
    shift_wt = jnp.pad(params["shift_w"].T.astype(f32), ((0, 0), (0, H_pad - A)))
    scale_b = jnp.pad(params["scale_b"].astype(f32), (0, H_pad - A)).reshape(1, H_pad)
    shift_b = jnp.pad(params["shift_b"].astype(f32), (0, H_pad - A)).reshape(1, H_pad)
    att_w = jnp.pad(params["att_w"].astype(f32), ((0, 0), (0, H_pad - A)))   # (1, Hp)
    att_b = params["att_b"].astype(f32).reshape(1, 1)
    cls_wt = jnp.pad(params["cls_w"].T.astype(f32), ((0, H_pad - A), (0, C_pad - C)))
    cls_b = jnp.pad(params["cls_b"].astype(f32), (0, C_pad - C)).reshape(1, C_pad)

    vmem = pl.BlockSpec(memory_space=pltpu.MemorySpace.VMEM)
    out_shape = jax.ShapeDtypeStruct((B_pad, H_pad + C_pad + T_pad), f32)

    slab = pl.pallas_call(
        _affective_attention_kernel,
        out_shape=out_shape,
        in_specs=[vmem] * 14,
        out_specs=vmem,
        scratch_shapes=[
            pltpu.VMEM((T, B_pad, 4 * H_pad), f32),   # hoisted gates_x
            pltpu.VMEM((T, B_pad, H_pad), f32),       # LSTM hidden states
        ],
    )(words_tm, feats_tm, len3,
      wih_t, whh_t, bias,
      scale_wt, scale_b, shift_wt, shift_b,
      att_w, att_b, cls_wt, cls_b)

    reps = slab[:B, :A]                                            # (B, A)
    logits = slab[:B, H_pad:H_pad + C]                             # (B, C)
    attn = slab[:B, H_pad + C_pad:H_pad + C_pad + T]               # (B, T)
    return logits, reps, attn


# ----------------------------------------------------------------------------- reference
def reference_forward(params, src, features, lengths):
    B, T = src.shape
    H = params["w_hh"].shape[-1]
    words = params["emb"][src]                                          # (B, T, E)
    wih_t, whh_t = params["w_ih"].T, params["w_hh"].T
    bias = params["b_ih"] + params["b_hh"]
    sigmoid = lambda x: 1.0 / (1.0 + jnp.exp(-x))

    def step(carry, x_t):
        h, c = carry
        gates = x_t @ wih_t + h @ whh_t + bias
        i = sigmoid(gates[:, :H]); f = sigmoid(gates[:, H:2 * H])
        g = jnp.tanh(gates[:, 2 * H:3 * H]); o = sigmoid(gates[:, 3 * H:])
        c = f * c + i * g
        h = o * jnp.tanh(c)
        return (h, c), h

    (_, _), hs = jax.lax.scan(
        step, (jnp.zeros((B, H)), jnp.zeros((B, H))),
        jnp.transpose(words, (1, 0, 2)))
    outputs = jnp.transpose(hs, (1, 0, 2))                              # (B, T, H)

    b_aff = features @ params["scale_w"].T + params["scale_b"]
    g_aff = features @ params["shift_w"].T + params["shift_b"]
    c_att = outputs * b_aff + g_aff
    scores = jnp.tanh(jnp.sum(c_att * params["att_w"][0], axis=-1) + params["att_b"][0])
    p = jax.nn.softmax(scores, axis=-1)
    mask = (jnp.arange(T)[None, :] < lengths[:, None]).astype(jnp.float32)
    pm = p * mask
    attn = pm / jnp.sum(pm, axis=-1, keepdims=True)
    reps = jnp.sum(outputs * attn[:, :, None], axis=1)
    logits = reps @ params["cls_w"].T + params["cls_b"]
    return logits, reps, attn


if __name__ == "__main__":
    B, T = 2, 8                           # batch, max_len
    V, E, H, F, C = 64, 32, 32, 16, 3     # ntokens, emb_size, rnn_size, feature_size, nclasses
    A = H                                 # attention_size ('affine', no_rnn=False, conc_rnn=False)

    key = jax.random.PRNGKey(0)
    k_src, k_feat, k_par = jax.random.split(key, 3)
    src = jax.random.randint(k_src, (B, T), 0, V, dtype=jnp.int32)
    features = jax.random.normal(k_feat, (B, T, F), dtype=jnp.float32)
    lengths = jnp.array([T, 5], dtype=jnp.int32)
    params = init_params(k_par, V, E, H, F, A, C)

    logits, reps, attn = affective_attention_forward(params, src, features, lengths)
    jax.block_until_ready((logits, reps, attn))

    ref_logits, ref_reps, ref_attn = reference_forward(params, src, features, lengths)
    np.testing.assert_allclose(np.asarray(logits), np.asarray(ref_logits), rtol=2e-2, atol=2e-2)
    np.testing.assert_allclose(np.asarray(reps), np.asarray(ref_reps), rtol=2e-2, atol=2e-2)
    np.testing.assert_allclose(np.asarray(attn), np.asarray(ref_attn), rtol=2e-2, atol=2e-2)

    print("KERNEL_OK")
</pallas_src>

<mosaic_0001>
module attributes {stable_mosaic.version = 11 : i64} {
  func.func @_affective_attention_kernel(%arg0: memref<8x8x32xf32, #tpu.memory_space<vmem>>, %arg1: memref<8x8x16xf32, #tpu.memory_space<vmem>>, %arg2: memref<1x8x1xi32, #tpu.memory_space<vmem>>, %arg3: memref<32x512xf32, #tpu.memory_space<vmem>>, %arg4: memref<128x512xf32, #tpu.memory_space<vmem>>, %arg5: memref<1x512xf32, #tpu.memory_space<vmem>>, %arg6: memref<16x128xf32, #tpu.memory_space<vmem>>, %arg7: memref<1x128xf32, #tpu.memory_space<vmem>>, %arg8: memref<16x128xf32, #tpu.memory_space<vmem>>, %arg9: memref<1x128xf32, #tpu.memory_space<vmem>>, %arg10: memref<1x128xf32, #tpu.memory_space<vmem>>, %arg11: memref<1x1xf32, #tpu.memory_space<vmem>>, %arg12: memref<128x128xf32, #tpu.memory_space<vmem>>, %arg13: memref<1x128xf32, #tpu.memory_space<vmem>>, %arg14: memref<8x384xf32, #tpu.memory_space<vmem>>, %arg15: memref<8x8x512xf32, #tpu.memory_space<vmem>>, %arg16: memref<8x8x128xf32, #tpu.memory_space<vmem>>) attributes {dimension_semantics = [], scalar_prefetch = 0 : i64, scratch_operands = 2 : i64, tpu.core_type = #tpu.core_type<tc>} {
    %c0 = arith.constant 0 : index
    %c0_0 = arith.constant 0 : index
    %c0_1 = arith.constant 0 : index
    %0 = vector.load %arg0[%c0, %c0_0, %c0_1] : memref<8x8x32xf32, #tpu.memory_space<vmem>>, vector<8x8x32xf32>
    %1 = vector.shape_cast %0 : vector<8x8x32xf32> to vector<64x32xf32>
    %c0_2 = arith.constant 0 : index
    %c0_3 = arith.constant 0 : index
    %2 = vector.load %arg3[%c0_2, %c0_3] : memref<32x512xf32, #tpu.memory_space<vmem>>, vector<32x512xf32>
    %cst = arith.constant dense<0.000000e+00> : vector<64x512xf32>
    %3 = tpu.matmul %1, %2, %cst {dimension_numbers = #tpu.dot_dimension_numbers<[1], [0], [0], [1], [0, 0, 1, 1], [], []>} : vector<64x32xf32>, vector<32x512xf32>, vector<64x512xf32> -> vector<64x512xf32>
    %c0_4 = arith.constant 0 : index
    %c0_5 = arith.constant 0 : index
    %4 = vector.load %arg5[%c0_4, %c0_5] : memref<1x512xf32, #tpu.memory_space<vmem>>, vector<1x512xf32>
    %5 = vector.broadcast %4 : vector<1x512xf32> to vector<64x512xf32>
    %6 = arith.addf %3, %5 : vector<64x512xf32>
    %7 = vector.shape_cast %6 : vector<64x512xf32> to vector<8x8x512xf32>
    %c0_6 = arith.constant 0 : index
    %c0_7 = arith.constant 0 : index
    %c0_8 = arith.constant 0 : index
    %8 = vector.load %arg15[%c0_6, %c0_7, %c0_8] : memref<8x8x512xf32, #tpu.memory_space<vmem>>, vector<8x8x512xf32>
    tpu.vector_store %arg15[%c0_6, %c0_7, %c0_8], %7 {strides = array<i32>} : memref<8x8x512xf32, #tpu.memory_space<vmem>>, vector<8x8x512xf32>,
    %c0_9 = arith.constant 0 : index
    %c0_10 = arith.constant 0 : index
    %9 = vector.load %arg4[%c0_9, %c0_10] : memref<128x512xf32, #tpu.memory_space<vmem>>, vector<128x512xf32>
    %cst_11 = arith.constant 0.000000e+00 : f32
    %10 = vector.broadcast %cst_11 : f32 to vector<8x128xf32>
    %cst_12 = arith.constant 0.000000e+00 : f32
    %11 = vector.broadcast %cst_12 : f32 to vector<8x128xf32>
    %c0_i32 = arith.constant 0 : i32
    %12 = arith.index_cast %c0_i32 : i32 to index
    %c0_13 = arith.constant 0 : index
    %c0_14 = arith.constant 0 : index
    %13 = vector.load %arg15[%12, %c0_13, %c0_14] : memref<8x8x512xf32, #tpu.memory_space<vmem>>, vector<1x8x512xf32>
    %14 = vector.shape_cast %13 : vector<1x8x512xf32> to vector<8x512xf32>
    %cst_15 = arith.constant dense<0.000000e+00> : vector<8x512xf32>
    %15 = tpu.matmul %10, %9, %cst_15 {dimension_numbers = #tpu.dot_dimension_numbers<[1], [0], [0], [1], [0, 0, 1, 1], [], []>} : vector<8x128xf32>, vector<128x512xf32>, vector<8x512xf32> -> vector<8x512xf32>
    %16 = arith.addf %14, %15 : vector<8x512xf32>
    %17 = vector.extract_strided_slice %16 {offsets = [0, 0], sizes = [8, 128], strides = [1, 1]} : vector<8x512xf32> to vector<8x128xf32>
    %cst_16 = arith.constant 5.000000e-01 : f32
    %18 = vector.broadcast %cst_16 : f32 to vector<8x128xf32>
    %19 = arith.mulf %18, %17 : vector<8x128xf32>
    %20 = math.tanh %19 : vector<8x128xf32>
    %cst_17 = arith.constant 5.000000e-01 : f32
    %21 = vector.broadcast %cst_17 : f32 to vector<8x128xf32>
    %22 = arith.mulf %21, %20 : vector<8x128xf32>
    %cst_18 = arith.constant 5.000000e-01 : f32
    %23 = vector.broadcast %cst_18 : f32 to vector<8x128xf32>
    %24 = arith.addf %22, %23 : vector<8x128xf32>
    %25 = vector.extract_strided_slice %16 {offsets = [0, 128], sizes = [8, 128], strides = [1, 1]} : vector<8x512xf32> to vector<8x128xf32>
    %cst_19 = arith.constant 5.000000e-01 : f32
    %26 = vector.broadcast %cst_19 : f32 to vector<8x128xf32>
    %27 = arith.mulf %26, %25 : vector<8x128xf32>
    %28 = math.tanh %27 : vector<8x128xf32>
    %cst_20 = arith.constant 5.000000e-01 : f32
    %29 = vector.broadcast %cst_20 : f32 to vector<8x128xf32>
    %30 = arith.mulf %29, %28 : vector<8x128xf32>
    %cst_21 = arith.constant 5.000000e-01 : f32
    %31 = vector.broadcast %cst_21 : f32 to vector<8x128xf32>
    %32 = arith.addf %30, %31 : vector<8x128xf32>
    %33 = vector.extract_strided_slice %16 {offsets = [0, 256], sizes = [8, 128], strides = [1, 1]} : vector<8x512xf32> to vector<8x128xf32>
    %34 = math.tanh %33 : vector<8x128xf32>
    %35 = vector.extract_strided_slice %16 {offsets = [0, 384], sizes = [8, 128], strides = [1, 1]} : vector<8x512xf32> to vector<8x128xf32>
    %cst_22 = arith.constant 5.000000e-01 : f32
    %36 = vector.broadcast %cst_22 : f32 to vector<8x128xf32>
    %37 = arith.mulf %36, %35 : vector<8x128xf32>
    %38 = math.tanh %37 : vector<8x128xf32>
    %cst_23 = arith.constant 5.000000e-01 : f32
    %39 = vector.broadcast %cst_23 : f32 to vector<8x128xf32>
    %40 = arith.mulf %39, %38 : vector<8x128xf32>
    %cst_24 = arith.constant 5.000000e-01 : f32
    %41 = vector.broadcast %cst_24 : f32 to vector<8x128xf32>
    %42 = arith.addf %40, %41 : vector<8x128xf32>
    %43 = arith.mulf %32, %11 : vector<8x128xf32>
    %44 = arith.mulf %24, %34 : vector<8x128xf32>
    %45 = arith.addf %43, %44 : vector<8x128xf32>
    %46 = math.tanh %45 : vector<8x128xf32>
    %47 = arith.mulf %42, %46 : vector<8x128xf32>
    %48 = arith.index_cast %c0_i32 : i32 to index
    %c0_25 = arith.constant 0 : index
    %c0_26 = arith.constant 0 : index
    %49 = vector.load %arg16[%48, %c0_25, %c0_26] : memref<8x8x128xf32, #tpu.memory_space<vmem>>, vector<1x8x128xf32>
    %50 = vector.shape_cast %49 : vector<1x8x128xf32> to vector<8x128xf32>
    %51 = vector.shape_cast %47 : vector<8x128xf32> to vector<1x8x128xf32>
    tpu.vector_store %arg16[%48, %c0_25, %c0_26], %51 {strides = array<i32>} : memref<8x8x128xf32, #tpu.memory_space<vmem>>, vector<1x8x128xf32>,
    %c1_i32 = arith.constant 1 : i32
    %52 = arith.index_cast %c1_i32 : i32 to index
    %c0_27 = arith.constant 0 : index
    %c0_28 = arith.constant 0 : index
    %53 = vector.load %arg15[%52, %c0_27, %c0_28] : memref<8x8x512xf32, #tpu.memory_space<vmem>>, vector<1x8x512xf32>
    %54 = vector.shape_cast %53 : vector<1x8x512xf32> to vector<8x512xf32>
    %cst_29 = arith.constant dense<0.000000e+00> : vector<8x512xf32>
    %55 = tpu.matmul %47, %9, %cst_29 {dimension_numbers = #tpu.dot_dimension_numbers<[1], [0], [0], [1], [0, 0, 1, 1], [], []>} : vector<8x128xf32>, vector<128x512xf32>, vector<8x512xf32> -> vector<8x512xf32>
    %56 = arith.addf %54, %55 : vector<8x512xf32>
    %57 = vector.extract_strided_slice %56 {offsets = [0, 0], sizes = [8, 128], strides = [1, 1]} : vector<8x512xf32> to vector<8x128xf32>
    %cst_30 = arith.constant 5.000000e-01 : f32
    %58 = vector.broadcast %cst_30 : f32 to vector<8x128xf32>
    %59 = arith.mulf %58, %57 : vector<8x128xf32>
    %60 = math.tanh %59 : vector<8x128xf32>
    %cst_31 = arith.constant 5.000000e-01 : f32
    %61 = vector.broadcast %cst_31 : f32 to vector<8x128xf32>
    %62 = arith.mulf %61, %60 : vector<8x128xf32>
    %cst_32 = arith.constant 5.000000e-01 : f32
    %63 = vector.broadcast %cst_32 : f32 to vector<8x128xf32>
    %64 = arith.addf %62, %63 : vector<8x128xf32>
    %65 = vector.extract_strided_slice %56 {offsets = [0, 128], sizes = [8, 128], strides = [1, 1]} : vector<8x512xf32> to vector<8x128xf32>
    %cst_33 = arith.constant 5.000000e-01 : f32
    %66 = vector.broadcast %cst_33 : f32 to vector<8x128xf32>
    %67 = arith.mulf %66, %65 : vector<8x128xf32>
    %68 = math.tanh %67 : vector<8x128xf32>
    %cst_34 = arith.constant 5.000000e-01 : f32
    %69 = vector.broadcast %cst_34 : f32 to vector<8x128xf32>
    %70 = arith.mulf %69, %68 : vector<8x128xf32>
    %cst_35 = arith.constant 5.000000e-01 : f32
    %71 = vector.broadcast %cst_35 : f32 to vector<8x128xf32>
    %72 = arith.addf %70, %71 : vector<8x128xf32>
    %73 = vector.extract_strided_slice %56 {offsets = [0, 256], sizes = [8, 128], strides = [1, 1]} : vector<8x512xf32> to vector<8x128xf32>
    %74 = math.tanh %73 : vector<8x128xf32>
    %75 = vector.extract_strided_slice %56 {offsets = [0, 384], sizes = [8, 128], strides = [1, 1]} : vector<8x512xf32> to vector<8x128xf32>
    %cst_36 = arith.constant 5.000000e-01 : f32
    %76 = vector.broadcast %cst_36 : f32 to vector<8x128xf32>
    %77 = arith.mulf %76, %75 : vector<8x128xf32>
    %78 = math.tanh %77 : vector<8x128xf32>
    %cst_37 = arith.constant 5.000000e-01 : f32
    %79 = vector.broadcast %cst_37 : f32 to vector<8x128xf32>
    %80 = arith.mulf %79, %78 : vector<8x128xf32>
    %cst_38 = arith.constant 5.000000e-01 : f32
    %81 = vector.broadcast %cst_38 : f32 to vector<8x128xf32>
    %82 = arith.addf %80, %81 : vector<8x128xf32>
    %83 = arith.mulf %72, %45 : vector<8x128xf32>
    %84 = arith.mulf %64, %74 : vector<8x128xf32>
    %85 = arith.addf %83, %84 : vector<8x128xf32>
    %86 = math.tanh %85 : vector<8x128xf32>
    %87 = arith.mulf %82, %86 : vector<8x128xf32>
    %88 = arith.index_cast %c1_i32 : i32 to index
    %c0_39 = arith.constant 0 : index
    %c0_40 = arith.constant 0 : index
    %89 = vector.load %arg16[%88, %c0_39, %c0_40] : memref<8x8x128xf32, #tpu.memory_space<vmem>>, vector<1x8x128xf32>
    %90 = vector.shape_cast %89 : vector<1x8x128xf32> to vector<8x128xf32>
    %91 = vector.shape_cast %87 : vector<8x128xf32> to vector<1x8x128xf32>
    tpu.vector_store %arg16[%88, %c0_39, %c0_40], %91 {strides = array<i32>} : memref<8x8x128xf32, #tpu.memory_space<vmem>>, vector<1x8x128xf32>,
    %c2_i32 = arith.constant 2 : i32
    %92 = arith.index_cast %c2_i32 : i32 to index
    %c0_41 = arith.constant 0 : index
    %c0_42 = arith.constant 0 : index
    %93 = vector.load %arg15[%92, %c0_41, %c0_42] : memref<8x8x512xf32, #tpu.memory_space<vmem>>, vector<1x8x512xf32>
    %94 = vector.shape_cast %93 : vector<1x8x512xf32> to vector<8x512xf32>
    %cst_43 = arith.constant dense<0.000000e+00> : vector<8x512xf32>
    %95 = tpu.matmul %87, %9, %cst_43 {dimension_numbers = #tpu.dot_dimension_numbers<[1], [0], [0], [1], [0, 0, 1, 1], [], []>} : vector<8x128xf32>, vector<128x512xf32>, vector<8x512xf32> -> vector<8x512xf32>
    %96 = arith.addf %94, %95 : vector<8x512xf32>
    %97 = vector.extract_strided_slice %96 {offsets = [0, 0], sizes = [8, 128], strides = [1, 1]} : vector<8x512xf32> to vector<8x128xf32>
    %cst_44 = arith.constant 5.000000e-01 : f32
    %98 = vector.broadcast %cst_44 : f32 to vector<8x128xf32>
    %99 = arith.mulf %98, %97 : vector<8x128xf32>
    %100 = math.tanh %99 : vector<8x128xf32>
    %cst_45 = arith.constant 5.000000e-01 : f32
    %101 = vector.broadcast %cst_45 : f32 to vector<8x128xf32>
    %102 = arith.mulf %101, %100 : vector<8x128xf32>
    %cst_46 = arith.constant 5.000000e-01 : f32
    %103 = vector.broadcast %cst_46 : f32 to vector<8x128xf32>
    %104 = arith.addf %102, %103 : vector<8x128xf32>
    %105 = vector.extract_strided_slice %96 {offsets = [0, 128], sizes = [8, 128], strides = [1, 1]} : vector<8x512xf32> to vector<8x128xf32>
    %cst_47 = arith.constant 5.000000e-01 : f32
    %106 = vector.broadcast %cst_47 : f32 to vector<8x128xf32>
    %107 = arith.mulf %106, %105 : vector<8x128xf32>
    %108 = math.tanh %107 : vector<8x128xf32>
    %cst_48 = arith.constant 5.000000e-01 : f32
    %109 = vector.broadcast %cst_48 : f32 to vector<8x128xf32>
    %110 = arith.mulf %109, %108 : vector<8x128xf32>
    %cst_49 = arith.constant 5.000000e-01 : f32
    %111 = vector.broadcast %cst_49 : f32 to vector<8x128xf32>
    %112 = arith.addf %110, %111 : vector<8x128xf32>
    %113 = vector.extract_strided_slice %96 {offsets = [0, 256], sizes = [8, 128], strides = [1, 1]} : vector<8x512xf32> to vector<8x128xf32>
    %114 = math.tanh %113 : vector<8x128xf32>
    %115 = vector.extract_strided_slice %96 {offsets = [0, 384], sizes = [8, 128], strides = [1, 1]} : vector<8x512xf32> to vector<8x128xf32>
    %cst_50 = arith.constant 5.000000e-01 : f32
    %116 = vector.broadcast %cst_50 : f32 to vector<8x128xf32>
    %117 = arith.mulf %116, %115 : vector<8x128xf32>
    %118 = math.tanh %117 : vector<8x128xf32>
    %cst_51 = arith.constant 5.000000e-01 : f32
    %119 = vector.broadcast %cst_51 : f32 to vector<8x128xf32>
    %120 = arith.mulf %119, %118 : vector<8x128xf32>
    %cst_52 = arith.constant 5.000000e-01 : f32
    %121 = vector.broadcast %cst_52 : f32 to vector<8x128xf32>
    %122 = arith.addf %120, %121 : vector<8x128xf32>
    %123 = arith.mulf %112, %85 : vector<8x128xf32>
    %124 = arith.mulf %104, %114 : vector<8x128xf32>
    %125 = arith.addf %123, %124 : vector<8x128xf32>
    %126 = math.tanh %125 : vector<8x128xf32>
    %127 = arith.mulf %122, %126 : vector<8x128xf32>
    %128 = arith.index_cast %c2_i32 : i32 to index
    %c0_53 = arith.constant 0 : index
    %c0_54 = arith.constant 0 : index
    %129 = vector.load %arg16[%128, %c0_53, %c0_54] : memref<8x8x128xf32, #tpu.memory_space<vmem>>, vector<1x8x128xf32>
    %130 = vector.shape_cast %129 : vector<1x8x128xf32> to vector<8x128xf32>
    %131 = vector.shape_cast %127 : vector<8x128xf32> to vector<1x8x128xf32>
    tpu.vector_store %arg16[%128, %c0_53, %c0_54], %131 {strides = array<i32>} : memref<8x8x128xf32, #tpu.memory_space<vmem>>, vector<1x8x128xf32>,
    %c3_i32 = arith.constant 3 : i32
    %132 = arith.index_cast %c3_i32 : i32 to index
    %c0_55 = arith.constant 0 : index
    %c0_56 = arith.constant 0 : index
    %133 = vector.load %arg15[%132, %c0_55, %c0_56] : memref<8x8x512xf32, #tpu.memory_space<vmem>>, vector<1x8x512xf32>
    %134 = vector.shape_cast %133 : vector<1x8x512xf32> to vector<8x512xf32>
    %cst_57 = arith.constant dense<0.000000e+00> : vector<8x512xf32>
    %135 = tpu.matmul %127, %9, %cst_57 {dimension_numbers = #tpu.dot_dimension_numbers<[1], [0], [0], [1], [0, 0, 1, 1], [], []>} : vector<8x128xf32>, vector<128x512xf32>, vector<8x512xf32> -> vector<8x512xf32>
    %136 = arith.addf %134, %135 : vector<8x512xf32>
    %137 = vector.extract_strided_slice %136 {offsets = [0, 0], sizes = [8, 128], strides = [1, 1]} : vector<8x512xf32> to vector<8x128xf32>
    %cst_58 = arith.constant 5.000000e-01 : f32
    %138 = vector.broadcast %cst_58 : f32 to vector<8x128xf32>
    %139 = arith.mulf %138, %137 : vector<8x128xf32>
    %140 = math.tanh %139 : vector<8x128xf32>
    %cst_59 = arith.constant 5.000000e-01 : f32
    %141 = vector.broadcast %cst_59 : f32 to vector<8x128xf32>
    %142 = arith.mulf %141, %140 : vector<8x128xf32>
    %cst_60 = arith.constant 5.000000e-01 : f32
    %143 = vector.broadcast %cst_60 : f32 to vector<8x128xf32>
    %144 = arith.addf %142, %143 : vector<8x128xf32>
    %145 = vector.extract_strided_slice %136 {offsets = [0, 128], sizes = [8, 128], strides = [1, 1]} : vector<8x512xf32> to vector<8x128xf32>
    %cst_61 = arith.constant 5.000000e-01 : f32
    %146 = vector.broadcast %cst_61 : f32 to vector<8x128xf32>
    %147 = arith.mulf %146, %145 : vector<8x128xf32>
    %148 = math.tanh %147 : vector<8x128xf32>
    %cst_62 = arith.constant 5.000000e-01 : f32
    %149 = vector.broadcast %cst_62 : f32 to vector<8x128xf32>
    %150 = arith.mulf %149, %148 : vector<8x128xf32>
    %cst_63 = arith.constant 5.000000e-01 : f32
    %151 = vector.broadcast %cst_63 : f32 to vector<8x128xf32>
    %152 = arith.addf %150, %151 : vector<8x128xf32>
    %153 = vector.extract_strided_slice %136 {offsets = [0, 256], sizes = [8, 128], strides = [1, 1]} : vector<8x512xf32> to vector<8x128xf32>
    %154 = math.tanh %153 : vector<8x128xf32>
    %155 = vector.extract_strided_slice %136 {offsets = [0, 384], sizes = [8, 128], strides = [1, 1]} : vector<8x512xf32> to vector<8x128xf32>
    %cst_64 = arith.constant 5.000000e-01 : f32
    %156 = vector.broadcast %cst_64 : f32 to vector<8x128xf32>
    %157 = arith.mulf %156, %155 : vector<8x128xf32>
    %158 = math.tanh %157 : vector<8x128xf32>
    %cst_65 = arith.constant 5.000000e-01 : f32
    %159 = vector.broadcast %cst_65 : f32 to vector<8x128xf32>
    %160 = arith.mulf %159, %158 : vector<8x128xf32>
    %cst_66 = arith.constant 5.000000e-01 : f32
    %161 = vector.broadcast %cst_66 : f32 to vector<8x128xf32>
    %162 = arith.addf %160, %161 : vector<8x128xf32>
    %163 = arith.mulf %152, %125 : vector<8x128xf32>
    %164 = arith.mulf %144, %154 : vector<8x128xf32>
    %165 = arith.addf %163, %164 : vector<8x128xf32>
    %166 = math.tanh %165 : vector<8x128xf32>
    %167 = arith.mulf %162, %166 : vector<8x128xf32>
    %168 = arith.index_cast %c3_i32 : i32 to index
    %c0_67 = arith.constant 0 : index
    %c0_68 = arith.constant 0 : index
    %169 = vector.load %arg16[%168, %c0_67, %c0_68] : memref<8x8x128xf32, #tpu.memory_space<vmem>>, vector<1x8x128xf32>
    %170 = vector.shape_cast %169 : vector<1x8x128xf32> to vector<8x128xf32>
    %171 = vector.shape_cast %167 : vector<8x128xf32> to vector<1x8x128xf32>
    tpu.vector_store %arg16[%168, %c0_67, %c0_68], %171 {strides = array<i32>} : memref<8x8x128xf32, #tpu.memory_space<vmem>>, vector<1x8x128xf32>,
    %c4_i32 = arith.constant 4 : i32
    %172 = arith.index_cast %c4_i32 : i32 to index
    %c0_69 = arith.constant 0 : index
    %c0_70 = arith.constant 0 : index
    %173 = vector.load %arg15[%172, %c0_69, %c0_70] : memref<8x8x512xf32, #tpu.memory_space<vmem>>, vector<1x8x512xf32>
    %174 = vector.shape_cast %173 : vector<1x8x512xf32> to vector<8x512xf32>
    %cst_71 = arith.constant dense<0.000000e+00> : vector<8x512xf32>
    %175 = tpu.matmul %167, %9, %cst_71 {dimension_numbers = #tpu.dot_dimension_numbers<[1], [0], [0], [1], [0, 0, 1, 1], [], []>} : vector<8x128xf32>, vector<128x512xf32>, vector<8x512xf32> -> vector<8x512xf32>
    %176 = arith.addf %174, %175 : vector<8x512xf32>
    %177 = vector.extract_strided_slice %176 {offsets = [0, 0], sizes = [8, 128], strides = [1, 1]} : vector<8x512xf32> to vector<8x128xf32>
    %cst_72 = arith.constant 5.000000e-01 : f32
    %178 = vector.broadcast %cst_72 : f32 to vector<8x128xf32>
    %179 = arith.mulf %178, %177 : vector<8x128xf32>
    %180 = math.tanh %179 : vector<8x128xf32>
    %cst_73 = arith.constant 5.000000e-01 : f32
    %181 = vector.broadcast %cst_73 : f32 to vector<8x128xf32>
    %182 = arith.mulf %181, %180 : vector<8x128xf32>
    %cst_74 = arith.constant 5.000000e-01 : f32
    %183 = vector.broadcast %cst_74 : f32 to vector<8x128xf32>
    %184 = arith.addf %182, %183 : vector<8x128xf32>
    %185 = vector.extract_strided_slice %176 {offsets = [0, 128], sizes = [8, 128], strides = [1, 1]} : vector<8x512xf32> to vector<8x128xf32>
    %cst_75 = arith.constant 5.000000e-01 : f32
    %186 = vector.broadcast %cst_75 : f32 to vector<8x128xf32>
    %187 = arith.mulf %186, %185 : vector<8x128xf32>
    %188 = math.tanh %187 : vector<8x128xf32>
    %cst_76 = arith.constant 5.000000e-01 : f32
    %189 = vector.broadcast %cst_76 : f32 to vector<8x128xf32>
    %190 = arith.mulf %189, %188 : vector<8x128xf32>
    %cst_77 = arith.constant 5.000000e-01 : f32
    %191 = vector.broadcast %cst_77 : f32 to vector<8x128xf32>
    %192 = arith.addf %190, %191 : vector<8x128xf32>
    %193 = vector.extract_strided_slice %176 {offsets = [0, 256], sizes = [8, 128], strides = [1, 1]} : vector<8x512xf32> to vector<8x128xf32>
    %194 = math.tanh %193 : vector<8x128xf32>
    %195 = vector.extract_strided_slice %176 {offsets = [0, 384], sizes = [8, 128], strides = [1, 1]} : vector<8x512xf32> to vector<8x128xf32>
    %cst_78 = arith.constant 5.000000e-01 : f32
    %196 = vector.broadcast %cst_78 : f32 to vector<8x128xf32>
    %197 = arith.mulf %196, %195 : vector<8x128xf32>
    %198 = math.tanh %197 : vector<8x128xf32>
    %cst_79 = arith.constant 5.000000e-01 : f32
    %199 = vector.broadcast %cst_79 : f32 to vector<8x128xf32>
    %200 = arith.mulf %199, %198 : vector<8x128xf32>
    %cst_80 = arith.constant 5.000000e-01 : f32
    %201 = vector.broadcast %cst_80 : f32 to vector<8x128xf32>
    %202 = arith.addf %200, %201 : vector<8x128xf32>
    %203 = arith.mulf %192, %165 : vector<8x128xf32>
    %204 = arith.mulf %184, %194 : vector<8x128xf32>
    %205 = arith.addf %203, %204 : vector<8x128xf32>
    %206 = math.tanh %205 : vector<8x128xf32>
    %207 = arith.mulf %202, %206 : vector<8x128xf32>
    %208 = arith.index_cast %c4_i32 : i32 to index
    %c0_81 = arith.constant 0 : index
    %c0_82 = arith.constant 0 : index
    %209 = vector.load %arg16[%208, %c0_81, %c0_82] : memref<8x8x128xf32, #tpu.memory_space<vmem>>, vector<1x8x128xf32>
    %210 = vector.shape_cast %209 : vector<1x8x128xf32> to vector<8x128xf32>
    %211 = vector.shape_cast %207 : vector<8x128xf32> to vector<1x8x128xf32>
    tpu.vector_store %arg16[%208, %c0_81, %c0_82], %211 {strides = array<i32>} : memref<8x8x128xf32, #tpu.memory_space<vmem>>, vector<1x8x128xf32>,
    %c5_i32 = arith.constant 5 : i32
    %212 = arith.index_cast %c5_i32 : i32 to index
    %c0_83 = arith.constant 0 : index
    %c0_84 = arith.constant 0 : index
    %213 = vector.load %arg15[%212, %c0_83, %c0_84] : memref<8x8x512xf32, #tpu.memory_space<vmem>>, vector<1x8x512xf32>
    %214 = vector.shape_cast %213 : vector<1x8x512xf32> to vector<8x512xf32>
    %cst_85 = arith.constant dense<0.000000e+00> : vector<8x512xf32>
    %215 = tpu.matmul %207, %9, %cst_85 {dimension_numbers = #tpu.dot_dimension_numbers<[1], [0], [0], [1], [0, 0, 1, 1], [], []>} : vector<8x128xf32>, vector<128x512xf32>, vector<8x512xf32> -> vector<8x512xf32>
    %216 = arith.addf %214, %215 : vector<8x512xf32>
    %217 = vector.extract_strided_slice %216 {offsets = [0, 0], sizes = [8, 128], strides = [1, 1]} : vector<8x512xf32> to vector<8x128xf32>
    %cst_86 = arith.constant 5.000000e-01 : f32
    %218 = vector.broadcast %cst_86 : f32 to vector<8x128xf32>
    %219 = arith.mulf %218, %217 : vector<8x128xf32>
    %220 = math.tanh %219 : vector<8x128xf32>
    %cst_87 = arith.constant 5.000000e-01 : f32
    %221 = vector.broadcast %cst_87 : f32 to vector<8x128xf32>
    %222 = arith.mulf %221, %220 : vector<8x128xf32>
    %cst_88 = arith.constant 5.000000e-01 : f32
    %223 = vector.broadcast %cst_88 : f32 to vector<8x128xf32>
    %224 = arith.addf %222, %223 : vector<8x128xf32>
    %225 = vector.extract_strided_slice %216 {offsets = [0, 128], sizes = [8, 128], strides = [1, 1]} : vector<8x512xf32> to vector<8x128xf32>
    %cst_89 = arith.constant 5.000000e-01 : f32
    %226 = vector.broadcast %cst_89 : f32 to vector<8x128xf32>
    %227 = arith.mulf %226, %225 : vector<8x128xf32>
    %228 = math.tanh %227 : vector<8x128xf32>
    %cst_90 = arith.constant 5.000000e-01 : f32
    %229 = vector.broadcast %cst_90 : f32 to vector<8x128xf32>
    %230 = arith.mulf %229, %228 : vector<8x128xf32>
    %cst_91 = arith.constant 5.000000e-01 : f32
    %231 = vector.broadcast %cst_91 : f32 to vector<8x128xf32>
    %232 = arith.addf %230, %231 : vector<8x128xf32>
    %233 = vector.extract_strided_slice %216 {offsets = [0, 256], sizes = [8, 128], strides = [1, 1]} : vector<8x512xf32> to vector<8x128xf32>
    %234 = math.tanh %233 : vector<8x128xf32>
    %235 = vector.extract_strided_slice %216 {offsets = [0, 384], sizes = [8, 128], strides = [1, 1]} : vector<8x512xf32> to vector<8x128xf32>
    %cst_92 = arith.constant 5.000000e-01 : f32
    %236 = vector.broadcast %cst_92 : f32 to vector<8x128xf32>
    %237 = arith.mulf %236, %235 : vector<8x128xf32>
    %238 = math.tanh %237 : vector<8x128xf32>
    %cst_93 = arith.constant 5.000000e-01 : f32
    %239 = vector.broadcast %cst_93 : f32 to vector<8x128xf32>
    %240 = arith.mulf %239, %238 : vector<8x128xf32>
    %cst_94 = arith.constant 5.000000e-01 : f32
    %241 = vector.broadcast %cst_94 : f32 to vector<8x128xf32>
    %242 = arith.addf %240, %241 : vector<8x128xf32>
    %243 = arith.mulf %232, %205 : vector<8x128xf32>
    %244 = arith.mulf %224, %234 : vector<8x128xf32>
    %245 = arith.addf %243, %244 : vector<8x128xf32>
    %246 = math.tanh %245 : vector<8x128xf32>
    %247 = arith.mulf %242, %246 : vector<8x128xf32>
    %248 = arith.index_cast %c5_i32 : i32 to index
    %c0_95 = arith.constant 0 : index
    %c0_96 = arith.constant 0 : index
    %249 = vector.load %arg16[%248, %c0_95, %c0_96] : memref<8x8x128xf32, #tpu.memory_space<vmem>>, vector<1x8x128xf32>
    %250 = vector.shape_cast %249 : vector<1x8x128xf32> to vector<8x128xf32>
    %251 = vector.shape_cast %247 : vector<8x128xf32> to vector<1x8x128xf32>
    tpu.vector_store %arg16[%248, %c0_95, %c0_96], %251 {strides = array<i32>} : memref<8x8x128xf32, #tpu.memory_space<vmem>>, vector<1x8x128xf32>,
    %c6_i32 = arith.constant 6 : i32
    %252 = arith.index_cast %c6_i32 : i32 to index
    %c0_97 = arith.constant 0 : index
    %c0_98 = arith.constant 0 : index
    %253 = vector.load %arg15[%252, %c0_97, %c0_98] : memref<8x8x512xf32, #tpu.memory_space<vmem>>, vector<1x8x512xf32>
    %254 = vector.shape_cast %253 : vector<1x8x512xf32> to vector<8x512xf32>
    %cst_99 = arith.constant dense<0.000000e+00> : vector<8x512xf32>
    %255 = tpu.matmul %247, %9, %cst_99 {dimension_numbers = #tpu.dot_dimension_numbers<[1], [0], [0], [1], [0, 0, 1, 1], [], []>} : vector<8x128xf32>, vector<128x512xf32>, vector<8x512xf32> -> vector<8x512xf32>
    %256 = arith.addf %254, %255 : vector<8x512xf32>
    %257 = vector.extract_strided_slice %256 {offsets = [0, 0], sizes = [8, 128], strides = [1, 1]} : vector<8x512xf32> to vector<8x128xf32>
    %cst_100 = arith.constant 5.000000e-01 : f32
    %258 = vector.broadcast %cst_100 : f32 to vector<8x128xf32>
    %259 = arith.mulf %258, %257 : vector<8x128xf32>
    %260 = math.tanh %259 : vector<8x128xf32>
    %cst_101 = arith.constant 5.000000e-01 : f32
    %261 = vector.broadcast %cst_101 : f32 to vector<8x128xf32>
    %262 = arith.mulf %261, %260 : vector<8x128xf32>
    %cst_102 = arith.constant 5.000000e-01 : f32
    %263 = vector.broadcast %cst_102 : f32 to vector<8x128xf32>
    %264 = arith.addf %262, %263 : vector<8x128xf32>
    %265 = vector.extract_strided_slice %256 {offsets = [0, 128], sizes = [8, 128], strides = [1, 1]} : vector<8x512xf32> to vector<8x128xf32>
    %cst_103 = arith.constant 5.000000e-01 : f32
    %266 = vector.broadcast %cst_103 : f32 to vector<8x128xf32>
    %267 = arith.mulf %266, %265 : vector<8x128xf32>
    %268 = math.tanh %267 : vector<8x128xf32>
    %cst_104 = arith.constant 5.000000e-01 : f32
    %269 = vector.broadcast %cst_104 : f32 to vector<8x128xf32>
    %270 = arith.mulf %269, %268 : vector<8x128xf32>
    %cst_105 = arith.constant 5.000000e-01 : f32
    %271 = vector.broadcast %cst_105 : f32 to vector<8x128xf32>
    %272 = arith.addf %270, %271 : vector<8x128xf32>
    %273 = vector.extract_strided_slice %256 {offsets = [0, 256], sizes = [8, 128], strides = [1, 1]} : vector<8x512xf32> to vector<8x128xf32>
    %274 = math.tanh %273 : vector<8x128xf32>
    %275 = vector.extract_strided_slice %256 {offsets = [0, 384], sizes = [8, 128], strides = [1, 1]} : vector<8x512xf32> to vector<8x128xf32>
    %cst_106 = arith.constant 5.000000e-01 : f32
    %276 = vector.broadcast %cst_106 : f32 to vector<8x128xf32>
    %277 = arith.mulf %276, %275 : vector<8x128xf32>
    %278 = math.tanh %277 : vector<8x128xf32>
    %cst_107 = arith.constant 5.000000e-01 : f32
    %279 = vector.broadcast %cst_107 : f32 to vector<8x128xf32>
    %280 = arith.mulf %279, %278 : vector<8x128xf32>
    %cst_108 = arith.constant 5.000000e-01 : f32
    %281 = vector.broadcast %cst_108 : f32 to vector<8x128xf32>
    %282 = arith.addf %280, %281 : vector<8x128xf32>
    %283 = arith.mulf %272, %245 : vector<8x128xf32>
    %284 = arith.mulf %264, %274 : vector<8x128xf32>
    %285 = arith.addf %283, %284 : vector<8x128xf32>
    %286 = math.tanh %285 : vector<8x128xf32>
    %287 = arith.mulf %282, %286 : vector<8x128xf32>
    %288 = arith.index_cast %c6_i32 : i32 to index
    %c0_109 = arith.constant 0 : index
    %c0_110 = arith.constant 0 : index
    %289 = vector.load %arg16[%288, %c0_109, %c0_110] : memref<8x8x128xf32, #tpu.memory_space<vmem>>, vector<1x8x128xf32>
    %290 = vector.shape_cast %289 : vector<1x8x128xf32> to vector<8x128xf32>
    %291 = vector.shape_cast %287 : vector<8x128xf32> to vector<1x8x128xf32>
    tpu.vector_store %arg16[%288, %c0_109, %c0_110], %291 {strides = array<i32>} : memref<8x8x128xf32, #tpu.memory_space<vmem>>, vector<1x8x128xf32>,
    %c7_i32 = arith.constant 7 : i32
    %292 = arith.index_cast %c7_i32 : i32 to index
    %c0_111 = arith.constant 0 : index
    %c0_112 = arith.constant 0 : index
    %293 = vector.load %arg15[%292, %c0_111, %c0_112] : memref<8x8x512xf32, #tpu.memory_space<vmem>>, vector<1x8x512xf32>
    %294 = vector.shape_cast %293 : vector<1x8x512xf32> to vector<8x512xf32>
    %cst_113 = arith.constant dense<0.000000e+00> : vector<8x512xf32>
    %295 = tpu.matmul %287, %9, %cst_113 {dimension_numbers = #tpu.dot_dimension_numbers<[1], [0], [0], [1], [0, 0, 1, 1], [], []>} : vector<8x128xf32>, vector<128x512xf32>, vector<8x512xf32> -> vector<8x512xf32>
    %296 = arith.addf %294, %295 : vector<8x512xf32>
    %297 = vector.extract_strided_slice %296 {offsets = [0, 0], sizes = [8, 128], strides = [1, 1]} : vector<8x512xf32> to vector<8x128xf32>
    %cst_114 = arith.constant 5.000000e-01 : f32
    %298 = vector.broadcast %cst_114 : f32 to vector<8x128xf32>
    %299 = arith.mulf %298, %297 : vector<8x128xf32>
    %300 = math.tanh %299 : vector<8x128xf32>
    %cst_115 = arith.constant 5.000000e-01 : f32
    %301 = vector.broadcast %cst_115 : f32 to vector<8x128xf32>
    %302 = arith.mulf %301, %300 : vector<8x128xf32>
    %cst_116 = arith.constant 5.000000e-01 : f32
    %303 = vector.broadcast %cst_116 : f32 to vector<8x128xf32>
    %304 = arith.addf %302, %303 : vector<8x128xf32>
    %305 = vector.extract_strided_slice %296 {offsets = [0, 128], sizes = [8, 128], strides = [1, 1]} : vector<8x512xf32> to vector<8x128xf32>
    %cst_117 = arith.constant 5.000000e-01 : f32
    %306 = vector.broadcast %cst_117 : f32 to vector<8x128xf32>
    %307 = arith.mulf %306, %305 : vector<8x128xf32>
    %308 = math.tanh %307 : vector<8x128xf32>
    %cst_118 = arith.constant 5.000000e-01 : f32
    %309 = vector.broadcast %cst_118 : f32 to vector<8x128xf32>
    %310 = arith.mulf %309, %308 : vector<8x128xf32>
    %cst_119 = arith.constant 5.000000e-01 : f32
    %311 = vector.broadcast %cst_119 : f32 to vector<8x128xf32>
    %312 = arith.addf %310, %311 : vector<8x128xf32>
    %313 = vector.extract_strided_slice %296 {offsets = [0, 256], sizes = [8, 128], strides = [1, 1]} : vector<8x512xf32> to vector<8x128xf32>
    %314 = math.tanh %313 : vector<8x128xf32>
    %315 = vector.extract_strided_slice %296 {offsets = [0, 384], sizes = [8, 128], strides = [1, 1]} : vector<8x512xf32> to vector<8x128xf32>
    %cst_120 = arith.constant 5.000000e-01 : f32
    %316 = vector.broadcast %cst_120 : f32 to vector<8x128xf32>
    %317 = arith.mulf %316, %315 : vector<8x128xf32>
    %318 = math.tanh %317 : vector<8x128xf32>
    %cst_121 = arith.constant 5.000000e-01 : f32
    %319 = vector.broadcast %cst_121 : f32 to vector<8x128xf32>
    %320 = arith.mulf %319, %318 : vector<8x128xf32>
    %cst_122 = arith.constant 5.000000e-01 : f32
    %321 = vector.broadcast %cst_122 : f32 to vector<8x128xf32>
    %322 = arith.addf %320, %321 : vector<8x128xf32>
    %323 = arith.mulf %312, %285 : vector<8x128xf32>
    %324 = arith.mulf %304, %314 : vector<8x128xf32>
    %325 = arith.addf %323, %324 : vector<8x128xf32>
    %326 = math.tanh %325 : vector<8x128xf32>
    %327 = arith.mulf %322, %326 : vector<8x128xf32>
    %328 = arith.index_cast %c7_i32 : i32 to index
    %c0_123 = arith.constant 0 : index
    %c0_124 = arith.constant 0 : index
    %329 = vector.load %arg16[%328, %c0_123, %c0_124] : memref<8x8x128xf32, #tpu.memory_space<vmem>>, vector<1x8x128xf32>
    %330 = vector.shape_cast %329 : vector<1x8x128xf32> to vector<8x128xf32>
    %331 = vector.shape_cast %327 : vector<8x128xf32> to vector<1x8x128xf32>
    tpu.vector_store %arg16[%328, %c0_123, %c0_124], %331 {strides = array<i32>} : memref<8x8x128xf32, #tpu.memory_space<vmem>>, vector<1x8x128xf32>,
    %c8_i32 = arith.constant 8 : i32
    %c0_125 = arith.constant 0 : index
    %c0_126 = arith.constant 0 : index
    %c0_127 = arith.constant 0 : index
    %332 = vector.load %arg16[%c0_125, %c0_126, %c0_127] : memref<8x8x128xf32, #tpu.memory_space<vmem>>, vector<8x8x128xf32>
    %c0_128 = arith.constant 0 : index
    %c0_129 = arith.constant 0 : index
    %c0_130 = arith.constant 0 : index
    %333 = vector.load %arg1[%c0_128, %c0_129, %c0_130] : memref<8x8x16xf32, #tpu.memory_space<vmem>>, vector<8x8x16xf32>
    %334 = vector.shape_cast %333 : vector<8x8x16xf32> to vector<64x16xf32>
    %c0_131 = arith.constant 0 : index
    %c0_132 = arith.constant 0 : index
    %335 = vector.load %arg6[%c0_131, %c0_132] : memref<16x128xf32, #tpu.memory_space<vmem>>, vector<16x128xf32>
    %cst_133 = arith.constant dense<0.000000e+00> : vector<64x128xf32>
    %336 = tpu.matmul %334, %335, %cst_133 {dimension_numbers = #tpu.dot_dimension_numbers<[1], [0], [0], [1], [0, 0, 1, 1], [], []>} : vector<64x16xf32>, vector<16x128xf32>, vector<64x128xf32> -> vector<64x128xf32>
    %c0_134 = arith.constant 0 : index
    %c0_135 = arith.constant 0 : index
    %337 = vector.load %arg7[%c0_134, %c0_135] : memref<1x128xf32, #tpu.memory_space<vmem>>, vector<1x128xf32>
    %338 = vector.broadcast %337 : vector<1x128xf32> to vector<64x128xf32>
    %339 = arith.addf %336, %338 : vector<64x128xf32>
    %c0_136 = arith.constant 0 : index
    %c0_137 = arith.constant 0 : index
    %340 = vector.load %arg8[%c0_136, %c0_137] : memref<16x128xf32, #tpu.memory_space<vmem>>, vector<16x128xf32>
    %cst_138 = arith.constant dense<0.000000e+00> : vector<64x128xf32>
    %341 = tpu.matmul %334, %340, %cst_138 {dimension_numbers = #tpu.dot_dimension_numbers<[1], [0], [0], [1], [0, 0, 1, 1], [], []>} : vector<64x16xf32>, vector<16x128xf32>, vector<64x128xf32> -> vector<64x128xf32>
    %c0_139 = arith.constant 0 : index
    %c0_140 = arith.constant 0 : index
    %342 = vector.load %arg9[%c0_139, %c0_140] : memref<1x128xf32, #tpu.memory_space<vmem>>, vector<1x128xf32>
    %343 = vector.broadcast %342 : vector<1x128xf32> to vector<64x128xf32>
    %344 = arith.addf %341, %343 : vector<64x128xf32>
    %345 = vector.shape_cast %332 : vector<8x8x128xf32> to vector<64x128xf32>
    %346 = arith.mulf %345, %339 : vector<64x128xf32>
    %347 = arith.addf %346, %344 : vector<64x128xf32>
    %c0_141 = arith.constant 0 : index
    %c0_142 = arith.constant 0 : index
    %348 = vector.load %arg10[%c0_141, %c0_142] : memref<1x128xf32, #tpu.memory_space<vmem>>, vector<1x128xf32>
    %349 = vector.broadcast %348 : vector<1x128xf32> to vector<64x128xf32>
    %350 = arith.mulf %347, %349 : vector<64x128xf32>
    %cst_143 = arith.constant dense<0.000000e+00> : vector<64xf32>
    %351 = vector.multi_reduction <add>, %350, %cst_143 [1] : vector<64x128xf32> to vector<64xf32>
    %352 = vector.shape_cast %351 : vector<64xf32> to vector<64x1xf32>
    %c0_144 = arith.constant 0 : index
    %c0_145 = arith.constant 0 : index
    %353 = vector.load %arg11[%c0_144, %c0_145] : memref<1x1xf32, #tpu.memory_space<vmem>>, vector<1x1xf32>
    %354 = vector.broadcast %353 : vector<1x1xf32> to vector<64x1xf32>
    %355 = arith.addf %352, %354 : vector<64x1xf32>
    %356 = math.tanh %355 : vector<64x1xf32>
    %357 = vector.shape_cast %356 : vector<64x1xf32> to vector<8x8x1xf32>
    %cst_146 = arith.constant dense<0xFF800000> : vector<8x1xf32>
    %358 = vector.multi_reduction <maximumf>, %357, %cst_146 [0] : vector<8x8x1xf32> to vector<8x1xf32>
    %359 = vector.shape_cast %358 : vector<8x1xf32> to vector<1x8x1xf32>
    %360 = vector.broadcast %359 : vector<1x8x1xf32> to vector<8x8x1xf32>
    %361 = arith.subf %357, %360 : vector<8x8x1xf32>
    %362 = math.exp %361 : vector<8x8x1xf32>
    %363 = tpu.iota {dimensions = array<i32: 0>} : vector<8x8x1xi32>
    %c0_147 = arith.constant 0 : index
    %c0_148 = arith.constant 0 : index
    %c0_149 = arith.constant 0 : index
    %364 = vector.load %arg2[%c0_147, %c0_148, %c0_149] : memref<1x8x1xi32, #tpu.memory_space<vmem>>, vector<1x8x1xi32>
    %365 = vector.broadcast %364 : vector<1x8x1xi32> to vector<8x8x1xi32>
    %366 = arith.cmpi slt, %363, %365 : vector<8x8x1xi32>
    %367 = arith.extui %366 : vector<8x8x1xi1> to vector<8x8x1xi32>
    %368 = arith.sitofp %367 : vector<8x8x1xi32> to vector<8x8x1xf32>
    %369 = arith.mulf %362, %368 : vector<8x8x1xf32>
    %cst_150 = arith.constant dense<0.000000e+00> : vector<8x1xf32>
    %370 = vector.multi_reduction <add>, %369, %cst_150 [0] : vector<8x8x1xf32> to vector<8x1xf32>
    %371 = vector.shape_cast %370 : vector<8x1xf32> to vector<1x8x1xf32>
    %372 = tpu.reciprocal %371 {approx = true} : vector<1x8x1xf32> -> vector<1x8x1xf32>
    %373 = vector.broadcast %372 : vector<1x8x1xf32> to vector<8x8x1xf32>
    %374 = arith.mulf %369, %373 : vector<8x8x1xf32>
    %375 = vector.broadcast %374 : vector<8x8x1xf32> to vector<8x8x128xf32>
    %376 = arith.mulf %332, %375 : vector<8x8x128xf32>
    %cst_151 = arith.constant dense<0.000000e+00> : vector<8x128xf32>
    %377 = vector.multi_reduction <add>, %376, %cst_151 [0] : vector<8x8x128xf32> to vector<8x128xf32>
    %c0_152 = arith.constant 0 : index
    %c0_153 = arith.constant 0 : index
    %378 = vector.load %arg12[%c0_152, %c0_153] : memref<128x128xf32, #tpu.memory_space<vmem>>, vector<128x128xf32>
    %cst_154 = arith.constant dense<0.000000e+00> : vector<8x128xf32>
    %379 = tpu.matmul %377, %378, %cst_154 {dimension_numbers = #tpu.dot_dimension_numbers<[1], [0], [0], [1], [0, 0, 1, 1], [], []>} : vector<8x128xf32>, vector<128x128xf32>, vector<8x128xf32> -> vector<8x128xf32>
    %c0_155 = arith.constant 0 : index
    %c0_156 = arith.constant 0 : index
    %380 = vector.load %arg13[%c0_155, %c0_156] : memref<1x128xf32, #tpu.memory_space<vmem>>, vector<1x128xf32>
    %381 = vector.broadcast %380 : vector<1x128xf32> to vector<8x128xf32>
    %382 = arith.addf %379, %381 : vector<8x128xf32>
    %383 = tpu.iota {dimensions = array<i32: 1>} : vector<8x128xi32>
    %cst_157 = arith.constant 0.000000e+00 : f32
    %384 = vector.broadcast %cst_157 : f32 to vector<8x128xf32>
    %c0_i32_158 = arith.constant 0 : i32
    %385 = vector.broadcast %c0_i32_158 : i32 to vector<8x128xi32>
    %386 = arith.cmpi eq, %383, %385 : vector<8x128xi32>
    %387 = vector.extract_strided_slice %374 {offsets = [0, 0, 0], sizes = [1, 8, 1], strides = [1, 1, 1]} : vector<8x8x1xf32> to vector<1x8x1xf32>
    %388 = vector.shape_cast %387 : vector<1x8x1xf32> to vector<8x1xf32>
    %cst_159 = arith.constant 0.000000e+00 : f32
    %389 = vector.shape_cast %388 : vector<8x1xf32> to vector<8x1xf32>
    %390 = vector.broadcast %389 : vector<8x1xf32> to vector<8x128xf32>
    %391 = vector.broadcast %cst_159 : f32 to vector<8x128xf32>
    %392 = arith.select %386, %390, %391 : vector<8x128xi1>, vector<8x128xf32>
    %393 = arith.addf %384, %392 : vector<8x128xf32>
    %c1_i32_160 = arith.constant 1 : i32
    %394 = vector.broadcast %c1_i32_160 : i32 to vector<8x128xi32>
    %395 = arith.cmpi eq, %383, %394 : vector<8x128xi32>
    %396 = vector.extract_strided_slice %374 {offsets = [1, 0, 0], sizes = [1, 8, 1], strides = [1, 1, 1]} : vector<8x8x1xf32> to vector<1x8x1xf32>
    %397 = vector.shape_cast %396 : vector<1x8x1xf32> to vector<8x1xf32>
    %cst_161 = arith.constant 0.000000e+00 : f32
    %398 = vector.shape_cast %397 : vector<8x1xf32> to vector<8x1xf32>
    %399 = vector.broadcast %398 : vector<8x1xf32> to vector<8x128xf32>
    %400 = vector.broadcast %cst_161 : f32 to vector<8x128xf32>
    %401 = arith.select %395, %399, %400 : vector<8x128xi1>, vector<8x128xf32>
    %402 = arith.addf %393, %401 : vector<8x128xf32>
    %c2_i32_162 = arith.constant 2 : i32
    %403 = vector.broadcast %c2_i32_162 : i32 to vector<8x128xi32>
    %404 = arith.cmpi eq, %383, %403 : vector<8x128xi32>
    %405 = vector.extract_strided_slice %374 {offsets = [2, 0, 0], sizes = [1, 8, 1], strides = [1, 1, 1]} : vector<8x8x1xf32> to vector<1x8x1xf32>
    %406 = vector.shape_cast %405 : vector<1x8x1xf32> to vector<8x1xf32>
    %cst_163 = arith.constant 0.000000e+00 : f32
    %407 = vector.shape_cast %406 : vector<8x1xf32> to vector<8x1xf32>
    %408 = vector.broadcast %407 : vector<8x1xf32> to vector<8x128xf32>
    %409 = vector.broadcast %cst_163 : f32 to vector<8x128xf32>
    %410 = arith.select %404, %408, %409 : vector<8x128xi1>, vector<8x128xf32>
    %411 = arith.addf %402, %410 : vector<8x128xf32>
    %c3_i32_164 = arith.constant 3 : i32
    %412 = vector.broadcast %c3_i32_164 : i32 to vector<8x128xi32>
    %413 = arith.cmpi eq, %383, %412 : vector<8x128xi32>
    %414 = vector.extract_strided_slice %374 {offsets = [3, 0, 0], sizes = [1, 8, 1], strides = [1, 1, 1]} : vector<8x8x1xf32> to vector<1x8x1xf32>
    %415 = vector.shape_cast %414 : vector<1x8x1xf32> to vector<8x1xf32>
    %cst_165 = arith.constant 0.000000e+00 : f32
    %416 = vector.shape_cast %415 : vector<8x1xf32> to vector<8x1xf32>
    %417 = vector.broadcast %416 : vector<8x1xf32> to vector<8x128xf32>
    %418 = vector.broadcast %cst_165 : f32 to vector<8x128xf32>
    %419 = arith.select %413, %417, %418 : vector<8x128xi1>, vector<8x128xf32>
    %420 = arith.addf %411, %419 : vector<8x128xf32>
    %c4_i32_166 = arith.constant 4 : i32
    %421 = vector.broadcast %c4_i32_166 : i32 to vector<8x128xi32>
    %422 = arith.cmpi eq, %383, %421 : vector<8x128xi32>
    %423 = vector.extract_strided_slice %374 {offsets = [4, 0, 0], sizes = [1, 8, 1], strides = [1, 1, 1]} : vector<8x8x1xf32> to vector<1x8x1xf32>
    %424 = vector.shape_cast %423 : vector<1x8x1xf32> to vector<8x1xf32>
    %cst_167 = arith.constant 0.000000e+00 : f32
    %425 = vector.shape_cast %424 : vector<8x1xf32> to vector<8x1xf32>
    %426 = vector.broadcast %425 : vector<8x1xf32> to vector<8x128xf32>
    %427 = vector.broadcast %cst_167 : f32 to vector<8x128xf32>
    %428 = arith.select %422, %426, %427 : vector<8x128xi1>, vector<8x128xf32>
    %429 = arith.addf %420, %428 : vector<8x128xf32>
    %c5_i32_168 = arith.constant 5 : i32
    %430 = vector.broadcast %c5_i32_168 : i32 to vector<8x128xi32>
    %431 = arith.cmpi eq, %383, %430 : vector<8x128xi32>
    %432 = vector.extract_strided_slice %374 {offsets = [5, 0, 0], sizes = [1, 8, 1], strides = [1, 1, 1]} : vector<8x8x1xf32> to vector<1x8x1xf32>
    %433 = vector.shape_cast %432 : vector<1x8x1xf32> to vector<8x1xf32>
    %cst_169 = arith.constant 0.000000e+00 : f32
    %434 = vector.shape_cast %433 : vector<8x1xf32> to vector<8x1xf32>
    %435 = vector.broadcast %434 : vector<8x1xf32> to vector<8x128xf32>
    %436 = vector.broadcast %cst_169 : f32 to vector<8x128xf32>
    %437 = arith.select %431, %435, %436 : vector<8x128xi1>, vector<8x128xf32>
    %438 = arith.addf %429, %437 : vector<8x128xf32>
    %c6_i32_170 = arith.constant 6 : i32
    %439 = vector.broadcast %c6_i32_170 : i32 to vector<8x128xi32>
    %440 = arith.cmpi eq, %383, %439 : vector<8x128xi32>
    %441 = vector.extract_strided_slice %374 {offsets = [6, 0, 0], sizes = [1, 8, 1], strides = [1, 1, 1]} : vector<8x8x1xf32> to vector<1x8x1xf32>
    %442 = vector.shape_cast %441 : vector<1x8x1xf32> to vector<8x1xf32>
    %cst_171 = arith.constant 0.000000e+00 : f32
    %443 = vector.shape_cast %442 : vector<8x1xf32> to vector<8x1xf32>
    %444 = vector.broadcast %443 : vector<8x1xf32> to vector<8x128xf32>
    %445 = vector.broadcast %cst_171 : f32 to vector<8x128xf32>
    %446 = arith.select %440, %444, %445 : vector<8x128xi1>, vector<8x128xf32>
    %447 = arith.addf %438, %446 : vector<8x128xf32>
    %c7_i32_172 = arith.constant 7 : i32
    %448 = vector.broadcast %c7_i32_172 : i32 to vector<8x128xi32>
    %449 = arith.cmpi eq, %383, %448 : vector<8x128xi32>
    %450 = vector.extract_strided_slice %374 {offsets = [7, 0, 0], sizes = [1, 8, 1], strides = [1, 1, 1]} : vector<8x8x1xf32> to vector<1x8x1xf32>
    %451 = vector.shape_cast %450 : vector<1x8x1xf32> to vector<8x1xf32>
    %cst_173 = arith.constant 0.000000e+00 : f32
    %452 = vector.shape_cast %451 : vector<8x1xf32> to vector<8x1xf32>
    %453 = vector.broadcast %452 : vector<8x1xf32> to vector<8x128xf32>
    %454 = vector.broadcast %cst_173 : f32 to vector<8x128xf32>
    %455 = arith.select %449, %453, %454 : vector<8x128xi1>, vector<8x128xf32>
    %456 = arith.addf %447, %455 : vector<8x128xf32>
    %c0_174 = arith.constant 0 : index
    %c0_175 = arith.constant 0 : index
    %457 = vector.load %arg14[%c0_174, %c0_175] : memref<8x384xf32, #tpu.memory_space<vmem>>, vector<8x128xf32>
    tpu.vector_store %arg14[%c0_174, %c0_175], %377 {strides = array<i32>} : memref<8x384xf32, #tpu.memory_space<vmem>>, vector<8x128xf32>,
    %c0_176 = arith.constant 0 : index
    %c128 = arith.constant 128 : index
    %458 = vector.load %arg14[%c0_176, %c128] : memref<8x384xf32, #tpu.memory_space<vmem>>, vector<8x128xf32>
    tpu.vector_store %arg14[%c0_176, %c128], %382 {strides = array<i32>} : memref<8x384xf32, #tpu.memory_space<vmem>>, vector<8x128xf32>,
    %c0_177 = arith.constant 0 : index
    %c256 = arith.constant 256 : index
    %459 = vector.load %arg14[%c0_177, %c256] : memref<8x384xf32, #tpu.memory_space<vmem>>, vector<8x128xf32>
    tpu.vector_store %arg14[%c0_177, %c256], %456 {strides = array<i32>} : memref<8x384xf32, #tpu.memory_space<vmem>>, vector<8x128xf32>,
    return
  }
}

</mosaic_0001>

<llo_original>
// kernel: tpu_custom_call.1
$region0: #{tpu_custom_call.1}
  #allocation0 [shape = 'u32[]', space=smem, size = 0x4, offset = 0x4, fixed_abs, tag = 'smem constant byte address 0x4 - core index']
  #allocation1 [shape = 'u32[144,128]{1,0:T(1,128)}', space=vmem, size = 0x12000, scoped, tag = 'internal scratch']
  #allocation2 [shape = 'f32[8,8,512]{2,1,0:T(8,128)}', space=vmem, size = 0x20000, scoped, tag = 'scratch operand']
  #allocation3 [shape = 'f32[8,8,128]{2,1,0:T(8,128)}', space=vmem, size = 0x8000, scoped, tag = 'scratch operand']
  #allocation4 [shape = 'f32[1,1]{1,0:T(1,128)S(1)}', space=vmem, size = 0x200, scoped, tag = 'scoped memory for tpu_custom_call.1']
  %s0 = inlined_call_operand.hbm [shape: f32[8,8,32], index: 0, kind: input, shape index: {}]
  %s1 = inlined_call_operand.hbm [shape: f32[8,8,16], index: 1, kind: input, shape index: {}]
  %s2 = inlined_call_operand.vmem [shape: s32[1,8,1], index: 2, kind: input, shape index: {}]
  %s3 = inlined_call_operand.hbm [shape: f32[32,512], index: 3, kind: input, shape index: {}]
  %s4 = inlined_call_operand.hbm [shape: f32[128,512], index: 4, kind: input, shape index: {}]
  %s5 = inlined_call_operand.hbm [shape: f32[1,512], index: 5, kind: input, shape index: {}]
  %s6 = inlined_call_operand.vmem [shape: f32[16,128], index: 6, kind: input, shape index: {}]
  %s7 = inlined_call_operand.vmem [shape: f32[1,128], index: 7, kind: input, shape index: {}]
  %s8 = inlined_call_operand.vmem [shape: f32[16,128], index: 8, kind: input, shape index: {}]
  %s9 = inlined_call_operand.vmem [shape: f32[1,128], index: 9, kind: input, shape index: {}]
  %s10 = inlined_call_operand.vmem [shape: f32[1,128], index: 10, kind: input, shape index: {}]
  %s11 = inlined_call_operand.<no memory space> [shape: f32[1,1], index: 11, kind: input, shape index: {}]
  %s12 = inlined_call_operand.hbm [shape: f32[128,128], index: 12, kind: input, shape index: {}]
  %s13 = inlined_call_operand.vmem [shape: f32[1,128], index: 13, kind: input, shape index: {}]
  %s14 = inlined_call_operand.hbm [shape: f32[8,384], index: 14, kind: output, shape index: {}]
  %s15 = sld [smem:[#allocation0]]
  $region90: #{tpu_custom_call.1} parent=0
    _
  %s17 = ssub.s32 1, %s15
  %s18 = scalar_select 0, %s17, %s15
  %v19 = vstv %s11
  %20 = vst [vmem:[#allocation4] sm:$0x1] %v19
  $region1: #{tpu_custom_call.1} parent=0
    #allocation5 [shape = 'u8[32768]{0}', space=vmem, size = 0x8000, scoped, tag = 'input window, operand 0, single buffered']
    #allocation6 [shape = 's32[1]{0}', space=sflag, size = 0x4, scoped, tag = 'scoped memory for tpu_custom_call.1']
    #allocation7 [shape = 's32[1]{0}', space=sflag, size = 0x4, scoped, tag = 'scoped memory for tpu_custom_call.1']
    #allocation8 [shape = 'u8[32768]{0}', space=vmem, size = 0x8000, scoped, tag = 'input window, operand 1, single buffered']
    #allocation9 [shape = 's32[1]{0}', space=sflag, size = 0x4, scoped, tag = 'scoped memory for tpu_custom_call.1']
    #allocation10 [shape = 'u8[65536]{0}', space=vmem, size = 0x10000, scoped, tag = 'input window, operand 3, single buffered']
    #allocation11 [shape = 'u8[262144]{0}', space=vmem, size = 0x40000, scoped, tag = 'input window, operand 4, single buffered']
    #allocation12 [shape = 's32[1]{0}', space=sflag, size = 0x4, scoped, tag = 'scoped memory for tpu_custom_call.1']
    #allocation13 [shape = 'u8[2048]{0}', space=vmem, size = 0x800, scoped, tag = 'input window, operand 5, single buffered']
    #allocation14 [shape = 'u8[65536]{0}', space=vmem, size = 0x10000, scoped, tag = 'input window, operand 12, single buffered']
    #allocation15 [shape = 's32[1]{0}', space=sflag, size = 0x4, scoped, tag = 'scoped memory for tpu_custom_call.1']
    #allocation16 [shape = 'u8[12288]{0}', space=vmem, size = 0x3000, scoped, tag = 'output window, operand 0, single buffered']
    %21 = vsyncpa [#allocation6], 0
    %22 = vsyncpa [#allocation9], 0
    %23 = vsyncpa [#allocation12], 0
    %24 = vsyncpa [#allocation15], 0
    %25 = vsyncpa [#allocation7], 0
    // Predicated region
    $region2: #{tpu_custom_call.1} parent=1 // pred_check
      _
    $region3: #{tpu_custom_call.1} parent=1 // pred_check_branch
      %27 = sbr.rel (0) target = $region5
    $region4: #{tpu_custom_call.1} parent=1 // pred_region
      %s29 = ssub.s32 1024, 1024
      %30 = vsyncadd [#allocation6], %s29
      %s31 = sshll.u32 [#allocation5], 4
      %s32 = int_to_ptr.vmem [resolvable:$true] %s31
      %37 = dma.hbm_to_vmem [thread:$0]  %s0, 1024, %s32, [#allocation6], 128, 128, 8
    $region5: #{tpu_custom_call.1} parent=1 // pred_fallthru
      _
    // Predicated region
    $region6: #{tpu_custom_call.1} parent=1 // pred_check
      _
    $region7: #{tpu_custom_call.1} parent=1 // pred_check_branch
      %39 = sbr.rel (0) target = $region9
    $region8: #{tpu_custom_call.1} parent=1 // pred_region
      %s41 = ssub.s32 1024, 1024
      %42 = vsyncadd [#allocation9], %s41
      %s43 = sshll.u32 [#allocation8], 4
      %s44 = int_to_ptr.vmem [resolvable:$true] %s43
      %49 = dma.hbm_to_vmem [thread:$0]  %s1, 1024, %s44, [#allocation9], 128, 128, 8
    $region9: #{tpu_custom_call.1} parent=1 // pred_fallthru
      _
    // Predicated region
    $region10: #{tpu_custom_call.1} parent=1 // pred_check
      _
    $region11: #{tpu_custom_call.1} parent=1 // pred_check_branch
      %51 = sbr.rel (0) target = $region13
    $region12: #{tpu_custom_call.1} parent=1 // pred_region
      _
    $region13: #{tpu_custom_call.1} parent=1 // pred_fallthru
      _
    // Predicated region
    $region14: #{tpu_custom_call.1} parent=1 // pred_check
      _
    $region15: #{tpu_custom_call.1} parent=1 // pred_check_branch
      %53 = sbr.rel (0) target = $region17
    $region16: #{tpu_custom_call.1} parent=1 // pred_region
      %s55 = ssub.s32 2048, 2048
      %56 = vsyncadd [#allocation9], %s55
      %s57 = sshll.u32 [#allocation10], 4
      %s58 = int_to_ptr.vmem [resolvable:$true] %s57
      %63 = dma.hbm_to_vmem [thread:$0]  %s3, 2048, %s58, [#allocation9], 512, 512, 32
    $region17: #{tpu_custom_call.1} parent=1 // pred_fallthru
      _
    // Predicated region
    $region18: #{tpu_custom_call.1} parent=1 // pred_check
      _
    $region19: #{tpu_custom_call.1} parent=1 // pred_check_branch
      %65 = sbr.rel (0) target = $region21
    $region20: #{tpu_custom_call.1} parent=1 // pred_region
      %s67 = ssub.s32 8192, 8192
      %68 = vsyncadd [#allocation12], %s67
      %s69 = sshll.u32 [#allocation11], 4
      %s70 = int_to_ptr.vmem [resolvable:$true] %s69
      %75 = dma.hbm_to_vmem [thread:$0]  %s4, 8192, %s70, [#allocation12], 512, 512, 32
    $region21: #{tpu_custom_call.1} parent=1 // pred_fallthru
      _
    // Predicated region
    $region22: #{tpu_custom_call.1} parent=1 // pred_check
      _
    $region23: #{tpu_custom_call.1} parent=1 // pred_check_branch
      %77 = sbr.rel (0) target = $region25
    $region24: #{tpu_custom_call.1} parent=1 // pred_region
      %s79 = ssub.s32 64, 64
      %80 = vsyncadd [#allocation12], %s79
      %s82 = sshll.u32 [#allocation13], 4
      %s83 = int_to_ptr.vmem [resolvable:$true] %s82
      %85 = dma.hbm_to_vmem [thread:$0]  %s5, 64, %s83, [#allocation12]
    $region25: #{tpu_custom_call.1} parent=1 // pred_fallthru
      _
    // Predicated region
    $region26: #{tpu_custom_call.1} parent=1 // pred_check
      _
    $region27: #{tpu_custom_call.1} parent=1 // pred_check_branch
      %87 = sbr.rel (0) target = $region29
    $region28: #{tpu_custom_call.1} parent=1 // pred_region
      _
    $region29: #{tpu_custom_call.1} parent=1 // pred_fallthru
      _
    // Predicated region
    $region30: #{tpu_custom_call.1} parent=1 // pred_check
      _
    $region31: #{tpu_custom_call.1} parent=1 // pred_check_branch
      %89 = sbr.rel (0) target = $region33
    $region32: #{tpu_custom_call.1} parent=1 // pred_region
      _
    $region33: #{tpu_custom_call.1} parent=1 // pred_fallthru
      _
    // Predicated region
    $region34: #{tpu_custom_call.1} parent=1 // pred_check
      _
    $region35: #{tpu_custom_call.1} parent=1 // pred_check_branch
      %91 = sbr.rel (0) target = $region37
    $region36: #{tpu_custom_call.1} parent=1 // pred_region
      _
    $region37: #{tpu_custom_call.1} parent=1 // pred_fallthru
      _
    // Predicated region
    $region38: #{tpu_custom_call.1} parent=1 // pred_check
      _
    $region39: #{tpu_custom_call.1} parent=1 // pred_check_branch
      %93 = sbr.rel (0) target = $region41
    $region40: #{tpu_custom_call.1} parent=1 // pred_region
      _
    $region41: #{tpu_custom_call.1} parent=1 // pred_fallthru
      _
    // Predicated region
    $region42: #{tpu_custom_call.1} parent=1 // pred_check
      _
    $region43: #{tpu_custom_call.1} parent=1 // pred_check_branch
      %95 = sbr.rel (0) target = $region45
    $region44: #{tpu_custom_call.1} parent=1 // pred_region
      _
    $region45: #{tpu_custom_call.1} parent=1 // pred_fallthru
      _
    // Predicated region
    $region46: #{tpu_custom_call.1} parent=1 // pred_check
      _
    $region47: #{tpu_custom_call.1} parent=1 // pred_check_branch
      %97 = sbr.rel (0) target = $region49
    $region48: #{tpu_custom_call.1} parent=1 // pred_region
      _
    $region49: #{tpu_custom_call.1} parent=1 // pred_fallthru
      _
    // Predicated region
    $region50: #{tpu_custom_call.1} parent=1 // pred_check
      _
    $region51: #{tpu_custom_call.1} parent=1 // pred_check_branch
      %99 = sbr.rel (0) target = $region53
    $region52: #{tpu_custom_call.1} parent=1 // pred_region
      %s101 = ssub.s32 2048, 2048
      %102 = vsyncadd [#allocation15], %s101
      %s103 = sshll.u32 [#allocation14], 4
      %s104 = int_to_ptr.vmem [resolvable:$true] %s103
      %109 = dma.hbm_to_vmem [thread:$0]  %s12, 2048, %s104, [#allocation15], 128, 128, 8
    $region53: #{tpu_custom_call.1} parent=1 // pred_fallthru
      _
    // Predicated region
    $region54: #{tpu_custom_call.1} parent=1 // pred_check
      _
    $region55: #{tpu_custom_call.1} parent=1 // pred_check_branch
      %111 = sbr.rel (0) target = $region57
    $region56: #{tpu_custom_call.1} parent=1 // pred_region
      _
    $region57: #{tpu_custom_call.1} parent=1 // pred_fallthru
      _
    // Predicated region
    $region58: #{tpu_custom_call.1} parent=1 // pred_check
      _
    $region59: #{tpu_custom_call.1} parent=1 // pred_check_branch
      %113 = sbr.rel (0) target = $region61
    $region60: #{tpu_custom_call.1} parent=1 // pred_region
      %114 = dma.done [#allocation6], 1024
    $region61: #{tpu_custom_call.1} parent=1 // pred_fallthru
      _
    // Predicated region
    $region62: #{tpu_custom_call.1} parent=1 // pred_check
      _
    $region63: #{tpu_custom_call.1} parent=1 // pred_check_branch
      %116 = sbr.rel (0) target = $region65
    $region64: #{tpu_custom_call.1} parent=1 // pred_region
      %117 = dma.done [#allocation9], 1024
    $region65: #{tpu_custom_call.1} parent=1 // pred_fallthru
      _
    // Predicated region
    $region66: #{tpu_custom_call.1} parent=1 // pred_check
      _
    $region67: #{tpu_custom_call.1} parent=1 // pred_check_branch
      %119 = sbr.rel (0) target = $region69
    $region68: #{tpu_custom_call.1} parent=1 // pred_region
      %120 = dma.done [#allocation9], 2048
    $region69: #{tpu_custom_call.1} parent=1 // pred_fallthru
      _
    // Predicated region
    $region70: #{tpu_custom_call.1} parent=1 // pred_check
      _
    $region71: #{tpu_custom_call.1} parent=1 // pred_check_branch
      %122 = sbr.rel (0) target = $region73
    $region72: #{tpu_custom_call.1} parent=1 // pred_region
      %123 = dma.done [#allocation12], 8192
    $region73: #{tpu_custom_call.1} parent=1 // pred_fallthru
      _
    // Predicated region
    $region74: #{tpu_custom_call.1} parent=1 // pred_check
      _
    $region75: #{tpu_custom_call.1} parent=1 // pred_check_branch
      %125 = sbr.rel (0) target = $region77
    $region76: #{tpu_custom_call.1} parent=1 // pred_region
      %126 = dma.done [#allocation12], 64
    $region77: #{tpu_custom_call.1} parent=1 // pred_fallthru
      _
    // Predicated region
    $region78: #{tpu_custom_call.1} parent=1 // pred_check
      _
    $region79: #{tpu_custom_call.1} parent=1 // pred_check_branch
      %128 = sbr.rel (0) target = $region81
    $region80: #{tpu_custom_call.1} parent=1 // pred_region
      %129 = dma.done [#allocation15], 2048
    $region81: #{tpu_custom_call.1} parent=1 // pred_fallthru
      _
    %v130 = vld [vmem:[#allocation5] sm:$0xff]
    %v131 = vld [vmem:[#allocation5 + $0x8] sm:$0xff]
    %v132 = vld [vmem:[#allocation5 + $0x10] sm:$0xff]
    %v133 = vld [vmem:[#allocation5 + $0x18] sm:$0xff]
    %v134 = vld [vmem:[#allocation5 + $0x20] sm:$0xff]
    %v135 = vld [vmem:[#allocation5 + $0x28] sm:$0xff]
    %v136 = vld [vmem:[#allocation5 + $0x30] sm:$0xff]
    %v137 = vld [vmem:[#allocation5 + $0x38] sm:$0xff]
    %v138 = vld [vmem:[#allocation10] sm:$0xff]
    %v139 = vld [vmem:[#allocation10 + $0x8] sm:$0xff]
    %v140 = vld [vmem:[#allocation10 + $0x10] sm:$0xff]
    %v141 = vld [vmem:[#allocation10 + $0x18] sm:$0xff]
    %v142 = vld [vmem:[#allocation10 + $0x20] sm:$0xff]
    %v143 = vld [vmem:[#allocation10 + $0x28] sm:$0xff]
    %v144 = vld [vmem:[#allocation10 + $0x30] sm:$0xff]
    %v145 = vld [vmem:[#allocation10 + $0x38] sm:$0xff]
    %v146 = vld [vmem:[#allocation10 + $0x40] sm:$0xff]
    %v147 = vld [vmem:[#allocation10 + $0x48] sm:$0xff]
    %v148 = vld [vmem:[#allocation10 + $0x50] sm:$0xff]
    %v149 = vld [vmem:[#allocation10 + $0x58] sm:$0xff]
    %v150 = vld [vmem:[#allocation10 + $0x60] sm:$0xff]
    %v151 = vld [vmem:[#allocation10 + $0x68] sm:$0xff]
    %v152 = vld [vmem:[#allocation10 + $0x70] sm:$0xff]
    %v153 = vld [vmem:[#allocation10 + $0x78] sm:$0xff]
    %v154 = vld [vmem:[#allocation13] sm:$0xf]
    %v156 = vlaneseq
    %v157 = vshrl.u32 %v156, 7
    %v158 = vsub.s32 0, %v157
    %v159 = vrot.slane %v154, %v158
    %v160 = vlaneseq
    %v161 = vshrl.u32 %v160, 7
    %v162 = vsub.s32 1, %v161
    %v163 = vrot.slane %v154, %v162
    %v164 = vlaneseq
    %v165 = vshrl.u32 %v164, 7
    %v166 = vsub.s32 2, %v165
    %v167 = vrot.slane %v154, %v166
    %v168 = vlaneseq
    %v169 = vshrl.u32 %v168, 7
    %v170 = vsub.s32 3, %v169
    %v171 = vrot.slane %v154, %v170
    %vm176 = vcmask 261120
    %v178 = vsel %vm176, %v130, 0
    %v181 = vsel %vm176, %v131, 0
    %v184 = vsel %vm176, %v132, 0
    %v187 = vsel %vm176, %v133, 0
    %v190 = vsel %vm176, %v134, 0
    %v193 = vsel %vm176, %v135, 0
    %v196 = vsel %vm176, %v136, 0
    %v199 = vsel %vm176, %v137, 0
    %201 = vmatprep.subr.mxu0 %v139
    %202 = vmatpush1.msra.mxu0 %v138
    %203 = vmatprep.subr.mxu0 %v143
    %204 = vmatpush1.msra.mxu0 %v142
    %205 = vmatprep.subr.mxu0 %v147
    %206 = vmatpush1.msra.mxu0 %v146
    %207 = vmatprep.subr.mxu0 %v151
    %208 = vmatpush1.msra.mxu0 %v150
    %209 = vmatprep.subr.mxu0 0.0
    %210 = vmatpush1.msra.mxu0 0.0
    %211 = vmatprep.subr.mxu0 0.0
    %212 = vmatpush1.msra.mxu0 0.0
    %213 = vmatprep.subr.mxu0 0.0
    %214 = vmatpush1.msra.mxu0 0.0
    %215 = vmatprep.subr.mxu0 0.0
    %216 = vmatpush1.msra.mxu0 0.0
    %217 = vmatprep.subr.mxu0 0.0
    %218 = vmatpush1.msra.mxu0 0.0
    %219 = vmatprep.subr.mxu0 0.0
    %220 = vmatpush1.msra.mxu0 0.0
    %221 = vmatprep.subr.mxu0 0.0
    %222 = vmatpush1.msra.mxu0 0.0
    %223 = vmatprep.subr.mxu0 0.0
    %224 = vmatpush1.msra.mxu0 0.0
    %225 = vmatprep.subr.mxu0 0.0
    %226 = vmatpush1.msra.mxu0 0.0
    %227 = vmatprep.subr.mxu0 0.0
    %228 = vmatpush1.msra.mxu0 0.0
    %229 = vmatprep.subr.mxu0 0.0
    %230 = vmatpush1.msra.mxu0 0.0
    %231 = vmatprep.subr.mxu0 0.0
    %232 = vmatpush1.msra.mxu0 0.0
    %233 = vmatprep.subr.mxu0 0.0
    %234 = vmatpush1.msra.mxu0 0.0
    %235 = vmatprep.subr.mxu0 0.0
    %236 = vmatpush1.msra.mxu0 0.0
    %237 = vmatprep.subr.mxu0 0.0
    %238 = vmatpush1.msra.mxu0 0.0
    %239 = vmatprep.subr.mxu0 0.0
    %240 = vmatpush1.msra.mxu0 0.0
    %241 = vmatprep.subr.mxu0 0.0
    %242 = vmatpush1.msra.mxu0 0.0
    %243 = vmatprep.subr.mxu0 0.0
    %244 = vmatpush1.msra.mxu0 0.0
    %245 = vmatprep.subr.mxu0 0.0
    %246 = vmatpush1.msra.mxu0 0.0
    %247 = vmatprep.subr.mxu0 0.0
    %248 = vmatpush1.msra.mxu0 0.0
    %249 = vmatprep.subr.mxu0 0.0
    %250 = vmatpush1.msra.mxu0 0.0
    %251 = vmatprep.subr.mxu0 0.0
    %252 = vmatpush1.msra.mxu0 0.0
    %253 = vmatprep.subr.mxu0 0.0
    %254 = vmatpush1.msra.mxu0 0.0
    %255 = vmatprep.subr.mxu0 0.0
    %256 = vmatpush1.msra.mxu0 0.0
    %257 = vmatprep.subr.mxu0 0.0
    %258 = vmatpush1.msra.mxu0 0.0
    %259 = vmatprep.subr.mxu0 0.0
    %260 = vmatpush1.msra.mxu0 0.0
    %261 = vmatprep.subr.mxu0 0.0
    %262 = vmatpush1.msra.mxu0 0.0
    %263 = vmatprep.subr.mxu0 0.0
    %264 = vmatpush1.msra.mxu0 0.0
    %265 = vmatprep.mubr.f32.mxu0 0.0
    %266 = vmatmul.mubr.f32.gmra.mrb[0].mxu0 %v178
    %v267 = vpop.f32.mrb[0].mxu0
    %v268 = vadd.f32 %v159, %v267
    %v269 = vpop.f32.mrb[0].mxu0
    %v270 = vadd.f32 %v163, %v269
    %271 = vmatprep.mubr.f32.mxu0 0.0
    %272 = vmatmul.mubr.f32.gmra.mrb[0].mxu0 %v181
    %v273 = vpop.f32.mrb[0].mxu0
    %v274 = vadd.f32 %v159, %v273
    %v275 = vpop.f32.mrb[0].mxu0
    %v276 = vadd.f32 %v163, %v275
    %277 = vmatprep.mubr.f32.mxu0 0.0
    %278 = vmatmul.mubr.f32.gmra.mrb[0].mxu0 %v184
    %v279 = vpop.f32.mrb[0].mxu0
    %v280 = vadd.f32 %v159, %v279
    %v281 = vpop.f32.mrb[0].mxu0
    %v282 = vadd.f32 %v163, %v281
    %283 = vmatprep.mubr.f32.mxu0 0.0
    %284 = vmatmul.mubr.f32.gmra.mrb[0].mxu0 %v187
    %v285 = vpop.f32.mrb[0].mxu0
    %v286 = vadd.f32 %v159, %v285
    %v287 = vpop.f32.mrb[0].mxu0
    %v288 = vadd.f32 %v163, %v287
    %289 = vmatprep.mubr.f32.mxu0 0.0
    %290 = vmatmul.mubr.f32.gmra.mrb[0].mxu0 %v190
    %v291 = vpop.f32.mrb[0].mxu0
    %v292 = vadd.f32 %v159, %v291
    %v293 = vpop.f32.mrb[0].mxu0
    %v294 = vadd.f32 %v163, %v293
    %295 = vmatprep.mubr.f32.mxu0 0.0
    %296 = vmatmul.mubr.f32.gmra.mrb[0].mxu0 %v193
    %v297 = vpop.f32.mrb[0].mxu0
    %v298 = vadd.f32 %v159, %v297
    %v299 = vpop.f32.mrb[0].mxu0
    %v300 = vadd.f32 %v163, %v299
    %301 = vmatprep.mubr.f32.mxu0 0.0
    %302 = vmatmul.mubr.f32.gmra.mrb[0].mxu0 %v196
    %v303 = vpop.f32.mrb[0].mxu0
    %v304 = vadd.f32 %v159, %v303
    %v305 = vpop.f32.mrb[0].mxu0
    %v306 = vadd.f32 %v163, %v305
    %307 = vmatprep.mubr.f32.mxu0 0.0
    %308 = vmatmul.mubr.f32.gmra.mrb[0].mxu0 %v199
    %v309 = vpop.f32.mrb[0].mxu0
    %v310 = vadd.f32 %v159, %v309
    %v311 = vpop.f32.mrb[0].mxu0
    %v312 = vadd.f32 %v163, %v311
    %313 = vdwg.mxu0
    %314 = vmatprep.subr.mxu0 %v141
    %315 = vmatpush1.msra.mxu0 %v140
    %316 = vmatprep.subr.mxu0 %v145
    %317 = vmatpush1.msra.mxu0 %v144
    %318 = vmatprep.subr.mxu0 %v149
    %319 = vmatpush1.msra.mxu0 %v148
    %320 = vmatprep.subr.mxu0 %v153
    %321 = vmatpush1.msra.mxu0 %v152
    %322 = vmatprep.subr.mxu0 0.0
    %323 = vmatpush1.msra.mxu0 0.0
    %324 = vmatprep.subr.mxu0 0.0
    %325 = vmatpush1.msra.mxu0 0.0
    %326 = vmatprep.subr.mxu0 0.0
    %327 = vmatpush1.msra.mxu0 0.0
    %328 = vmatprep.subr.mxu0 0.0
    %329 = vmatpush1.msra.mxu0 0.0
    %330 = vmatprep.subr.mxu0 0.0
    %331 = vmatpush1.msra.mxu0 0.0
    %332 = vmatprep.subr.mxu0 0.0
    %333 = vmatpush1.msra.mxu0 0.0
    %334 = vmatprep.subr.mxu0 0.0
    %335 = vmatpush1.msra.mxu0 0.0
    %336 = vmatprep.subr.mxu0 0.0
    %337 = vmatpush1.msra.mxu0 0.0
    %338 = vmatprep.subr.mxu0 0.0
    %339 = vmatpush1.msra.mxu0 0.0
    %340 = vmatprep.subr.mxu0 0.0
    %341 = vmatpush1.msra.mxu0 0.0
    %342 = vmatprep.subr.mxu0 0.0
    %343 = vmatpush1.msra.mxu0 0.0
    %344 = vmatprep.subr.mxu0 0.0
    %345 = vmatpush1.msra.mxu0 0.0
    %346 = vmatprep.subr.mxu0 0.0
    %347 = vmatpush1.msra.mxu0 0.0
    %348 = vmatprep.subr.mxu0 0.0
    %349 = vmatpush1.msra.mxu0 0.0
    %350 = vmatprep.subr.mxu0 0.0
    %351 = vmatpush1.msra.mxu0 0.0
    %352 = vmatprep.subr.mxu0 0.0
    %353 = vmatpush1.msra.mxu0 0.0
    %354 = vmatprep.subr.mxu0 0.0
    %355 = vmatpush1.msra.mxu0 0.0
    %356 = vmatprep.subr.mxu0 0.0
    %357 = vmatpush1.msra.mxu0 0.0
    %358 = vmatprep.subr.mxu0 0.0
    %359 = vmatpush1.msra.mxu0 0.0
    %360 = vmatprep.subr.mxu0 0.0
    %361 = vmatpush1.msra.mxu0 0.0
    %362 = vmatprep.subr.mxu0 0.0
    %363 = vmatpush1.msra.mxu0 0.0
    %364 = vmatprep.subr.mxu0 0.0
    %365 = vmatpush1.msra.mxu0 0.0
    %366 = vmatprep.subr.mxu0 0.0
    %367 = vmatpush1.msra.mxu0 0.0
    %368 = vmatprep.subr.mxu0 0.0
    %369 = vmatpush1.msra.mxu0 0.0
    %370 = vmatprep.subr.mxu0 0.0
    %371 = vmatpush1.msra.mxu0 0.0
    %372 = vmatprep.subr.mxu0 0.0
    %373 = vmatpush1.msra.mxu0 0.0
    %374 = vmatprep.subr.mxu0 0.0
    %375 = vmatpush1.msra.mxu0 0.0
    %376 = vmatprep.subr.mxu0 0.0
    %377 = vmatpush1.msra.mxu0 0.0
    %378 = vmatprep.mubr.f32.mxu0 0.0
    %379 = vmatmul.mubr.f32.gmra.mrb[0].mxu0 %v178
    %v380 = vpop.f32.mrb[0].mxu0
    %v381 = vadd.f32 %v167, %v380
    %v382 = vpop.f32.mrb[0].mxu0
    %v383 = vadd.f32 %v171, %v382
    %384 = vmatprep.mubr.f32.mxu0 0.0
    %385 = vmatmul.mubr.f32.gmra.mrb[0].mxu0 %v181
    %v386 = vpop.f32.mrb[0].mxu0
    %v387 = vadd.f32 %v167, %v386
    %v388 = vpop.f32.mrb[0].mxu0
    %v389 = vadd.f32 %v171, %v388
    %390 = vmatprep.mubr.f32.mxu0 0.0
    %391 = vmatmul.mubr.f32.gmra.mrb[0].mxu0 %v184
    %v392 = vpop.f32.mrb[0].mxu0
    %v393 = vadd.f32 %v167, %v392
    %v394 = vpop.f32.mrb[0].mxu0
    %v395 = vadd.f32 %v171, %v394
    %396 = vmatprep.mubr.f32.mxu0 0.0
    %397 = vmatmul.mubr.f32.gmra.mrb[0].mxu0 %v187
    %v398 = vpop.f32.mrb[0].mxu0
    %v399 = vadd.f32 %v167, %v398
    %v400 = vpop.f32.mrb[0].mxu0
    %v401 = vadd.f32 %v171, %v400
    %402 = vmatprep.mubr.f32.mxu0 0.0
    %403 = vmatmul.mubr.f32.gmra.mrb[0].mxu0 %v190
    %v404 = vpop.f32.mrb[0].mxu0
    %v405 = vadd.f32 %v167, %v404
    %v406 = vpop.f32.mrb[0].mxu0
    %v407 = vadd.f32 %v171, %v406
    %408 = vmatprep.mubr.f32.mxu0 0.0
    %409 = vmatmul.mubr.f32.gmra.mrb[0].mxu0 %v193
    %v410 = vpop.f32.mrb[0].mxu0
    %v411 = vadd.f32 %v167, %v410
    %v412 = vpop.f32.mrb[0].mxu0
    %v413 = vadd.f32 %v171, %v412
    %414 = vmatprep.mubr.f32.mxu0 0.0
    %415 = vmatmul.mubr.f32.gmra.mrb[0].mxu0 %v196
    %v416 = vpop.f32.mrb[0].mxu0
    %v417 = vadd.f32 %v167, %v416
    %v418 = vpop.f32.mrb[0].mxu0
    %v419 = vadd.f32 %v171, %v418
    %420 = vmatprep.mubr.f32.mxu0 0.0
    %421 = vmatmul.mubr.f32.gmra.mrb[0].mxu0 %v199
    %v422 = vpop.f32.mrb[0].mxu0
    %v423 = vadd.f32 %v167, %v422
    %v424 = vpop.f32.mrb[0].mxu0
    %v425 = vadd.f32 %v171, %v424
    %426 = vdwg.mxu0
    %427 = vst [vmem:[#allocation2] sm:$0xff] %v268
    %428 = vst [vmem:[#allocation2 + $0x8] sm:$0xff] %v270
    %429 = vst [vmem:[#allocation2 + $0x10] sm:$0xff] %v381
    %430 = vst [vmem:[#allocation2 + $0x18] sm:$0xff] %v383
    %431 = vst [vmem:[#allocation2 + $0x20] sm:$0xff] %v274
    %432 = vst [vmem:[#allocation2 + $0x28] sm:$0xff] %v276
    %433 = vst [vmem:[#allocation2 + $0x30] sm:$0xff] %v387
    %434 = vst [vmem:[#allocation2 + $0x38] sm:$0xff] %v389
    %435 = vst [vmem:[#allocation2 + $0x40] sm:$0xff] %v280
    %436 = vst [vmem:[#allocation2 + $0x48] sm:$0xff] %v282
    %437 = vst [vmem:[#allocation2 + $0x50] sm:$0xff] %v393
    %438 = vst [vmem:[#allocation2 + $0x58] sm:$0xff] %v395
    %439 = vst [vmem:[#allocation2 + $0x60] sm:$0xff] %v286
    %440 = vst [vmem:[#allocation2 + $0x68] sm:$0xff] %v288
    %441 = vst [vmem:[#allocation2 + $0x70] sm:$0xff] %v399
    %442 = vst [vmem:[#allocation2 + $0x78] sm:$0xff] %v401
    %443 = vst [vmem:[#allocation2 + $0x80] sm:$0xff] %v292
    %444 = vst [vmem:[#allocation2 + $0x88] sm:$0xff] %v294
    %445 = vst [vmem:[#allocation2 + $0x90] sm:$0xff] %v405
    %446 = vst [vmem:[#allocation2 + $0x98] sm:$0xff] %v407
    %447 = vst [vmem:[#allocation2 + $0xa0] sm:$0xff] %v298
    %448 = vst [vmem:[#allocation2 + $0xa8] sm:$0xff] %v300
    %449 = vst [vmem:[#allocation2 + $0xb0] sm:$0xff] %v411
    %450 = vst [vmem:[#allocation2 + $0xb8] sm:$0xff] %v413
    %451 = vst [vmem:[#allocation2 + $0xc0] sm:$0xff] %v304
    %452 = vst [vmem:[#allocation2 + $0xc8] sm:$0xff] %v306
    %453 = vst [vmem:[#allocation2 + $0xd0] sm:$0xff] %v417
    %454 = vst [vmem:[#allocation2 + $0xd8] sm:$0xff] %v419
    %455 = vst [vmem:[#allocation2 + $0xe0] sm:$0xff] %v310
    %456 = vst [vmem:[#allocation2 + $0xe8] sm:$0xff] %v312
    %457 = vst [vmem:[#allocation2 + $0xf0] sm:$0xff] %v423
    %458 = vst [vmem:[#allocation2 + $0xf8] sm:$0xff] %v425
    %v459 = vld [vmem:[#allocation11] sm:$0xff]
    %v460 = vld [vmem:[#allocation11 + $0x8] sm:$0xff]
    %v461 = vld [vmem:[#allocation11 + $0x10] sm:$0xff]
    %v462 = vld [vmem:[#allocation11 + $0x18] sm:$0xff]
    %v463 = vld [vmem:[#allocation11 + $0x20] sm:$0xff]
    %v464 = vld [vmem:[#allocation11 + $0x28] sm:$0xff]
    %v465 = vld [vmem:[#allocation11 + $0x30] sm:$0xff]
    %v466 = vld [vmem:[#allocation11 + $0x38] sm:$0xff]
    %v467 = vld [vmem:[#allocation11 + $0x40] sm:$0xff]
    %v468 = vld [vmem:[#allocation11 + $0x48] sm:$0xff]
    %v469 = vld [vmem:[#allocation11 + $0x50] sm:$0xff]
    %v470 = vld [vmem:[#allocation11 + $0x58] sm:$0xff]
    %v471 = vld [vmem:[#allocation11 + $0x60] sm:$0xff]
    %v472 = vld [vmem:[#allocation11 + $0x68] sm:$0xff]
    %v473 = vld [vmem:[#allocation11 + $0x70] sm:$0xff]
    %v474 = vld [vmem:[#allocation11 + $0x78] sm:$0xff]
    %v475 = vld [vmem:[#allocation11 + $0x80] sm:$0xff]
    %v476 = vld [vmem:[#allocation11 + $0x88] sm:$0xff]
    %v477 = vld [vmem:[#allocation11 + $0x90] sm:$0xff]
    %v478 = vld [vmem:[#allocation11 + $0x98] sm:$0xff]
    %v479 = vld [vmem:[#allocation11 + $0xa0] sm:$0xff]
    %v480 = vld [vmem:[#allocation11 + $0xa8] sm:$0xff]
    %v481 = vld [vmem:[#allocation11 + $0xb0] sm:$0xff]
    %v482 = vld [vmem:[#allocation11 + $0xb8] sm:$0xff]
    %v483 = vld [vmem:[#allocation11 + $0xc0] sm:$0xff]
    %v484 = vld [vmem:[#allocation11 + $0xc8] sm:$0xff]
    %v485 = vld [vmem:[#allocation11 + $0xd0] sm:$0xff]
    %v486 = vld [vmem:[#allocation11 + $0xd8] sm:$0xff]
    %v487 = vld [vmem:[#allocation11 + $0xe0] sm:$0xff]
    %v488 = vld [vmem:[#allocation11 + $0xe8] sm:$0xff]
    %v489 = vld [vmem:[#allocation11 + $0xf0] sm:$0xff]
    %v490 = vld [vmem:[#allocation11 + $0xf8] sm:$0xff]
    %v491 = vld [vmem:[#allocation11 + $0x100] sm:$0xff]
    %v492 = vld [vmem:[#allocation11 + $0x108] sm:$0xff]
    %v493 = vld [vmem:[#allocation11 + $0x110] sm:$0xff]
    %v494 = vld [vmem:[#allocation11 + $0x118] sm:$0xff]
    %v495 = vld [vmem:[#allocation11 + $0x120] sm:$0xff]
    %v496 = vld [vmem:[#allocation11 + $0x128] sm:$0xff]
    %v497 = vld [vmem:[#allocation11 + $0x130] sm:$0xff]
    %v498 = vld [vmem:[#allocation11 + $0x138] sm:$0xff]
    %v499 = vld [vmem:[#allocation11 + $0x140] sm:$0xff]
    %v500 = vld [vmem:[#allocation11 + $0x148] sm:$0xff]
    %v501 = vld [vmem:[#allocation11 + $0x150] sm:$0xff]
    %v502 = vld [vmem:[#allocation11 + $0x158] sm:$0xff]
    %v503 = vld [vmem:[#allocation11 + $0x160] sm:$0xff]
    %v504 = vld [vmem:[#allocation11 + $0x168] sm:$0xff]
    %v505 = vld [vmem:[#allocation11 + $0x170] sm:$0xff]
    %v506 = vld [vmem:[#allocation11 + $0x178] sm:$0xff]
    %v507 = vld [vmem:[#allocation11 + $0x180] sm:$0xff]
    %v508 = vld [vmem:[#allocation11 + $0x188] sm:$0xff]
    %v509 = vld [vmem:[#allocation11 + $0x190] sm:$0xff]
    %v510 = vld [vmem:[#allocation11 + $0x198] sm:$0xff]
    %v511 = vld [vmem:[#allocation11 + $0x1a0] sm:$0xff]
    %v512 = vld [vmem:[#allocation11 + $0x1a8] sm:$0xff]
    %v513 = vld [vmem:[#allocation11 + $0x1b0] sm:$0xff]
    %v514 = vld [vmem:[#allocation11 + $0x1b8] sm:$0xff]
    %v515 = vld [vmem:[#allocation11 + $0x1c0] sm:$0xff]
    %v516 = vld [vmem:[#allocation11 + $0x1c8] sm:$0xff]
    %v517 = vld [vmem:[#allocation11 + $0x1d0] sm:$0xff]
    %v518 = vld [vmem:[#allocation11 + $0x1d8] sm:$0xff]
    %v519 = vld [vmem:[#allocation11 + $0x1e0] sm:$0xff]
    %v520 = vld [vmem:[#allocation11 + $0x1e8] sm:$0xff]
    %v521 = vld [vmem:[#allocation11 + $0x1f0] sm:$0xff]
    %v522 = vld [vmem:[#allocation11 + $0x1f8] sm:$0xff]
    %v523 = vld [vmem:[#allocation2] sm:$0xff]
    %v524 = vld [vmem:[#allocation2 + $0x8] sm:$0xff]
    %v525 = vld [vmem:[#allocation2 + $0x10] sm:$0xff]
    %v526 = vld [vmem:[#allocation2 + $0x18] sm:$0xff]
    %527 = vmatprep.subr.mxu0 %v460
    %528 = vmatpush1.msra.mxu0 %v459
    %529 = vmatprep.subr.mxu0 %v464
    %530 = vmatpush1.msra.mxu0 %v463
    %531 = vmatprep.subr.mxu0 %v468
    %532 = vmatpush1.msra.mxu0 %v467
    %533 = vmatprep.subr.mxu0 %v472
    %534 = vmatpush1.msra.mxu0 %v471
    %535 = vmatprep.subr.mxu0 %v476
    %536 = vmatpush1.msra.mxu0 %v475
    %537 = vmatprep.subr.mxu0 %v480
    %538 = vmatpush1.msra.mxu0 %v479
    %539 = vmatprep.subr.mxu0 %v484
    %540 = vmatpush1.msra.mxu0 %v483
    %541 = vmatprep.subr.mxu0 %v488
    %542 = vmatpush1.msra.mxu0 %v487
    %543 = vmatprep.subr.mxu0 %v492
    %544 = vmatpush1.msra.mxu0 %v491
    %545 = vmatprep.subr.mxu0 %v496
    %546 = vmatpush1.msra.mxu0 %v495
    %547 = vmatprep.subr.mxu0 %v500
    %548 = vmatpush1.msra.mxu0 %v499
    %549 = vmatprep.subr.mxu0 %v504
    %550 = vmatpush1.msra.mxu0 %v503
    %551 = vmatprep.subr.mxu0 %v508
    %552 = vmatpush1.msra.mxu0 %v507
    %553 = vmatprep.subr.mxu0 %v512
    %554 = vmatpush1.msra.mxu0 %v511
    %555 = vmatprep.subr.mxu0 %v516
    %556 = vmatpush1.msra.mxu0 %v515
    %557 = vmatprep.subr.mxu0 %v520
    %558 = vmatpush1.msra.mxu0 %v519
    %559 = vmatprep.subr.mxu0 0.0
    %560 = vmatpush1.msra.mxu0 0.0
    %561 = vmatprep.subr.mxu0 0.0
    %562 = vmatpush1.msra.mxu0 0.0
    %563 = vmatprep.subr.mxu0 0.0
    %564 = vmatpush1.msra.mxu0 0.0
    %565 = vmatprep.subr.mxu0 0.0
    %566 = vmatpush1.msra.mxu0 0.0
    %567 = vmatprep.subr.mxu0 0.0
    %568 = vmatpush1.msra.mxu0 0.0
    %569 = vmatprep.subr.mxu0 0.0
    %570 = vmatpush1.msra.mxu0 0.0
    %571 = vmatprep.subr.mxu0 0.0
    %572 = vmatpush1.msra.mxu0 0.0
    %573 = vmatprep.subr.mxu0 0.0
    %574 = vmatpush1.msra.mxu0 0.0
    %575 = vmatprep.subr.mxu0 0.0
    %576 = vmatpush1.msra.mxu0 0.0
    %577 = vmatprep.subr.mxu0 0.0
    %578 = vmatpush1.msra.mxu0 0.0
    %579 = vmatprep.subr.mxu0 0.0
    %580 = vmatpush1.msra.mxu0 0.0
    %581 = vmatprep.subr.mxu0 0.0
    %582 = vmatpush1.msra.mxu0 0.0
    %583 = vmatprep.subr.mxu0 0.0
    %584 = vmatpush1.msra.mxu0 0.0
    %585 = vmatprep.subr.mxu0 0.0
    %586 = vmatpush1.msra.mxu0 0.0
    %587 = vmatprep.subr.mxu0 0.0
    %588 = vmatpush1.msra.mxu0 0.0
    %589 = vmatprep.subr.mxu0 0.0
    %590 = vmatpush1.msra.mxu0 0.0
    %591 = vmatprep.mubr.f32.mxu0 0.0
    %592 = vmatmul.mubr.f32.gmra.mrb[0].mxu0 0.0
    %v593 = vpop.f32.mrb[0].mxu0
    %v594 = vadd.f32 0.0, %v593
    %v595 = vpop.f32.mrb[0].mxu0
    %v596 = vadd.f32 0.0, %v595
    %597 = vdwg.mxu0
    %598 = vmatprep.subr.mxu0 %v462
    %599 = vmatpush1.msra.mxu0 %v461
    %600 = vmatprep.subr.mxu0 %v466
    %601 = vmatpush1.msra.mxu0 %v465
    %602 = vmatprep.subr.mxu0 %v470
    %603 = vmatpush1.msra.mxu0 %v469
    %604 = vmatprep.subr.mxu0 %v474
    %605 = vmatpush1.msra.mxu0 %v473
    %606 = vmatprep.subr.mxu0 %v478
    %607 = vmatpush1.msra.mxu0 %v477
    %608 = vmatprep.subr.mxu0 %v482
    %609 = vmatpush1.msra.mxu0 %v481
    %610 = vmatprep.subr.mxu0 %v486
    %611 = vmatpush1.msra.mxu0 %v485
    %612 = vmatprep.subr.mxu0 %v490
    %613 = vmatpush1.msra.mxu0 %v489
    %614 = vmatprep.subr.mxu0 %v494
    %615 = vmatpush1.msra.mxu0 %v493
    %616 = vmatprep.subr.mxu0 %v498
    %617 = vmatpush1.msra.mxu0 %v497
    %618 = vmatprep.subr.mxu0 %v502
    %619 = vmatpush1.msra.mxu0 %v501
    %620 = vmatprep.subr.mxu0 %v506
    %621 = vmatpush1.msra.mxu0 %v505
    %622 = vmatprep.subr.mxu0 %v510
    %623 = vmatpush1.msra.mxu0 %v509
    %624 = vmatprep.subr.mxu0 %v514
    %625 = vmatpush1.msra.mxu0 %v513
    %626 = vmatprep.subr.mxu0 %v518
    %627 = vmatpush1.msra.mxu0 %v517
    %628 = vmatprep.subr.mxu0 %v522
    %629 = vmatpush1.msra.mxu0 %v521
    %630 = vmatprep.subr.mxu0 0.0
    %631 = vmatpush1.msra.mxu0 0.0
    %632 = vmatprep.subr.mxu0 0.0
    %633 = vmatpush1.msra.mxu0 0.0
    %634 = vmatprep.subr.mxu0 0.0
    %635 = vmatpush1.msra.mxu0 0.0
    %636 = vmatprep.subr.mxu0 0.0
    %637 = vmatpush1.msra.mxu0 0.0
    %638 = vmatprep.subr.mxu0 0.0
    %639 = vmatpush1.msra.mxu0 0.0
    %640 = vmatprep.subr.mxu0 0.0
    %641 = vmatpush1.msra.mxu0 0.0
    %642 = vmatprep.subr.mxu0 0.0
    %643 = vmatpush1.msra.mxu0 0.0
    %644 = vmatprep.subr.mxu0 0.0
    %645 = vmatpush1.msra.mxu0 0.0
    %646 = vmatprep.subr.mxu0 0.0
    %647 = vmatpush1.msra.mxu0 0.0
    %648 = vmatprep.subr.mxu0 0.0
    %649 = vmatpush1.msra.mxu0 0.0
    %650 = vmatprep.subr.mxu0 0.0
    %651 = vmatpush1.msra.mxu0 0.0
    %652 = vmatprep.subr.mxu0 0.0
    %653 = vmatpush1.msra.mxu0 0.0
    %654 = vmatprep.subr.mxu0 0.0
    %655 = vmatpush1.msra.mxu0 0.0
    %656 = vmatprep.subr.mxu0 0.0
    %657 = vmatpush1.msra.mxu0 0.0
    %658 = vmatprep.subr.mxu0 0.0
    %659 = vmatpush1.msra.mxu0 0.0
    %660 = vmatprep.subr.mxu0 0.0
    %661 = vmatpush1.msra.mxu0 0.0
    %662 = vmatprep.mubr.f32.mxu0 0.0
    %663 = vmatmul.mubr.f32.gmra.mrb[0].mxu0 0.0
    %v664 = vpop.f32.mrb[0].mxu0
    %v665 = vadd.f32 0.0, %v664
    %v666 = vpop.f32.mrb[0].mxu0
    %v667 = vadd.f32 0.0, %v666
    %668 = vdwg.mxu0
    %v669 = vadd.f32 %v523, %v594
    %v670 = vadd.f32 %v524, %v596
    %v671 = vadd.f32 %v525, %v665
    %v672 = vadd.f32 %v526, %v667
    %v673 = vmul.f32 %v669, 0.5
    %v674 = vtanh.pop %v673
    %v675 = vmul.f32 %v674, 0.5
    %v676 = vadd.f32 %v675, 0.5
    %v677 = vmul.f32 %v670, 0.5
    %v678 = vtanh.pop %v677
    %v679 = vmul.f32 %v678, 0.5
    %v680 = vadd.f32 %v679, 0.5
    %v681 = vtanh.pop %v671
    %v682 = vmul.f32 %v672, 0.5
    %v683 = vtanh.pop %v682
    %v684 = vmul.f32 %v683, 0.5
    %v685 = vadd.f32 %v684, 0.5
    %v686 = vmul.f32 %v680, 0.0
    %v687 = vmul.f32 %v676, %v681
    %v688 = vadd.f32 %v686, %v687
    %v689 = vtanh.pop %v688
    %v690 = vmul.f32 %v685, %v689
    %691 = vst [vmem:[#allocation3] sm:$0xff] %v690
    %s692 = scalar_lea.vmem [#allocation2], 32
    %v693 = vld [vmem:[%s692] sm:$0xff]
    %v694 = vld [vmem:[%s692 + $0x8] sm:$0xff]
    %v695 = vld [vmem:[%s692 + $0x10] sm:$0xff]
    %v696 = vld [vmem:[%s692 + $0x18] sm:$0xff]
    %697 = vmatprep.subr.mxu0 %v460
    %698 = vmatpush1.msra.mxu0 %v459
    %699 = vmatprep.subr.mxu0 %v464
    %700 = vmatpush1.msra.mxu0 %v463
    %701 = vmatprep.subr.mxu0 %v468
    %702 = vmatpush1.msra.mxu0 %v467
    %703 = vmatprep.subr.mxu0 %v472
    %704 = vmatpush1.msra.mxu0 %v471
    %705 = vmatprep.subr.mxu0 %v476
    %706 = vmatpush1.msra.mxu0 %v475
    %707 = vmatprep.subr.mxu0 %v480
    %708 = vmatpush1.msra.mxu0 %v479
    %709 = vmatprep.subr.mxu0 %v484
    %710 = vmatpush1.msra.mxu0 %v483
    %711 = vmatprep.subr.mxu0 %v488
    %712 = vmatpush1.msra.mxu0 %v487
    %713 = vmatprep.subr.mxu0 %v492
    %714 = vmatpush1.msra.mxu0 %v491
    %715 = vmatprep.subr.mxu0 %v496
    %716 = vmatpush1.msra.mxu0 %v495
    %717 = vmatprep.subr.mxu0 %v500
    %718 = vmatpush1.msra.mxu0 %v499
    %719 = vmatprep.subr.mxu0 %v504
    %720 = vmatpush1.msra.mxu0 %v503
    %721 = vmatprep.subr.mxu0 %v508
    %722 = vmatpush1.msra.mxu0 %v507
    %723 = vmatprep.subr.mxu0 %v512
    %724 = vmatpush1.msra.mxu0 %v511
    %725 = vmatprep.subr.mxu0 %v516
    %726 = vmatpush1.msra.mxu0 %v515
    %727 = vmatprep.subr.mxu0 %v520
    %728 = vmatpush1.msra.mxu0 %v519
    %729 = vmatprep.subr.mxu0 0.0
    %730 = vmatpush1.msra.mxu0 0.0
    %731 = vmatprep.subr.mxu0 0.0
    %732 = vmatpush1.msra.mxu0 0.0
    %733 = vmatprep.subr.mxu0 0.0
    %734 = vmatpush1.msra.mxu0 0.0
    %735 = vmatprep.subr.mxu0 0.0
    %736 = vmatpush1.msra.mxu0 0.0
    %737 = vmatprep.subr.mxu0 0.0
    %738 = vmatpush1.msra.mxu0 0.0
    %739 = vmatprep.subr.mxu0 0.0
    %740 = vmatpush1.msra.mxu0 0.0
    %741 = vmatprep.subr.mxu0 0.0
    %742 = vmatpush1.msra.mxu0 0.0
    %743 = vmatprep.subr.mxu0 0.0
    %744 = vmatpush1.msra.mxu0 0.0
    %745 = vmatprep.subr.mxu0 0.0
    %746 = vmatpush1.msra.mxu0 0.0
    %747 = vmatprep.subr.mxu0 0.0
    %748 = vmatpush1.msra.mxu0 0.0
    %749 = vmatprep.subr.mxu0 0.0
    %750 = vmatpush1.msra.mxu0 0.0
    %751 = vmatprep.subr.mxu0 0.0
    %752 = vmatpush1.msra.mxu0 0.0
    %753 = vmatprep.subr.mxu0 0.0
    %754 = vmatpush1.msra.mxu0 0.0
    %755 = vmatprep.subr.mxu0 0.0
    %756 = vmatpush1.msra.mxu0 0.0
    %757 = vmatprep.subr.mxu0 0.0
    %758 = vmatpush1.msra.mxu0 0.0
    %759 = vmatprep.subr.mxu0 0.0
    %760 = vmatpush1.msra.mxu0 0.0
    %761 = vmatprep.mubr.f32.mxu0 0.0
    %762 = vmatmul.mubr.f32.gmra.mrb[0].mxu0 %v690
    %v763 = vpop.f32.mrb[0].mxu0
    %v764 = vadd.f32 0.0, %v763
    %v765 = vpop.f32.mrb[0].mxu0
    %v766 = vadd.f32 0.0, %v765
    %767 = vdwg.mxu0
    %768 = vmatprep.subr.mxu0 %v462
    %769 = vmatpush1.msra.mxu0 %v461
    %770 = vmatprep.subr.mxu0 %v466
    %771 = vmatpush1.msra.mxu0 %v465
    %772 = vmatprep.subr.mxu0 %v470
    %773 = vmatpush1.msra.mxu0 %v469
    %774 = vmatprep.subr.mxu0 %v474
    %775 = vmatpush1.msra.mxu0 %v473
    %776 = vmatprep.subr.mxu0 %v478
    %777 = vmatpush1.msra.mxu0 %v477
    %778 = vmatprep.subr.mxu0 %v482
    %779 = vmatpush1.msra.mxu0 %v481
    %780 = vmatprep.subr.mxu0 %v486
    %781 = vmatpush1.msra.mxu0 %v485
    %782 = vmatprep.subr.mxu0 %v490
    %783 = vmatpush1.msra.mxu0 %v489
    %784 = vmatprep.subr.mxu0 %v494
    %785 = vmatpush1.msra.mxu0 %v493
    %786 = vmatprep.subr.mxu0 %v498
    %787 = vmatpush1.msra.mxu0 %v497
    %788 = vmatprep.subr.mxu0 %v502
    %789 = vmatpush1.msra.mxu0 %v501
    %790 = vmatprep.subr.mxu0 %v506
    %791 = vmatpush1.msra.mxu0 %v505
    %792 = vmatprep.subr.mxu0 %v510
    %793 = vmatpush1.msra.mxu0 %v509
    %794 = vmatprep.subr.mxu0 %v514
    %795 = vmatpush1.msra.mxu0 %v513
    %796 = vmatprep.subr.mxu0 %v518
    %797 = vmatpush1.msra.mxu0 %v517
    %798 = vmatprep.subr.mxu0 %v522
    %799 = vmatpush1.msra.mxu0 %v521
    %800 = vmatprep.subr.mxu0 0.0
    %801 = vmatpush1.msra.mxu0 0.0
    %802 = vmatprep.subr.mxu0 0.0
    %803 = vmatpush1.msra.mxu0 0.0
    %804 = vmatprep.subr.mxu0 0.0
    %805 = vmatpush1.msra.mxu0 0.0
    %806 = vmatprep.subr.mxu0 0.0
    %807 = vmatpush1.msra.mxu0 0.0
    %808 = vmatprep.subr.mxu0 0.0
    %809 = vmatpush1.msra.mxu0 0.0
    %810 = vmatprep.subr.mxu0 0.0
    %811 = vmatpush1.msra.mxu0 0.0
    %812 = vmatprep.subr.mxu0 0.0
    %813 = vmatpush1.msra.mxu0 0.0
    %814 = vmatprep.subr.mxu0 0.0
    %815 = vmatpush1.msra.mxu0 0.0
    %816 = vmatprep.subr.mxu0 0.0
    %817 = vmatpush1.msra.mxu0 0.0
    %818 = vmatprep.subr.mxu0 0.0
    %819 = vmatpush1.msra.mxu0 0.0
    %820 = vmatprep.subr.mxu0 0.0
    %821 = vmatpush1.msra.mxu0 0.0
    %822 = vmatprep.subr.mxu0 0.0
    %823 = vmatpush1.msra.mxu0 0.0
    %824 = vmatprep.subr.mxu0 0.0
    %825 = vmatpush1.msra.mxu0 0.0
    %826 = vmatprep.subr.mxu0 0.0
    %827 = vmatpush1.msra.mxu0 0.0
    %828 = vmatprep.subr.mxu0 0.0
    %829 = vmatpush1.msra.mxu0 0.0
    %830 = vmatprep.subr.mxu0 0.0
    %831 = vmatpush1.msra.mxu0 0.0
    %832 = vmatprep.mubr.f32.mxu0 0.0
    %833 = vmatmul.mubr.f32.gmra.mrb[0].mxu0 %v690
    %v834 = vpop.f32.mrb[0].mxu0
    %v835 = vadd.f32 0.0, %v834
    %v836 = vpop.f32.mrb[0].mxu0
    %v837 = vadd.f32 0.0, %v836
    %838 = vdwg.mxu0
    %v839 = vadd.f32 %v693, %v764
    %v840 = vadd.f32 %v694, %v766
    %v841 = vadd.f32 %v695, %v835
    %v842 = vadd.f32 %v696, %v837
    %v843 = vmul.f32 %v839, 0.5
    %v844 = vtanh.pop %v843
    %v845 = vmul.f32 %v844, 0.5
    %v846 = vadd.f32 %v845, 0.5
    %v847 = vmul.f32 %v840, 0.5
    %v848 = vtanh.pop %v847
    %v849 = vmul.f32 %v848, 0.5
    %v850 = vadd.f32 %v849, 0.5
    %v851 = vtanh.pop %v841
    %v852 = vmul.f32 %v842, 0.5
    %v853 = vtanh.pop %v852
    %v854 = vmul.f32 %v853, 0.5
    %v855 = vadd.f32 %v854, 0.5
    %v856 = vmul.f32 %v850, %v688
    %v857 = vmul.f32 %v846, %v851
    %v858 = vadd.f32 %v856, %v857
    %v859 = vtanh.pop %v858
    %v860 = vmul.f32 %v855, %v859
    %s861 = scalar_lea.vmem [#allocation3], 8
    %862 = vst [vmem:[%s861] sm:$0xff] %v860
    %s863 = scalar_lea.vmem [#allocation2], 64
    %v864 = vld [vmem:[%s863] sm:$0xff]
    %v865 = vld [vmem:[%s863 + $0x8] sm:$0xff]
    %v866 = vld [vmem:[%s863 + $0x10] sm:$0xff]
    %v867 = vld [vmem:[%s863 + $0x18] sm:$0xff]
    %868 = vmatprep.subr.mxu0 %v460
    %869 = vmatpush1.msra.mxu0 %v459
    %870 = vmatprep.subr.mxu0 %v464
    %871 = vmatpush1.msra.mxu0 %v463
    %872 = vmatprep.subr.mxu0 %v468
    %873 = vmatpush1.msra.mxu0 %v467
    %874 = vmatprep.subr.mxu0 %v472
    %875 = vmatpush1.msra.mxu0 %v471
    %876 = vmatprep.subr.mxu0 %v476
    %877 = vmatpush1.msra.mxu0 %v475
    %878 = vmatprep.subr.mxu0 %v480
    %879 = vmatpush1.msra.mxu0 %v479
    %880 = vmatprep.subr.mxu0 %v484
    %881 = vmatpush1.msra.mxu0 %v483
    %882 = vmatprep.subr.mxu0 %v488
    %883 = vmatpush1.msra.mxu0 %v487
    %884 = vmatprep.subr.mxu0 %v492
    %885 = vmatpush1.msra.mxu0 %v491
    %886 = vmatprep.subr.mxu0 %v496
    %887 = vmatpush1.msra.mxu0 %v495
    %888 = vmatprep.subr.mxu0 %v500
    %889 = vmatpush1.msra.mxu0 %v499
    %890 = vmatprep.subr.mxu0 %v504
    %891 = vmatpush1.msra.mxu0 %v503
    %892 = vmatprep.subr.mxu0 %v508
    %893 = vmatpush1.msra.mxu0 %v507
    %894 = vmatprep.subr.mxu0 %v512
    %895 = vmatpush1.msra.mxu0 %v511
    %896 = vmatprep.subr.mxu0 %v516
    %897 = vmatpush1.msra.mxu0 %v515
    %898 = vmatprep.subr.mxu0 %v520
    %899 = vmatpush1.msra.mxu0 %v519
    %900 = vmatprep.subr.mxu0 0.0
    %901 = vmatpush1.msra.mxu0 0.0
    %902 = vmatprep.subr.mxu0 0.0
    %903 = vmatpush1.msra.mxu0 0.0
    %904 = vmatprep.subr.mxu0 0.0
    %905 = vmatpush1.msra.mxu0 0.0
    %906 = vmatprep.subr.mxu0 0.0
    %907 = vmatpush1.msra.mxu0 0.0
    %908 = vmatprep.subr.mxu0 0.0
    %909 = vmatpush1.msra.mxu0 0.0
    %910 = vmatprep.subr.mxu0 0.0
    %911 = vmatpush1.msra.mxu0 0.0
    %912 = vmatprep.subr.mxu0 0.0
    %913 = vmatpush1.msra.mxu0 0.0
    %914 = vmatprep.subr.mxu0 0.0
    %915 = vmatpush1.msra.mxu0 0.0
    %916 = vmatprep.subr.mxu0 0.0
    %917 = vmatpush1.msra.mxu0 0.0
    %918 = vmatprep.subr.mxu0 0.0
    %919 = vmatpush1.msra.mxu0 0.0
    %920 = vmatprep.subr.mxu0 0.0
    %921 = vmatpush1.msra.mxu0 0.0
    %922 = vmatprep.subr.mxu0 0.0
    %923 = vmatpush1.msra.mxu0 0.0
    %924 = vmatprep.subr.mxu0 0.0
    %925 = vmatpush1.msra.mxu0 0.0
    %926 = vmatprep.subr.mxu0 0.0
    %927 = vmatpush1.msra.mxu0 0.0
    %928 = vmatprep.subr.mxu0 0.0
    %929 = vmatpush1.msra.mxu0 0.0
    %930 = vmatprep.subr.mxu0 0.0
    %931 = vmatpush1.msra.mxu0 0.0
    %932 = vmatprep.mubr.f32.mxu0 0.0
    %933 = vmatmul.mubr.f32.gmra.mrb[0].mxu0 %v860
    %v934 = vpop.f32.mrb[0].mxu0
    %v935 = vadd.f32 0.0, %v934
    %v936 = vpop.f32.mrb[0].mxu0
    %v937 = vadd.f32 0.0, %v936
    %938 = vdwg.mxu0
    %939 = vmatprep.subr.mxu0 %v462
    %940 = vmatpush1.msra.mxu0 %v461
    %941 = vmatprep.subr.mxu0 %v466
    %942 = vmatpush1.msra.mxu0 %v465
    %943 = vmatprep.subr.mxu0 %v470
    %944 = vmatpush1.msra.mxu0 %v469
    %945 = vmatprep.subr.mxu0 %v474
    %946 = vmatpush1.msra.mxu0 %v473
    %947 = vmatprep.subr.mxu0 %v478
    %948 = vmatpush1.msra.mxu0 %v477
    %949 = vmatprep.subr.mxu0 %v482
    %950 = vmatpush1.msra.mxu0 %v481
    %951 = vmatprep.subr.mxu0 %v486
    %952 = vmatpush1.msra.mxu0 %v485
    %953 = vmatprep.subr.mxu0 %v490
    %954 = vmatpush1.msra.mxu0 %v489
    %955 = vmatprep.subr.mxu0 %v494
    %956 = vmatpush1.msra.mxu0 %v493
    %957 = vmatprep.subr.mxu0 %v498
    %958 = vmatpush1.msra.mxu0 %v497
    %959 = vmatprep.subr.mxu0 %v502
    %960 = vmatpush1.msra.mxu0 %v501
    %961 = vmatprep.subr.mxu0 %v506
    %962 = vmatpush1.msra.mxu0 %v505
    %963 = vmatprep.subr.mxu0 %v510
    %964 = vmatpush1.msra.mxu0 %v509
    %965 = vmatprep.subr.mxu0 %v514
    %966 = vmatpush1.msra.mxu0 %v513
    %967 = vmatprep.subr.mxu0 %v518
    %968 = vmatpush1.msra.mxu0 %v517
    %969 = vmatprep.subr.mxu0 %v522
    %970 = vmatpush1.msra.mxu0 %v521
    %971 = vmatprep.subr.mxu0 0.0
    %972 = vmatpush1.msra.mxu0 0.0
    %973 = vmatprep.subr.mxu0 0.0
    %974 = vmatpush1.msra.mxu0 0.0
    %975 = vmatprep.subr.mxu0 0.0
    %976 = vmatpush1.msra.mxu0 0.0
    %977 = vmatprep.subr.mxu0 0.0
    %978 = vmatpush1.msra.mxu0 0.0
    %979 = vmatprep.subr.mxu0 0.0
    %980 = vmatpush1.msra.mxu0 0.0
    %981 = vmatprep.subr.mxu0 0.0
    %982 = vmatpush1.msra.mxu0 0.0
    %983 = vmatprep.subr.mxu0 0.0
    %984 = vmatpush1.msra.mxu0 0.0
    %985 = vmatprep.subr.mxu0 0.0
    %986 = vmatpush1.msra.mxu0 0.0
    %987 = vmatprep.subr.mxu0 0.0
    %988 = vmatpush1.msra.mxu0 0.0
    %989 = vmatprep.subr.mxu0 0.0
    %990 = vmatpush1.msra.mxu0 0.0
    %991 = vmatprep.subr.mxu0 0.0
    %992 = vmatpush1.msra.mxu0 0.0
    %993 = vmatprep.subr.mxu0 0.0
    %994 = vmatpush1.msra.mxu0 0.0
    %995 = vmatprep.subr.mxu0 0.0
    %996 = vmatpush1.msra.mxu0 0.0
    %997 = vmatprep.subr.mxu0 0.0
    %998 = vmatpush1.msra.mxu0 0.0
    %999 = vmatprep.subr.mxu0 0.0
    %1000 = vmatpush1.msra.mxu0 0.0
    %1001 = vmatprep.subr.mxu0 0.0
    %1002 = vmatpush1.msra.mxu0 0.0
    %1003 = vmatprep.mubr.f32.mxu0 0.0
    %1004 = vmatmul.mubr.f32.gmra.mrb[0].mxu0 %v860
    %v1005 = vpop.f32.mrb[0].mxu0
    %v1006 = vadd.f32 0.0, %v1005
    %v1007 = vpop.f32.mrb[0].mxu0
    %v1008 = vadd.f32 0.0, %v1007
    %1009 = vdwg.mxu0
    %v1010 = vadd.f32 %v864, %v935
    %v1011 = vadd.f32 %v865, %v937
    %v1012 = vadd.f32 %v866, %v1006
    %v1013 = vadd.f32 %v867, %v1008
    %v1014 = vmul.f32 %v1010, 0.5
    %v1015 = vtanh.pop %v1014
    %v1016 = vmul.f32 %v1015, 0.5
    %v1017 = vadd.f32 %v1016, 0.5
    %v1018 = vmul.f32 %v1011, 0.5
    %v1019 = vtanh.pop %v1018
    %v1020 = vmul.f32 %v1019, 0.5
    %v1021 = vadd.f32 %v1020, 0.5
    %v1022 = vtanh.pop %v1012
    %v1023 = vmul.f32 %v1013, 0.5
    %v1024 = vtanh.pop %v1023
    %v1025 = vmul.f32 %v1024, 0.5
    %v1026 = vadd.f32 %v1025, 0.5
    %v1027 = vmul.f32 %v1021, %v858
    %v1028 = vmul.f32 %v1017, %v1022
    %v1029 = vadd.f32 %v1027, %v1028
    %v1030 = vtanh.pop %v1029
    %v1031 = vmul.f32 %v1026, %v1030
    %s1032 = scalar_lea.vmem [#allocation3], 16
    %1033 = vst [vmem:[%s1032] sm:$0xff] %v1031
    %s1034 = scalar_lea.vmem [#allocation2], 96
    %v1035 = vld [vmem:[%s1034] sm:$0xff]
    %v1036 = vld [vmem:[%s1034 + $0x8] sm:$0xff]
    %v1037 = vld [vmem:[%s1034 + $0x10] sm:$0xff]
    %v1038 = vld [vmem:[%s1034 + $0x18] sm:$0xff]
    %1039 = vmatprep.subr.mxu0 %v460
    %1040 = vmatpush1.msra.mxu0 %v459
    %1041 = vmatprep.subr.mxu0 %v464
    %1042 = vmatpush1.msra.mxu0 %v463
    %1043 = vmatprep.subr.mxu0 %v468
    %1044 = vmatpush1.msra.mxu0 %v467
    %1045 = vmatprep.subr.mxu0 %v472
    %1046 = vmatpush1.msra.mxu0 %v471
    %1047 = vmatprep.subr.mxu0 %v476
    %1048 = vmatpush1.msra.mxu0 %v475
    %1049 = vmatprep.subr.mxu0 %v480
    %1050 = vmatpush1.msra.mxu0 %v479
    %1051 = vmatprep.subr.mxu0 %v484
    %1052 = vmatpush1.msra.mxu0 %v483
    %1053 = vmatprep.subr.mxu0 %v488
    %1054 = vmatpush1.msra.mxu0 %v487
    %1055 = vmatprep.subr.mxu0 %v492
    %1056 = vmatpush1.msra.mxu0 %v491
    %1057 = vmatprep.subr.mxu0 %v496
    %1058 = vmatpush1.msra.mxu0 %v495
    %1059 = vmatprep.subr.mxu0 %v500
    %1060 = vmatpush1.msra.mxu0 %v499
    %1061 = vmatprep.subr.mxu0 %v504
    %1062 = vmatpush1.msra.mxu0 %v503
    %1063 = vmatprep.subr.mxu0 %v508
    %1064 = vmatpush1.msra.mxu0 %v507
    %1065 = vmatprep.subr.mxu0 %v512
    %1066 = vmatpush1.msra.mxu0 %v511
    %1067 = vmatprep.subr.mxu0 %v516
    %1068 = vmatpush1.msra.mxu0 %v515
    %1069 = vmatprep.subr.mxu0 %v520
    %1070 = vmatpush1.msra.mxu0 %v519
    %1071 = vmatprep.subr.mxu0 0.0
    %1072 = vmatpush1.msra.mxu0 0.0
    %1073 = vmatprep.subr.mxu0 0.0
    %1074 = vmatpush1.msra.mxu0 0.0
    %1075 = vmatprep.subr.mxu0 0.0
    %1076 = vmatpush1.msra.mxu0 0.0
    %1077 = vmatprep.subr.mxu0 0.0
    %1078 = vmatpush1.msra.mxu0 0.0
    %1079 = vmatprep.subr.mxu0 0.0
    %1080 = vmatpush1.msra.mxu0 0.0
    %1081 = vmatprep.subr.mxu0 0.0
    %1082 = vmatpush1.msra.mxu0 0.0
    %1083 = vmatprep.subr.mxu0 0.0
    %1084 = vmatpush1.msra.mxu0 0.0
    %1085 = vmatprep.subr.mxu0 0.0
    %1086 = vmatpush1.msra.mxu0 0.0
    %1087 = vmatprep.subr.mxu0 0.0
    %1088 = vmatpush1.msra.mxu0 0.0
    %1089 = vmatprep.subr.mxu0 0.0
    %1090 = vmatpush1.msra.mxu0 0.0
    %1091 = vmatprep.subr.mxu0 0.0
    %1092 = vmatpush1.msra.mxu0 0.0
    %1093 = vmatprep.subr.mxu0 0.0
    %1094 = vmatpush1.msra.mxu0 0.0
    %1095 = vmatprep.subr.mxu0 0.0
    %1096 = vmatpush1.msra.mxu0 0.0
    %1097 = vmatprep.subr.mxu0 0.0
    %1098 = vmatpush1.msra.mxu0 0.0
    %1099 = vmatprep.subr.mxu0 0.0
    %1100 = vmatpush1.msra.mxu0 0.0
    %1101 = vmatprep.subr.mxu0 0.0
    %1102 = vmatpush1.msra.mxu0 0.0
    %1103 = vmatprep.mubr.f32.mxu0 0.0
    %1104 = vmatmul.mubr.f32.gmra.mrb[0].mxu0 %v1031
    %v1105 = vpop.f32.mrb[0].mxu0
    %v1106 = vadd.f32 0.0, %v1105
    %v1107 = vpop.f32.mrb[0].mxu0
    %v1108 = vadd.f32 0.0, %v1107
    %1109 = vdwg.mxu0
    %1110 = vmatprep.subr.mxu0 %v462
    %1111 = vmatpush1.msra.mxu0 %v461
    %1112 = vmatprep.subr.mxu0 %v466
    %1113 = vmatpush1.msra.mxu0 %v465
    %1114 = vmatprep.subr.mxu0 %v470
    %1115 = vmatpush1.msra.mxu0 %v469
    %1116 = vmatprep.subr.mxu0 %v474
    %1117 = vmatpush1.msra.mxu0 %v473
    %1118 = vmatprep.subr.mxu0 %v478
    %1119 = vmatpush1.msra.mxu0 %v477
    %1120 = vmatprep.subr.mxu0 %v482
    %1121 = vmatpush1.msra.mxu0 %v481
    %1122 = vmatprep.subr.mxu0 %v486
    %1123 = vmatpush1.msra.mxu0 %v485
    %1124 = vmatprep.subr.mxu0 %v490
    %1125 = vmatpush1.msra.mxu0 %v489
    %1126 = vmatprep.subr.mxu0 %v494
    %1127 = vmatpush1.msra.mxu0 %v493
    %1128 = vmatprep.subr.mxu0 %v498
    %1129 = vmatpush1.msra.mxu0 %v497
    %1130 = vmatprep.subr.mxu0 %v502
    %1131 = vmatpush1.msra.mxu0 %v501
    %1132 = vmatprep.subr.mxu0 %v506
    %1133 = vmatpush1.msra.mxu0 %v505
    %1134 = vmatprep.subr.mxu0 %v510
    %1135 = vmatpush1.msra.mxu0 %v509
    %1136 = vmatprep.subr.mxu0 %v514
    %1137 = vmatpush1.msra.mxu0 %v513
    %1138 = vmatprep.subr.mxu0 %v518
    %1139 = vmatpush1.msra.mxu0 %v517
    %1140 = vmatprep.subr.mxu0 %v522
    %1141 = vmatpush1.msra.mxu0 %v521
    %1142 = vmatprep.subr.mxu0 0.0
    %1143 = vmatpush1.msra.mxu0 0.0
    %1144 = vmatprep.subr.mxu0 0.0
    %1145 = vmatpush1.msra.mxu0 0.0
    %1146 = vmatprep.subr.mxu0 0.0
    %1147 = vmatpush1.msra.mxu0 0.0
    %1148 = vmatprep.subr.mxu0 0.0
    %1149 = vmatpush1.msra.mxu0 0.0
    %1150 = vmatprep.subr.mxu0 0.0
    %1151 = vmatpush1.msra.mxu0 0.0
    %1152 = vmatprep.subr.mxu0 0.0
    %1153 = vmatpush1.msra.mxu0 0.0
    %1154 = vmatprep.subr.mxu0 0.0
    %1155 = vmatpush1.msra.mxu0 0.0
    %1156 = vmatprep.subr.mxu0 0.0
    %1157 = vmatpush1.msra.mxu0 0.0
    %1158 = vmatprep.subr.mxu0 0.0
    %1159 = vmatpush1.msra.mxu0 0.0
    %1160 = vmatprep.subr.mxu0 0.0
    %1161 = vmatpush1.msra.mxu0 0.0
    %1162 = vmatprep.subr.mxu0 0.0
    %1163 = vmatpush1.msra.mxu0 0.0
    %1164 = vmatprep.subr.mxu0 0.0
    %1165 = vmatpush1.msra.mxu0 0.0
    %1166 = vmatprep.subr.mxu0 0.0
    %1167 = vmatpush1.msra.mxu0 0.0
    %1168 = vmatprep.subr.mxu0 0.0
    %1169 = vmatpush1.msra.mxu0 0.0
    %1170 = vmatprep.subr.mxu0 0.0
    %1171 = vmatpush1.msra.mxu0 0.0
    %1172 = vmatprep.subr.mxu0 0.0
    %1173 = vmatpush1.msra.mxu0 0.0
    %1174 = vmatprep.mubr.f32.mxu0 0.0
    %1175 = vmatmul.mubr.f32.gmra.mrb[0].mxu0 %v1031
    %v1176 = vpop.f32.mrb[0].mxu0
    %v1177 = vadd.f32 0.0, %v1176
    %v1178 = vpop.f32.mrb[0].mxu0
    %v1179 = vadd.f32 0.0, %v1178
    %1180 = vdwg.mxu0
    %v1181 = vadd.f32 %v1035, %v1106
    %v1182 = vadd.f32 %v1036, %v1108
    %v1183 = vadd.f32 %v1037, %v1177
    %v1184 = vadd.f32 %v1038, %v1179
    %v1185 = vmul.f32 %v1181, 0.5
    %v1186 = vtanh.pop %v1185
    %v1187 = vmul.f32 %v1186, 0.5
    %v1188 = vadd.f32 %v1187, 0.5
    %v1189 = vmul.f32 %v1182, 0.5
    %v1190 = vtanh.pop %v1189
    %v1191 = vmul.f32 %v1190, 0.5
    %v1192 = vadd.f32 %v1191, 0.5
    %v1193 = vtanh.pop %v1183
    %v1194 = vmul.f32 %v1184, 0.5
    %v1195 = vtanh.pop %v1194
    %v1196 = vmul.f32 %v1195, 0.5
    %v1197 = vadd.f32 %v1196, 0.5
    %v1198 = vmul.f32 %v1192, %v1029
    %v1199 = vmul.f32 %v1188, %v1193
    %v1200 = vadd.f32 %v1198, %v1199
    %v1201 = vtanh.pop %v1200
    %v1202 = vmul.f32 %v1197, %v1201
    %s1203 = scalar_lea.vmem [#allocation3], 24
    %1204 = vst [vmem:[%s1203] sm:$0xff] %v1202
    %s1205 = scalar_lea.vmem [#allocation2], 128
    %v1206 = vld [vmem:[%s1205] sm:$0xff]
    %v1207 = vld [vmem:[%s1205 + $0x8] sm:$0xff]
    %v1208 = vld [vmem:[%s1205 + $0x10] sm:$0xff]
    %v1209 = vld [vmem:[%s1205 + $0x18] sm:$0xff]
    %1210 = vmatprep.subr.mxu0 %v460
    %1211 = vmatpush1.msra.mxu0 %v459
    %1212 = vmatprep.subr.mxu0 %v464
    %1213 = vmatpush1.msra.mxu0 %v463
    %1214 = vmatprep.subr.mxu0 %v468
    %1215 = vmatpush1.msra.mxu0 %v467
    %1216 = vmatprep.subr.mxu0 %v472
    %1217 = vmatpush1.msra.mxu0 %v471
    %1218 = vmatprep.subr.mxu0 %v476
    %1219 = vmatpush1.msra.mxu0 %v475
    %1220 = vmatprep.subr.mxu0 %v480
    %1221 = vmatpush1.msra.mxu0 %v479
    %1222 = vmatprep.subr.mxu0 %v484
    %1223 = vmatpush1.msra.mxu0 %v483
    %1224 = vmatprep.subr.mxu0 %v488
    %1225 = vmatpush1.msra.mxu0 %v487
    %1226 = vmatprep.subr.mxu0 %v492
    %1227 = vmatpush1.msra.mxu0 %v491
    %1228 = vmatprep.subr.mxu0 %v496
    %1229 = vmatpush1.msra.mxu0 %v495
    %1230 = vmatprep.subr.mxu0 %v500
    %1231 = vmatpush1.msra.mxu0 %v499
    %1232 = vmatprep.subr.mxu0 %v504
    %1233 = vmatpush1.msra.mxu0 %v503
    %1234 = vmatprep.subr.mxu0 %v508
    %1235 = vmatpush1.msra.mxu0 %v507
    %1236 = vmatprep.subr.mxu0 %v512
    %1237 = vmatpush1.msra.mxu0 %v511
    %1238 = vmatprep.subr.mxu0 %v516
    %1239 = vmatpush1.msra.mxu0 %v515
    %1240 = vmatprep.subr.mxu0 %v520
    %1241 = vmatpush1.msra.mxu0 %v519
    %1242 = vmatprep.subr.mxu0 0.0
    %1243 = vmatpush1.msra.mxu0 0.0
    %1244 = vmatprep.subr.mxu0 0.0
    %1245 = vmatpush1.msra.mxu0 0.0
    %1246 = vmatprep.subr.mxu0 0.0
    %1247 = vmatpush1.msra.mxu0 0.0
    %1248 = vmatprep.subr.mxu0 0.0
    %1249 = vmatpush1.msra.mxu0 0.0
    %1250 = vmatprep.subr.mxu0 0.0
    %1251 = vmatpush1.msra.mxu0 0.0
    %1252 = vmatprep.subr.mxu0 0.0
    %1253 = vmatpush1.msra.mxu0 0.0
    %1254 = vmatprep.subr.mxu0 0.0
    %1255 = vmatpush1.msra.mxu0 0.0
    %1256 = vmatprep.subr.mxu0 0.0
    %1257 = vmatpush1.msra.mxu0 0.0
    %1258 = vmatprep.subr.mxu0 0.0
    %1259 = vmatpush1.msra.mxu0 0.0
    %1260 = vmatprep.subr.mxu0 0.0
    %1261 = vmatpush1.msra.mxu0 0.0
    %1262 = vmatprep.subr.mxu0 0.0
    %1263 = vmatpush1.msra.mxu0 0.0
    %1264 = vmatprep.subr.mxu0 0.0
    %1265 = vmatpush1.msra.mxu0 0.0
    %1266 = vmatprep.subr.mxu0 0.0
    %1267 = vmatpush1.msra.mxu0 0.0
    %1268 = vmatprep.subr.mxu0 0.0
    %1269 = vmatpush1.msra.mxu0 0.0
    %1270 = vmatprep.subr.mxu0 0.0
    %1271 = vmatpush1.msra.mxu0 0.0
    %1272 = vmatprep.subr.mxu0 0.0
    %1273 = vmatpush1.msra.mxu0 0.0
    %1274 = vmatprep.mubr.f32.mxu0 0.0
    %1275 = vmatmul.mubr.f32.gmra.mrb[0].mxu0 %v1202
    %v1276 = vpop.f32.mrb[0].mxu0
    %v1277 = vadd.f32 0.0, %v1276
    %v1278 = vpop.f32.mrb[0].mxu0
    %v1279 = vadd.f32 0.0, %v1278
    %1280 = vdwg.mxu0
    %1281 = vmatprep.subr.mxu0 %v462
    %1282 = vmatpush1.msra.mxu0 %v461
    %1283 = vmatprep.subr.mxu0 %v466
    %1284 = vmatpush1.msra.mxu0 %v465
    %1285 = vmatprep.subr.mxu0 %v470
    %1286 = vmatpush1.msra.mxu0 %v469
    %1287 = vmatprep.subr.mxu0 %v474
    %1288 = vmatpush1.msra.mxu0 %v473
    %1289 = vmatprep.subr.mxu0 %v478
    %1290 = vmatpush1.msra.mxu0 %v477
    %1291 = vmatprep.subr.mxu0 %v482
    %1292 = vmatpush1.msra.mxu0 %v481
    %1293 = vmatprep.subr.mxu0 %v486
    %1294 = vmatpush1.msra.mxu0 %v485
    %1295 = vmatprep.subr.mxu0 %v490
    %1296 = vmatpush1.msra.mxu0 %v489
    %1297 = vmatprep.subr.mxu0 %v494
    %1298 = vmatpush1.msra.mxu0 %v493
    %1299 = vmatprep.subr.mxu0 %v498
    %1300 = vmatpush1.msra.mxu0 %v497
    %1301 = vmatprep.subr.mxu0 %v502
    %1302 = vmatpush1.msra.mxu0 %v501
    %1303 = vmatprep.subr.mxu0 %v506
    %1304 = vmatpush1.msra.mxu0 %v505
    %1305 = vmatprep.subr.mxu0 %v510
    %1306 = vmatpush1.msra.mxu0 %v509
    %1307 = vmatprep.subr.mxu0 %v514
    %1308 = vmatpush1.msra.mxu0 %v513
    %1309 = vmatprep.subr.mxu0 %v518
    %1310 = vmatpush1.msra.mxu0 %v517
    %1311 = vmatprep.subr.mxu0 %v522
    %1312 = vmatpush1.msra.mxu0 %v521
    %1313 = vmatprep.subr.mxu0 0.0
    %1314 = vmatpush1.msra.mxu0 0.0
    %1315 = vmatprep.subr.mxu0 0.0
    %1316 = vmatpush1.msra.mxu0 0.0
    %1317 = vmatprep.subr.mxu0 0.0
    %1318 = vmatpush1.msra.mxu0 0.0
    %1319 = vmatprep.subr.mxu0 0.0
    %1320 = vmatpush1.msra.mxu0 0.0
    %1321 = vmatprep.subr.mxu0 0.0
    %1322 = vmatpush1.msra.mxu0 0.0
    %1323 = vmatprep.subr.mxu0 0.0
    %1324 = vmatpush1.msra.mxu0 0.0
    %1325 = vmatprep.subr.mxu0 0.0
    %1326 = vmatpush1.msra.mxu0 0.0
    %1327 = vmatprep.subr.mxu0 0.0
    %1328 = vmatpush1.msra.mxu0 0.0
    %1329 = vmatprep.subr.mxu0 0.0
    %1330 = vmatpush1.msra.mxu0 0.0
    %1331 = vmatprep.subr.mxu0 0.0
    %1332 = vmatpush1.msra.mxu0 0.0
    %1333 = vmatprep.subr.mxu0 0.0
    %1334 = vmatpush1.msra.mxu0 0.0
    %1335 = vmatprep.subr.mxu0 0.0
    %1336 = vmatpush1.msra.mxu0 0.0
    %1337 = vmatprep.subr.mxu0 0.0
    %1338 = vmatpush1.msra.mxu0 0.0
    %1339 = vmatprep.subr.mxu0 0.0
    %1340 = vmatpush1.msra.mxu0 0.0
    %1341 = vmatprep.subr.mxu0 0.0
    %1342 = vmatpush1.msra.mxu0 0.0
    %1343 = vmatprep.subr.mxu0 0.0
    %1344 = vmatpush1.msra.mxu0 0.0
    %1345 = vmatprep.mubr.f32.mxu0 0.0
    %1346 = vmatmul.mubr.f32.gmra.mrb[0].mxu0 %v1202
    %v1347 = vpop.f32.mrb[0].mxu0
    %v1348 = vadd.f32 0.0, %v1347
    %v1349 = vpop.f32.mrb[0].mxu0
    %v1350 = vadd.f32 0.0, %v1349
    %1351 = vdwg.mxu0
    %v1352 = vadd.f32 %v1206, %v1277
    %v1353 = vadd.f32 %v1207, %v1279
    %v1354 = vadd.f32 %v1208, %v1348
    %v1355 = vadd.f32 %v1209, %v1350
    %v1356 = vmul.f32 %v1352, 0.5
    %v1357 = vtanh.pop %v1356
    %v1358 = vmul.f32 %v1357, 0.5
    %v1359 = vadd.f32 %v1358, 0.5
    %v1360 = vmul.f32 %v1353, 0.5
    %v1361 = vtanh.pop %v1360
    %v1362 = vmul.f32 %v1361, 0.5
    %v1363 = vadd.f32 %v1362, 0.5
    %v1364 = vtanh.pop %v1354
    %v1365 = vmul.f32 %v1355, 0.5
    %v1366 = vtanh.pop %v1365
    %v1367 = vmul.f32 %v1366, 0.5
    %v1368 = vadd.f32 %v1367, 0.5
    %v1369 = vmul.f32 %v1363, %v1200
    %v1370 = vmul.f32 %v1359, %v1364
    %v1371 = vadd.f32 %v1369, %v1370
    %v1372 = vtanh.pop %v1371
    %v1373 = vmul.f32 %v1368, %v1372
    %s1374 = scalar_lea.vmem [#allocation3], 32
    %1375 = vst [vmem:[%s1374] sm:$0xff] %v1373
    %s1376 = scalar_lea.vmem [#allocation2], 160
    %v1377 = vld [vmem:[%s1376] sm:$0xff]
    %v1378 = vld [vmem:[%s1376 + $0x8] sm:$0xff]
    %v1379 = vld [vmem:[%s1376 + $0x10] sm:$0xff]
    %v1380 = vld [vmem:[%s1376 + $0x18] sm:$0xff]
    %1381 = vmatprep.subr.mxu0 %v460
    %1382 = vmatpush1.msra.mxu0 %v459
    %1383 = vmatprep.subr.mxu0 %v464
    %1384 = vmatpush1.msra.mxu0 %v463
    %1385 = vmatprep.subr.mxu0 %v468
    %1386 = vmatpush1.msra.mxu0 %v467
    %1387 = vmatprep.subr.mxu0 %v472
    %1388 = vmatpush1.msra.mxu0 %v471
    %1389 = vmatprep.subr.mxu0 %v476
    %1390 = vmatpush1.msra.mxu0 %v475
    %1391 = vmatprep.subr.mxu0 %v480
    %1392 = vmatpush1.msra.mxu0 %v479
    %1393 = vmatprep.subr.mxu0 %v484
    %1394 = vmatpush1.msra.mxu0 %v483
    %1395 = vmatprep.subr.mxu0 %v488
    %1396 = vmatpush1.msra.mxu0 %v487
    %1397 = vmatprep.subr.mxu0 %v492
    %1398 = vmatpush1.msra.mxu0 %v491
    %1399 = vmatprep.subr.mxu0 %v496
    %1400 = vmatpush1.msra.mxu0 %v495
    %1401 = vmatprep.subr.mxu0 %v500
    %1402 = vmatpush1.msra.mxu0 %v499
    %1403 = vmatprep.subr.mxu0 %v504
    %1404 = vmatpush1.msra.mxu0 %v503
    %1405 = vmatprep.subr.mxu0 %v508
    %1406 = vmatpush1.msra.mxu0 %v507
    %1407 = vmatprep.subr.mxu0 %v512
    %1408 = vmatpush1.msra.mxu0 %v511
    %1409 = vmatprep.subr.mxu0 %v516
    %1410 = vmatpush1.msra.mxu0 %v515
    %1411 = vmatprep.subr.mxu0 %v520
    %1412 = vmatpush1.msra.mxu0 %v519
    %1413 = vmatprep.subr.mxu0 0.0
    %1414 = vmatpush1.msra.mxu0 0.0
    %1415 = vmatprep.subr.mxu0 0.0
    %1416 = vmatpush1.msra.mxu0 0.0
    %1417 = vmatprep.subr.mxu0 0.0
    %1418 = vmatpush1.msra.mxu0 0.0
    %1419 = vmatprep.subr.mxu0 0.0
    %1420 = vmatpush1.msra.mxu0 0.0
    %1421 = vmatprep.subr.mxu0 0.0
    %1422 = vmatpush1.msra.mxu0 0.0
    %1423 = vmatprep.subr.mxu0 0.0
    %1424 = vmatpush1.msra.mxu0 0.0
    %1425 = vmatprep.subr.mxu0 0.0
    %1426 = vmatpush1.msra.mxu0 0.0
    %1427 = vmatprep.subr.mxu0 0.0
    %1428 = vmatpush1.msra.mxu0 0.0
    %1429 = vmatprep.subr.mxu0 0.0
    %1430 = vmatpush1.msra.mxu0 0.0
    %1431 = vmatprep.subr.mxu0 0.0
    %1432 = vmatpush1.msra.mxu0 0.0
    %1433 = vmatprep.subr.mxu0 0.0
    %1434 = vmatpush1.msra.mxu0 0.0
    %1435 = vmatprep.subr.mxu0 0.0
    %1436 = vmatpush1.msra.mxu0 0.0
    %1437 = vmatprep.subr.mxu0 0.0
    %1438 = vmatpush1.msra.mxu0 0.0
    %1439 = vmatprep.subr.mxu0 0.0
    %1440 = vmatpush1.msra.mxu0 0.0
    %1441 = vmatprep.subr.mxu0 0.0
    %1442 = vmatpush1.msra.mxu0 0.0
    %1443 = vmatprep.subr.mxu0 0.0
    %1444 = vmatpush1.msra.mxu0 0.0
    %1445 = vmatprep.mubr.f32.mxu0 0.0
    %1446 = vmatmul.mubr.f32.gmra.mrb[0].mxu0 %v1373
    %v1447 = vpop.f32.mrb[0].mxu0
    %v1448 = vadd.f32 0.0, %v1447
    %v1449 = vpop.f32.mrb[0].mxu0
    %v1450 = vadd.f32 0.0, %v1449
    %1451 = vdwg.mxu0
    %1452 = vmatprep.subr.mxu0 %v462
    %1453 = vmatpush1.msra.mxu0 %v461
    %1454 = vmatprep.subr.mxu0 %v466
    %1455 = vmatpush1.msra.mxu0 %v465
    %1456 = vmatprep.subr.mxu0 %v470
    %1457 = vmatpush1.msra.mxu0 %v469
    %1458 = vmatprep.subr.mxu0 %v474
    %1459 = vmatpush1.msra.mxu0 %v473
    %1460 = vmatprep.subr.mxu0 %v478
    %1461 = vmatpush1.msra.mxu0 %v477
    %1462 = vmatprep.subr.mxu0 %v482
    %1463 = vmatpush1.msra.mxu0 %v481
    %1464 = vmatprep.subr.mxu0 %v486
    %1465 = vmatpush1.msra.mxu0 %v485
    %1466 = vmatprep.subr.mxu0 %v490
    %1467 = vmatpush1.msra.mxu0 %v489
    %1468 = vmatprep.subr.mxu0 %v494
    %1469 = vmatpush1.msra.mxu0 %v493
    %1470 = vmatprep.subr.mxu0 %v498
    %1471 = vmatpush1.msra.mxu0 %v497
    %1472 = vmatprep.subr.mxu0 %v502
    %1473 = vmatpush1.msra.mxu0 %v501
    %1474 = vmatprep.subr.mxu0 %v506
    %1475 = vmatpush1.msra.mxu0 %v505
    %1476 = vmatprep.subr.mxu0 %v510
    %1477 = vmatpush1.msra.mxu0 %v509
    %1478 = vmatprep.subr.mxu0 %v514
    %1479 = vmatpush1.msra.mxu0 %v513
    %1480 = vmatprep.subr.mxu0 %v518
    %1481 = vmatpush1.msra.mxu0 %v517
    %1482 = vmatprep.subr.mxu0 %v522
    %1483 = vmatpush1.msra.mxu0 %v521
    %1484 = vmatprep.subr.mxu0 0.0
    %1485 = vmatpush1.msra.mxu0 0.0
    %1486 = vmatprep.subr.mxu0 0.0
    %1487 = vmatpush1.msra.mxu0 0.0
    %1488 = vmatprep.subr.mxu0 0.0
    %1489 = vmatpush1.msra.mxu0 0.0
    %1490 = vmatprep.subr.mxu0 0.0
    %1491 = vmatpush1.msra.mxu0 0.0
    %1492 = vmatprep.subr.mxu0 0.0
    %1493 = vmatpush1.msra.mxu0 0.0
    %1494 = vmatprep.subr.mxu0 0.0
    %1495 = vmatpush1.msra.mxu0 0.0
    %1496 = vmatprep.subr.mxu0 0.0
    %1497 = vmatpush1.msra.mxu0 0.0
    %1498 = vmatprep.subr.mxu0 0.0
    %1499 = vmatpush1.msra.mxu0 0.0
    %1500 = vmatprep.subr.mxu0 0.0
    %1501 = vmatpush1.msra.mxu0 0.0
    %1502 = vmatprep.subr.mxu0 0.0
    %1503 = vmatpush1.msra.mxu0 0.0
    %1504 = vmatprep.subr.mxu0 0.0
    %1505 = vmatpush1.msra.mxu0 0.0
    %1506 = vmatprep.subr.mxu0 0.0
    %1507 = vmatpush1.msra.mxu0 0.0
    %1508 = vmatprep.subr.mxu0 0.0
    %1509 = vmatpush1.msra.mxu0 0.0
    %1510 = vmatprep.subr.mxu0 0.0
    %1511 = vmatpush1.msra.mxu0 0.0
    %1512 = vmatprep.subr.mxu0 0.0
    %1513 = vmatpush1.msra.mxu0 0.0
    %1514 = vmatprep.subr.mxu0 0.0
    %1515 = vmatpush1.msra.mxu0 0.0
    %1516 = vmatprep.mubr.f32.mxu0 0.0
    %1517 = vmatmul.mubr.f32.gmra.mrb[0].mxu0 %v1373
    %v1518 = vpop.f32.mrb[0].mxu0
    %v1519 = vadd.f32 0.0, %v1518
    %v1520 = vpop.f32.mrb[0].mxu0
    %v1521 = vadd.f32 0.0, %v1520
    %1522 = vdwg.mxu0
    %v1523 = vadd.f32 %v1377, %v1448
    %v1524 = vadd.f32 %v1378, %v1450
    %v1525 = vadd.f32 %v1379, %v1519
    %v1526 = vadd.f32 %v1380, %v1521
    %v1527 = vmul.f32 %v1523, 0.5
    %v1528 = vtanh.pop %v1527
    %v1529 = vmul.f32 %v1528, 0.5
    %v1530 = vadd.f32 %v1529, 0.5
    %v1531 = vmul.f32 %v1524, 0.5
    %v1532 = vtanh.pop %v1531
    %v1533 = vmul.f32 %v1532, 0.5
    %v1534 = vadd.f32 %v1533, 0.5
    %v1535 = vtanh.pop %v1525
    %v1536 = vmul.f32 %v1526, 0.5
    %v1537 = vtanh.pop %v1536
    %v1538 = vmul.f32 %v1537, 0.5
    %v1539 = vadd.f32 %v1538, 0.5
    %v1540 = vmul.f32 %v1534, %v1371
    %v1541 = vmul.f32 %v1530, %v1535
    %v1542 = vadd.f32 %v1540, %v1541
    %v1543 = vtanh.pop %v1542
    %v1544 = vmul.f32 %v1539, %v1543
    %s1545 = scalar_lea.vmem [#allocation3], 40
    %1546 = vst [vmem:[%s1545] sm:$0xff] %v1544
    %s1547 = scalar_lea.vmem [#allocation2], 192
    %v1548 = vld [vmem:[%s1547] sm:$0xff]
    %v1549 = vld [vmem:[%s1547 + $0x8] sm:$0xff]
    %v1550 = vld [vmem:[%s1547 + $0x10] sm:$0xff]
    %v1551 = vld [vmem:[%s1547 + $0x18] sm:$0xff]
    %1552 = vmatprep.subr.mxu0 %v460
    %1553 = vmatpush1.msra.mxu0 %v459
    %1554 = vmatprep.subr.mxu0 %v464
    %1555 = vmatpush1.msra.mxu0 %v463
    %1556 = vmatprep.subr.mxu0 %v468
    %1557 = vmatpush1.msra.mxu0 %v467
    %1558 = vmatprep.subr.mxu0 %v472
    %1559 = vmatpush1.msra.mxu0 %v471
    %1560 = vmatprep.subr.mxu0 %v476
    %1561 = vmatpush1.msra.mxu0 %v475
    %1562 = vmatprep.subr.mxu0 %v480
    %1563 = vmatpush1.msra.mxu0 %v479
    %1564 = vmatprep.subr.mxu0 %v484
    %1565 = vmatpush1.msra.mxu0 %v483
    %1566 = vmatprep.subr.mxu0 %v488
    %1567 = vmatpush1.msra.mxu0 %v487
    %1568 = vmatprep.subr.mxu0 %v492
    %1569 = vmatpush1.msra.mxu0 %v491
    %1570 = vmatprep.subr.mxu0 %v496
    %1571 = vmatpush1.msra.mxu0 %v495
    %1572 = vmatprep.subr.mxu0 %v500
    %1573 = vmatpush1.msra.mxu0 %v499
    %1574 = vmatprep.subr.mxu0 %v504
    %1575 = vmatpush1.msra.mxu0 %v503
    %1576 = vmatprep.subr.mxu0 %v508
    %1577 = vmatpush1.msra.mxu0 %v507
    %1578 = vmatprep.subr.mxu0 %v512
    %1579 = vmatpush1.msra.mxu0 %v511
    %1580 = vmatprep.subr.mxu0 %v516
    %1581 = vmatpush1.msra.mxu0 %v515
    %1582 = vmatprep.subr.mxu0 %v520
    %1583 = vmatpush1.msra.mxu0 %v519
    %1584 = vmatprep.subr.mxu0 0.0
    %1585 = vmatpush1.msra.mxu0 0.0
    %1586 = vmatprep.subr.mxu0 0.0
    %1587 = vmatpush1.msra.mxu0 0.0
    %1588 = vmatprep.subr.mxu0 0.0
    %1589 = vmatpush1.msra.mxu0 0.0
    %1590 = vmatprep.subr.mxu0 0.0
    %1591 = vmatpush1.msra.mxu0 0.0
    %1592 = vmatprep.subr.mxu0 0.0
    %1593 = vmatpush1.msra.mxu0 0.0
    %1594 = vmatprep.subr.mxu0 0.0
    %1595 = vmatpush1.msra.mxu0 0.0
    %1596 = vmatprep.subr.mxu0 0.0
    %1597 = vmatpush1.msra.mxu0 0.0
    %1598 = vmatprep.subr.mxu0 0.0
    %1599 = vmatpush1.msra.mxu0 0.0
    %1600 = vmatprep.subr.mxu0 0.0
    %1601 = vmatpush1.msra.mxu0 0.0
    %1602 = vmatprep.subr.mxu0 0.0
    %1603 = vmatpush1.msra.mxu0 0.0
    %1604 = vmatprep.subr.mxu0 0.0
    %1605 = vmatpush1.msra.mxu0 0.0
    %1606 = vmatprep.subr.mxu0 0.0
    %1607 = vmatpush1.msra.mxu0 0.0
    %1608 = vmatprep.subr.mxu0 0.0
    %1609 = vmatpush1.msra.mxu0 0.0
    %1610 = vmatprep.subr.mxu0 0.0
    %1611 = vmatpush1.msra.mxu0 0.0
    %1612 = vmatprep.subr.mxu0 0.0
    %1613 = vmatpush1.msra.mxu0 0.0
    %1614 = vmatprep.subr.mxu0 0.0
    %1615 = vmatpush1.msra.mxu0 0.0
    %1616 = vmatprep.mubr.f32.mxu0 0.0
    %1617 = vmatmul.mubr.f32.gmra.mrb[0].mxu0 %v1544
    %v1618 = vpop.f32.mrb[0].mxu0
    %v1619 = vadd.f32 0.0, %v1618
    %v1620 = vpop.f32.mrb[0].mxu0
    %v1621 = vadd.f32 0.0, %v1620
    %1622 = vdwg.mxu0
    %1623 = vmatprep.subr.mxu0 %v462
    %1624 = vmatpush1.msra.mxu0 %v461
    %1625 = vmatprep.subr.mxu0 %v466
    %1626 = vmatpush1.msra.mxu0 %v465
    %1627 = vmatprep.subr.mxu0 %v470
    %1628 = vmatpush1.msra.mxu0 %v469
    %1629 = vmatprep.subr.mxu0 %v474
    %1630 = vmatpush1.msra.mxu0 %v473
    %1631 = vmatprep.subr.mxu0 %v478
    %1632 = vmatpush1.msra.mxu0 %v477
    %1633 = vmatprep.subr.mxu0 %v482
    %1634 = vmatpush1.msra.mxu0 %v481
    %1635 = vmatprep.subr.mxu0 %v486
    %1636 = vmatpush1.msra.mxu0 %v485
    %1637 = vmatprep.subr.mxu0 %v490
    %1638 = vmatpush1.msra.mxu0 %v489
    %1639 = vmatprep.subr.mxu0 %v494
    %1640 = vmatpush1.msra.mxu0 %v493
    %1641 = vmatprep.subr.mxu0 %v498
    %1642 = vmatpush1.msra.mxu0 %v497
    %1643 = vmatprep.subr.mxu0 %v502
    %1644 = vmatpush1.msra.mxu0 %v501
    %1645 = vmatprep.subr.mxu0 %v506
    %1646 = vmatpush1.msra.mxu0 %v505
    %1647 = vmatprep.subr.mxu0 %v510
    %1648 = vmatpush1.msra.mxu0 %v509
    %1649 = vmatprep.subr.mxu0 %v514
    %1650 = vmatpush1.msra.mxu0 %v513
    %1651 = vmatprep.subr.mxu0 %v518
    %1652 = vmatpush1.msra.mxu0 %v517
    %1653 = vmatprep.subr.mxu0 %v522
    %1654 = vmatpush1.msra.mxu0 %v521
    %1655 = vmatprep.subr.mxu0 0.0
    %1656 = vmatpush1.msra.mxu0 0.0
    %1657 = vmatprep.subr.mxu0 0.0
    %1658 = vmatpush1.msra.mxu0 0.0
    %1659 = vmatprep.subr.mxu0 0.0
    %1660 = vmatpush1.msra.mxu0 0.0
    %1661 = vmatprep.subr.mxu0 0.0
    %1662 = vmatpush1.msra.mxu0 0.0
    %1663 = vmatprep.subr.mxu0 0.0
    %1664 = vmatpush1.msra.mxu0 0.0
    %1665 = vmatprep.subr.mxu0 0.0
    %1666 = vmatpush1.msra.mxu0 0.0
    %1667 = vmatprep.subr.mxu0 0.0
    %1668 = vmatpush1.msra.mxu0 0.0
    %1669 = vmatprep.subr.mxu0 0.0
    %1670 = vmatpush1.msra.mxu0 0.0
    %1671 = vmatprep.subr.mxu0 0.0
    %1672 = vmatpush1.msra.mxu0 0.0
    %1673 = vmatprep.subr.mxu0 0.0
    %1674 = vmatpush1.msra.mxu0 0.0
    %1675 = vmatprep.subr.mxu0 0.0
    %1676 = vmatpush1.msra.mxu0 0.0
    %1677 = vmatprep.subr.mxu0 0.0
    %1678 = vmatpush1.msra.mxu0 0.0
    %1679 = vmatprep.subr.mxu0 0.0
    %1680 = vmatpush1.msra.mxu0 0.0
    %1681 = vmatprep.subr.mxu0 0.0
    %1682 = vmatpush1.msra.mxu0 0.0
    %1683 = vmatprep.subr.mxu0 0.0
    %1684 = vmatpush1.msra.mxu0 0.0
    %1685 = vmatprep.subr.mxu0 0.0
    %1686 = vmatpush1.msra.mxu0 0.0
    %1687 = vmatprep.mubr.f32.mxu0 0.0
    %1688 = vmatmul.mubr.f32.gmra.mrb[0].mxu0 %v1544
    %v1689 = vpop.f32.mrb[0].mxu0
    %v1690 = vadd.f32 0.0, %v1689
    %v1691 = vpop.f32.mrb[0].mxu0
    %v1692 = vadd.f32 0.0, %v1691
    %1693 = vdwg.mxu0
    %v1694 = vadd.f32 %v1548, %v1619
    %v1695 = vadd.f32 %v1549, %v1621
    %v1696 = vadd.f32 %v1550, %v1690
    %v1697 = vadd.f32 %v1551, %v1692
    %v1698 = vmul.f32 %v1694, 0.5
    %v1699 = vtanh.pop %v1698
    %v1700 = vmul.f32 %v1699, 0.5
    %v1701 = vadd.f32 %v1700, 0.5
    %v1702 = vmul.f32 %v1695, 0.5
    %v1703 = vtanh.pop %v1702
    %v1704 = vmul.f32 %v1703, 0.5
    %v1705 = vadd.f32 %v1704, 0.5
    %v1706 = vtanh.pop %v1696
    %v1707 = vmul.f32 %v1697, 0.5
    %v1708 = vtanh.pop %v1707
    %v1709 = vmul.f32 %v1708, 0.5
    %v1710 = vadd.f32 %v1709, 0.5
    %v1711 = vmul.f32 %v1705, %v1542
    %v1712 = vmul.f32 %v1701, %v1706
    %v1713 = vadd.f32 %v1711, %v1712
    %v1714 = vtanh.pop %v1713
    %v1715 = vmul.f32 %v1710, %v1714
    %s1716 = scalar_lea.vmem [#allocation3], 48
    %1717 = vst [vmem:[%s1716] sm:$0xff] %v1715
    %s1718 = scalar_lea.vmem [#allocation2], 224
    %v1719 = vld [vmem:[%s1718] sm:$0xff]
    %v1720 = vld [vmem:[%s1718 + $0x8] sm:$0xff]
    %v1721 = vld [vmem:[%s1718 + $0x10] sm:$0xff]
    %v1722 = vld [vmem:[%s1718 + $0x18] sm:$0xff]
    %1723 = vmatprep.subr.mxu0 %v460
    %1724 = vmatpush1.msra.mxu0 %v459
    %1725 = vmatprep.subr.mxu0 %v464
    %1726 = vmatpush1.msra.mxu0 %v463
    %1727 = vmatprep.subr.mxu0 %v468
    %1728 = vmatpush1.msra.mxu0 %v467
    %1729 = vmatprep.subr.mxu0 %v472
    %1730 = vmatpush1.msra.mxu0 %v471
    %1731 = vmatprep.subr.mxu0 %v476
    %1732 = vmatpush1.msra.mxu0 %v475
    %1733 = vmatprep.subr.mxu0 %v480
    %1734 = vmatpush1.msra.mxu0 %v479
    %1735 = vmatprep.subr.mxu0 %v484
    %1736 = vmatpush1.msra.mxu0 %v483
    %1737 = vmatprep.subr.mxu0 %v488
    %1738 = vmatpush1.msra.mxu0 %v487
    %1739 = vmatprep.subr.mxu0 %v492
    %1740 = vmatpush1.msra.mxu0 %v491
    %1741 = vmatprep.subr.mxu0 %v496
    %1742 = vmatpush1.msra.mxu0 %v495
    %1743 = vmatprep.subr.mxu0 %v500
    %1744 = vmatpush1.msra.mxu0 %v499
    %1745 = vmatprep.subr.mxu0 %v504
    %1746 = vmatpush1.msra.mxu0 %v503
    %1747 = vmatprep.subr.mxu0 %v508
    %1748 = vmatpush1.msra.mxu0 %v507
    %1749 = vmatprep.subr.mxu0 %v512
    %1750 = vmatpush1.msra.mxu0 %v511
    %1751 = vmatprep.subr.mxu0 %v516
    %1752 = vmatpush1.msra.mxu0 %v515
    %1753 = vmatprep.subr.mxu0 %v520
    %1754 = vmatpush1.msra.mxu0 %v519
    %1755 = vmatprep.subr.mxu0 0.0
    %1756 = vmatpush1.msra.mxu0 0.0
    %1757 = vmatprep.subr.mxu0 0.0
    %1758 = vmatpush1.msra.mxu0 0.0
    %1759 = vmatprep.subr.mxu0 0.0
    %1760 = vmatpush1.msra.mxu0 0.0
    %1761 = vmatprep.subr.mxu0 0.0
    %1762 = vmatpush1.msra.mxu0 0.0
    %1763 = vmatprep.subr.mxu0 0.0
    %1764 = vmatpush1.msra.mxu0 0.0
    %1765 = vmatprep.subr.mxu0 0.0
    %1766 = vmatpush1.msra.mxu0 0.0
    %1767 = vmatprep.subr.mxu0 0.0
    %1768 = vmatpush1.msra.mxu0 0.0
    %1769 = vmatprep.subr.mxu0 0.0
    %1770 = vmatpush1.msra.mxu0 0.0
    %1771 = vmatprep.subr.mxu0 0.0
    %1772 = vmatpush1.msra.mxu0 0.0
    %1773 = vmatprep.subr.mxu0 0.0
    %1774 = vmatpush1.msra.mxu0 0.0
    %1775 = vmatprep.subr.mxu0 0.0
    %1776 = vmatpush1.msra.mxu0 0.0
    %1777 = vmatprep.subr.mxu0 0.0
    %1778 = vmatpush1.msra.mxu0 0.0
    %1779 = vmatprep.subr.mxu0 0.0
    %1780 = vmatpush1.msra.mxu0 0.0
    %1781 = vmatprep.subr.mxu0 0.0
    %1782 = vmatpush1.msra.mxu0 0.0
    %1783 = vmatprep.subr.mxu0 0.0
    %1784 = vmatpush1.msra.mxu0 0.0
    %1785 = vmatprep.subr.mxu0 0.0
    %1786 = vmatpush1.msra.mxu0 0.0
    %1787 = vmatprep.mubr.f32.mxu0 0.0
    %1788 = vmatmul.mubr.f32.gmra.mrb[0].mxu0 %v1715
    %v1789 = vpop.f32.mrb[0].mxu0
    %v1790 = vadd.f32 0.0, %v1789
    %v1791 = vpop.f32.mrb[0].mxu0
    %v1792 = vadd.f32 0.0, %v1791
    %1793 = vdwg.mxu0
    %1794 = vmatprep.subr.mxu0 %v462
    %1795 = vmatpush1.msra.mxu0 %v461
    %1796 = vmatprep.subr.mxu0 %v466
    %1797 = vmatpush1.msra.mxu0 %v465
    %1798 = vmatprep.subr.mxu0 %v470
    %1799 = vmatpush1.msra.mxu0 %v469
    %1800 = vmatprep.subr.mxu0 %v474
    %1801 = vmatpush1.msra.mxu0 %v473
    %1802 = vmatprep.subr.mxu0 %v478
    %1803 = vmatpush1.msra.mxu0 %v477
    %1804 = vmatprep.subr.mxu0 %v482
    %1805 = vmatpush1.msra.mxu0 %v481
    %1806 = vmatprep.subr.mxu0 %v486
    %1807 = vmatpush1.msra.mxu0 %v485
    %1808 = vmatprep.subr.mxu0 %v490
    %1809 = vmatpush1.msra.mxu0 %v489
    %1810 = vmatprep.subr.mxu0 %v494
    %1811 = vmatpush1.msra.mxu0 %v493
    %1812 = vmatprep.subr.mxu0 %v498
    %1813 = vmatpush1.msra.mxu0 %v497
    %1814 = vmatprep.subr.mxu0 %v502
    %1815 = vmatpush1.msra.mxu0 %v501
    %1816 = vmatprep.subr.mxu0 %v506
    %1817 = vmatpush1.msra.mxu0 %v505
    %1818 = vmatprep.subr.mxu0 %v510
    %1819 = vmatpush1.msra.mxu0 %v509
    %1820 = vmatprep.subr.mxu0 %v514
    %1821 = vmatpush1.msra.mxu0 %v513
    %1822 = vmatprep.subr.mxu0 %v518
    %1823 = vmatpush1.msra.mxu0 %v517
    %1824 = vmatprep.subr.mxu0 %v522
    %1825 = vmatpush1.msra.mxu0 %v521
    %1826 = vmatprep.subr.mxu0 0.0
    %1827 = vmatpush1.msra.mxu0 0.0
    %1828 = vmatprep.subr.mxu0 0.0
    %1829 = vmatpush1.msra.mxu0 0.0
    %1830 = vmatprep.subr.mxu0 0.0
    %1831 = vmatpush1.msra.mxu0 0.0
    %1832 = vmatprep.subr.mxu0 0.0
    %1833 = vmatpush1.msra.mxu0 0.0
    %1834 = vmatprep.subr.mxu0 0.0
    %1835 = vmatpush1.msra.mxu0 0.0
    %1836 = vmatprep.subr.mxu0 0.0
    %1837 = vmatpush1.msra.mxu0 0.0
    %1838 = vmatprep.subr.mxu0 0.0
    %1839 = vmatpush1.msra.mxu0 0.0
    %1840 = vmatprep.subr.mxu0 0.0
    %1841 = vmatpush1.msra.mxu0 0.0
    %1842 = vmatprep.subr.mxu0 0.0
    %1843 = vmatpush1.msra.mxu0 0.0
    %1844 = vmatprep.subr.mxu0 0.0
    %1845 = vmatpush1.msra.mxu0 0.0
    %1846 = vmatprep.subr.mxu0 0.0
    %1847 = vmatpush1.msra.mxu0 0.0
    %1848 = vmatprep.subr.mxu0 0.0
    %1849 = vmatpush1.msra.mxu0 0.0
    %1850 = vmatprep.subr.mxu0 0.0
    %1851 = vmatpush1.msra.mxu0 0.0
    %1852 = vmatprep.subr.mxu0 0.0
    %1853 = vmatpush1.msra.mxu0 0.0
    %1854 = vmatprep.subr.mxu0 0.0
    %1855 = vmatpush1.msra.mxu0 0.0
    %1856 = vmatprep.subr.mxu0 0.0
    %1857 = vmatpush1.msra.mxu0 0.0
    %1858 = vmatprep.mubr.f32.mxu0 0.0
    %1859 = vmatmul.mubr.f32.gmra.mrb[0].mxu0 %v1715
    %v1860 = vpop.f32.mrb[0].mxu0
    %v1861 = vadd.f32 0.0, %v1860
    %v1862 = vpop.f32.mrb[0].mxu0
    %v1863 = vadd.f32 0.0, %v1862
    %1864 = vdwg.mxu0
    %v1865 = vadd.f32 %v1719, %v1790
    %v1866 = vadd.f32 %v1720, %v1792
    %v1867 = vadd.f32 %v1721, %v1861
    %v1868 = vadd.f32 %v1722, %v1863
    %v1869 = vmul.f32 %v1865, 0.5
    %v1870 = vtanh.pop %v1869
    %v1871 = vmul.f32 %v1870, 0.5
    %v1872 = vadd.f32 %v1871, 0.5
    %v1873 = vmul.f32 %v1866, 0.5
    %v1874 = vtanh.pop %v1873
    %v1875 = vmul.f32 %v1874, 0.5
    %v1876 = vadd.f32 %v1875, 0.5
    %v1877 = vtanh.pop %v1867
    %v1878 = vmul.f32 %v1868, 0.5
    %v1879 = vtanh.pop %v1878
    %v1880 = vmul.f32 %v1879, 0.5
    %v1881 = vadd.f32 %v1880, 0.5
    %v1882 = vmul.f32 %v1876, %v1713
    %v1883 = vmul.f32 %v1872, %v1877
    %v1884 = vadd.f32 %v1882, %v1883
    %v1885 = vtanh.pop %v1884
    %v1886 = vmul.f32 %v1881, %v1885
    %s1887 = scalar_lea.vmem [#allocation3], 56
    %1888 = vst [vmem:[%s1887] sm:$0xff] %v1886
    %v1889 = vld [vmem:[#allocation3] sm:$0xff]
    %v1890 = vld [vmem:[#allocation3 + $0x8] sm:$0xff]
    %v1891 = vld [vmem:[#allocation3 + $0x10] sm:$0xff]
    %v1892 = vld [vmem:[#allocation3 + $0x18] sm:$0xff]
    %v1893 = vld [vmem:[#allocation3 + $0x20] sm:$0xff]
    %v1894 = vld [vmem:[#allocation3 + $0x28] sm:$0xff]
    %v1895 = vld [vmem:[#allocation3 + $0x30] sm:$0xff]
    %v1896 = vld [vmem:[#allocation3 + $0x38] sm:$0xff]
    %v1897 = vld [vmem:[#allocation8] sm:$0xff]
    %v1898 = vld [vmem:[#allocation8 + $0x8] sm:$0xff]
    %v1899 = vld [vmem:[#allocation8 + $0x10] sm:$0xff]
    %v1900 = vld [vmem:[#allocation8 + $0x18] sm:$0xff]
    %v1901 = vld [vmem:[#allocation8 + $0x20] sm:$0xff]
    %v1902 = vld [vmem:[#allocation8 + $0x28] sm:$0xff]
    %v1903 = vld [vmem:[#allocation8 + $0x30] sm:$0xff]
    %v1904 = vld [vmem:[#allocation8 + $0x38] sm:$0xff]
    %v1905 = vld [vmem:[%s6] sm:$0xff]
    %v1906 = vld [vmem:[%s6 + $0x8] sm:$0xff]
    %v1907 = vld [vmem:[%s7] sm:$0x1]
    %v1909 = vlaneseq
    %v1910 = vshrl.u32 %v1909, 7
    %v1911 = vsub.s32 0, %v1910
    %v1912 = vrot.slane %v1907, %v1911
    %vm1914 = vcmask 130048
    %v1916 = vsel %vm1914, %v1897, 0
    %v1919 = vsel %vm1914, %v1898, 0
    %v1922 = vsel %vm1914, %v1899, 0
    %v1925 = vsel %vm1914, %v1900, 0
    %v1928 = vsel %vm1914, %v1901, 0
    %v1931 = vsel %vm1914, %v1902, 0
    %v1934 = vsel %vm1914, %v1903, 0
    %v1937 = vsel %vm1914, %v1904, 0
    %1939 = vmatprep.subr.mxu0 0.0
    %1940 = vmatpush1.msra.mxu0 %v1905
    %1941 = vmatprep.subr.mxu0 0.0
    %1942 = vmatpush1.msra.mxu0 %v1906
    %1943 = vmatprep.subr.mxu0 0.0
    %1944 = vmatpush1.msra.mxu0 0.0
    %1945 = vmatprep.subr.mxu0 0.0
    %1946 = vmatpush1.msra.mxu0 0.0
    %1947 = vmatprep.subr.mxu0 0.0
    %1948 = vmatpush1.msra.mxu0 0.0
    %1949 = vmatprep.subr.mxu0 0.0
    %1950 = vmatpush1.msra.mxu0 0.0
    %1951 = vmatprep.subr.mxu0 0.0
    %1952 = vmatpush1.msra.mxu0 0.0
    %1953 = vmatprep.subr.mxu0 0.0
    %1954 = vmatpush1.msra.mxu0 0.0
    %1955 = vmatprep.subr.mxu0 0.0
    %1956 = vmatpush1.msra.mxu0 0.0
    %1957 = vmatprep.subr.mxu0 0.0
    %1958 = vmatpush1.msra.mxu0 0.0
    %1959 = vmatprep.subr.mxu0 0.0
    %1960 = vmatpush1.msra.mxu0 0.0
    %1961 = vmatprep.subr.mxu0 0.0
    %1962 = vmatpush1.msra.mxu0 0.0
    %1963 = vmatprep.subr.mxu0 0.0
    %1964 = vmatpush1.msra.mxu0 0.0
    %1965 = vmatprep.subr.mxu0 0.0
    %1966 = vmatpush1.msra.mxu0 0.0
    %1967 = vmatprep.subr.mxu0 0.0
    %1968 = vmatpush1.msra.mxu0 0.0
    %1969 = vmatprep.subr.mxu0 0.0
    %1970 = vmatpush1.msra.mxu0 0.0
    %1971 = vmatprep.subr.mxu0 0.0
    %1972 = vmatpush1.msra.mxu0 0.0
    %1973 = vmatprep.subr.mxu0 0.0
    %1974 = vmatpush1.msra.mxu0 0.0
    %1975 = vmatprep.subr.mxu0 0.0
    %1976 = vmatpush1.msra.mxu0 0.0
    %1977 = vmatprep.subr.mxu0 0.0
    %1978 = vmatpush1.msra.mxu0 0.0
    %1979 = vmatprep.subr.mxu0 0.0
    %1980 = vmatpush1.msra.mxu0 0.0
    %1981 = vmatprep.subr.mxu0 0.0
    %1982 = vmatpush1.msra.mxu0 0.0
    %1983 = vmatprep.subr.mxu0 0.0
    %1984 = vmatpush1.msra.mxu0 0.0
    %1985 = vmatprep.subr.mxu0 0.0
    %1986 = vmatpush1.msra.mxu0 0.0
    %1987 = vmatprep.subr.mxu0 0.0
    %1988 = vmatpush1.msra.mxu0 0.0
    %1989 = vmatprep.subr.mxu0 0.0
    %1990 = vmatpush1.msra.mxu0 0.0
    %1991 = vmatprep.subr.mxu0 0.0
    %1992 = vmatpush1.msra.mxu0 0.0
    %1993 = vmatprep.subr.mxu0 0.0
    %1994 = vmatpush1.msra.mxu0 0.0
    %1995 = vmatprep.subr.mxu0 0.0
    %1996 = vmatpush1.msra.mxu0 0.0
    %1997 = vmatprep.subr.mxu0 0.0
    %1998 = vmatpush1.msra.mxu0 0.0
    %1999 = vmatprep.subr.mxu0 0.0
    %2000 = vmatpush1.msra.mxu0 0.0
    %2001 = vmatprep.subr.mxu0 0.0
    %2002 = vmatpush1.msra.mxu0 0.0
    %2003 = vmatprep.mubr.f32.mxu0 0.0
    %2004 = vmatmul.mubr.f32.gmra.mrb[0].mxu0 %v1916
    %v2005 = vpop.f32.mrb[0].mxu0
    %v2006 = vadd.f32 %v1912, %v2005
    %v2007 = vpop.f32.mrb[0].mxu0
    %2008 = vmatprep.mubr.f32.mxu0 0.0
    %2009 = vmatmul.mubr.f32.gmra.mrb[0].mxu0 %v1919
    %v2010 = vpop.f32.mrb[0].mxu0
    %v2011 = vadd.f32 %v1912, %v2010
    %v2012 = vpop.f32.mrb[0].mxu0
    %2013 = vmatprep.mubr.f32.mxu0 0.0
    %2014 = vmatmul.mubr.f32.gmra.mrb[0].mxu0 %v1922
    %v2015 = vpop.f32.mrb[0].mxu0
    %v2016 = vadd.f32 %v1912, %v2015
    %v2017 = vpop.f32.mrb[0].mxu0
    %2018 = vmatprep.mubr.f32.mxu0 0.0
    %2019 = vmatmul.mubr.f32.gmra.mrb[0].mxu0 %v1925
    %v2020 = vpop.f32.mrb[0].mxu0
    %v2021 = vadd.f32 %v1912, %v2020
    %v2022 = vpop.f32.mrb[0].mxu0
    %2023 = vmatprep.mubr.f32.mxu0 0.0
    %2024 = vmatmul.mubr.f32.gmra.mrb[0].mxu0 %v1928
    %v2025 = vpop.f32.mrb[0].mxu0
    %v2026 = vadd.f32 %v1912, %v2025
    %v2027 = vpop.f32.mrb[0].mxu0
    %2028 = vmatprep.mubr.f32.mxu0 0.0
    %2029 = vmatmul.mubr.f32.gmra.mrb[0].mxu0 %v1931
    %v2030 = vpop.f32.mrb[0].mxu0
    %v2031 = vadd.f32 %v1912, %v2030
    %v2032 = vpop.f32.mrb[0].mxu0
    %2033 = vmatprep.mubr.f32.mxu0 0.0
    %2034 = vmatmul.mubr.f32.gmra.mrb[0].mxu0 %v1934
    %v2035 = vpop.f32.mrb[0].mxu0
    %v2036 = vadd.f32 %v1912, %v2035
    %v2037 = vpop.f32.mrb[0].mxu0
    %2038 = vmatprep.mubr.f32.mxu0 0.0
    %2039 = vmatmul.mubr.f32.gmra.mrb[0].mxu0 %v1937
    %v2040 = vpop.f32.mrb[0].mxu0
    %v2041 = vadd.f32 %v1912, %v2040
    %v2042 = vpop.f32.mrb[0].mxu0
    %2043 = vdwg.mxu0
    %v2044 = vld [vmem:[%s8] sm:$0xff]
    %v2045 = vld [vmem:[%s8 + $0x8] sm:$0xff]
    %v2046 = vld [vmem:[%s9] sm:$0x1]
    %v2048 = vlaneseq
    %v2049 = vshrl.u32 %v2048, 7
    %v2050 = vsub.s32 0, %v2049
    %v2051 = vrot.slane %v2046, %v2050
    %2053 = vmatprep.subr.mxu0 0.0
    %2054 = vmatpush1.msra.mxu0 %v2044
    %2055 = vmatprep.subr.mxu0 0.0
    %2056 = vmatpush1.msra.mxu0 %v2045
    %2057 = vmatprep.subr.mxu0 0.0
    %2058 = vmatpush1.msra.mxu0 0.0
    %2059 = vmatprep.subr.mxu0 0.0
    %2060 = vmatpush1.msra.mxu0 0.0
    %2061 = vmatprep.subr.mxu0 0.0
    %2062 = vmatpush1.msra.mxu0 0.0
    %2063 = vmatprep.subr.mxu0 0.0
    %2064 = vmatpush1.msra.mxu0 0.0
    %2065 = vmatprep.subr.mxu0 0.0
    %2066 = vmatpush1.msra.mxu0 0.0
    %2067 = vmatprep.subr.mxu0 0.0
    %2068 = vmatpush1.msra.mxu0 0.0
    %2069 = vmatprep.subr.mxu0 0.0
    %2070 = vmatpush1.msra.mxu0 0.0
    %2071 = vmatprep.subr.mxu0 0.0
    %2072 = vmatpush1.msra.mxu0 0.0
    %2073 = vmatprep.subr.mxu0 0.0
    %2074 = vmatpush1.msra.mxu0 0.0
    %2075 = vmatprep.subr.mxu0 0.0
    %2076 = vmatpush1.msra.mxu0 0.0
    %2077 = vmatprep.subr.mxu0 0.0
    %2078 = vmatpush1.msra.mxu0 0.0
    %2079 = vmatprep.subr.mxu0 0.0
    %2080 = vmatpush1.msra.mxu0 0.0
    %2081 = vmatprep.subr.mxu0 0.0
    %2082 = vmatpush1.msra.mxu0 0.0
    %2083 = vmatprep.subr.mxu0 0.0
    %2084 = vmatpush1.msra.mxu0 0.0
    %2085 = vmatprep.subr.mxu0 0.0
    %2086 = vmatpush1.msra.mxu0 0.0
    %2087 = vmatprep.subr.mxu0 0.0
    %2088 = vmatpush1.msra.mxu0 0.0
    %2089 = vmatprep.subr.mxu0 0.0
    %2090 = vmatpush1.msra.mxu0 0.0
    %2091 = vmatprep.subr.mxu0 0.0
    %2092 = vmatpush1.msra.mxu0 0.0
    %2093 = vmatprep.subr.mxu0 0.0
    %2094 = vmatpush1.msra.mxu0 0.0
    %2095 = vmatprep.subr.mxu0 0.0
    %2096 = vmatpush1.msra.mxu0 0.0
    %2097 = vmatprep.subr.mxu0 0.0
    %2098 = vmatpush1.msra.mxu0 0.0
    %2099 = vmatprep.subr.mxu0 0.0
    %2100 = vmatpush1.msra.mxu0 0.0
    %2101 = vmatprep.subr.mxu0 0.0
    %2102 = vmatpush1.msra.mxu0 0.0
    %2103 = vmatprep.subr.mxu0 0.0
    %2104 = vmatpush1.msra.mxu0 0.0
    %2105 = vmatprep.subr.mxu0 0.0
    %2106 = vmatpush1.msra.mxu0 0.0
    %2107 = vmatprep.subr.mxu0 0.0
    %2108 = vmatpush1.msra.mxu0 0.0
    %2109 = vmatprep.subr.mxu0 0.0
    %2110 = vmatpush1.msra.mxu0 0.0
    %2111 = vmatprep.subr.mxu0 0.0
    %2112 = vmatpush1.msra.mxu0 0.0
    %2113 = vmatprep.subr.mxu0 0.0
    %2114 = vmatpush1.msra.mxu0 0.0
    %2115 = vmatprep.subr.mxu0 0.0
    %2116 = vmatpush1.msra.mxu0 0.0
    %2117 = vmatprep.mubr.f32.mxu0 0.0
    %2118 = vmatmul.mubr.f32.gmra.mrb[0].mxu0 %v1916
    %v2119 = vpop.f32.mrb[0].mxu0
    %v2120 = vadd.f32 %v2051, %v2119
    %v2121 = vpop.f32.mrb[0].mxu0
    %2122 = vmatprep.mubr.f32.mxu0 0.0
    %2123 = vmatmul.mubr.f32.gmra.mrb[0].mxu0 %v1919
    %v2124 = vpop.f32.mrb[0].mxu0
    %v2125 = vadd.f32 %v2051, %v2124
    %v2126 = vpop.f32.mrb[0].mxu0
    %2127 = vmatprep.mubr.f32.mxu0 0.0
    %2128 = vmatmul.mubr.f32.gmra.mrb[0].mxu0 %v1922
    %v2129 = vpop.f32.mrb[0].mxu0
    %v2130 = vadd.f32 %v2051, %v2129
    %v2131 = vpop.f32.mrb[0].mxu0
    %2132 = vmatprep.mubr.f32.mxu0 0.0
    %2133 = vmatmul.mubr.f32.gmra.mrb[0].mxu0 %v1925
    %v2134 = vpop.f32.mrb[0].mxu0
    %v2135 = vadd.f32 %v2051, %v2134
    %v2136 = vpop.f32.mrb[0].mxu0
    %2137 = vmatprep.mubr.f32.mxu0 0.0
    %2138 = vmatmul.mubr.f32.gmra.mrb[0].mxu0 %v1928
    %v2139 = vpop.f32.mrb[0].mxu0
    %v2140 = vadd.f32 %v2051, %v2139
    %v2141 = vpop.f32.mrb[0].mxu0
    %2142 = vmatprep.mubr.f32.mxu0 0.0
    %2143 = vmatmul.mubr.f32.gmra.mrb[0].mxu0 %v1931
    %v2144 = vpop.f32.mrb[0].mxu0
    %v2145 = vadd.f32 %v2051, %v2144
    %v2146 = vpop.f32.mrb[0].mxu0
    %2147 = vmatprep.mubr.f32.mxu0 0.0
    %2148 = vmatmul.mubr.f32.gmra.mrb[0].mxu0 %v1934
    %v2149 = vpop.f32.mrb[0].mxu0
    %v2150 = vadd.f32 %v2051, %v2149
    %v2151 = vpop.f32.mrb[0].mxu0
    %2152 = vmatprep.mubr.f32.mxu0 0.0
    %2153 = vmatmul.mubr.f32.gmra.mrb[0].mxu0 %v1937
    %v2154 = vpop.f32.mrb[0].mxu0
    %v2155 = vadd.f32 %v2051, %v2154
    %v2156 = vpop.f32.mrb[0].mxu0
    %2157 = vdwg.mxu0
    %v2158 = vmul.f32 %v1889, %v2006
    %v2159 = vmul.f32 %v1890, %v2011
    %v2160 = vmul.f32 %v1891, %v2016
    %v2161 = vmul.f32 %v1892, %v2021
    %v2162 = vmul.f32 %v1893, %v2026
    %v2163 = vmul.f32 %v1894, %v2031
    %v2164 = vmul.f32 %v1895, %v2036
    %v2165 = vmul.f32 %v1896, %v2041
    %v2166 = vadd.f32 %v2158, %v2120
    %v2167 = vadd.f32 %v2159, %v2125
    %v2168 = vadd.f32 %v2160, %v2130
    %v2169 = vadd.f32 %v2161, %v2135
    %v2170 = vadd.f32 %v2162, %v2140
    %v2171 = vadd.f32 %v2163, %v2145
    %v2172 = vadd.f32 %v2164, %v2150
    %v2173 = vadd.f32 %v2165, %v2155
    %v2174 = vld [vmem:[%s10] sm:$0x1]
    %v2176 = vlaneseq
    %v2177 = vshrl.u32 %v2176, 7
    %v2178 = vsub.s32 0, %v2177
    %v2179 = vrot.slane %v2174, %v2178
    %v2181 = vmul.f32 %v2166, %v2179
    %v2182 = vmul.f32 %v2167, %v2179
    %v2183 = vmul.f32 %v2168, %v2179
    %v2184 = vmul.f32 %v2169, %v2179
    %v2185 = vmul.f32 %v2170, %v2179
    %v2186 = vmul.f32 %v2171, %v2179
    %v2187 = vmul.f32 %v2172, %v2179
    %v2188 = vmul.f32 %v2173, %v2179
    %2189 = vadd.xlane.f32.xlu0 %v2181
    %v2190 = vpop.xlane.xlu0 %2189
    %2191 = vadd.xlane.f32.xlu0 %v2182
    %v2192 = vpop.xlane.xlu0 %2191
    %2193 = vadd.xlane.f32.xlu0 %v2183
    %v2194 = vpop.xlane.xlu0 %2193
    %2195 = vadd.xlane.f32.xlu0 %v2184
    %v2196 = vpop.xlane.xlu0 %2195
    %2197 = vadd.xlane.f32.xlu0 %v2185
    %v2198 = vpop.xlane.xlu0 %2197
    %2199 = vadd.xlane.f32.xlu0 %v2186
    %v2200 = vpop.xlane.xlu0 %2199
    %2201 = vadd.xlane.f32.xlu0 %v2187
    %v2202 = vpop.xlane.xlu0 %2201
    %2203 = vadd.xlane.f32.xlu0 %v2188
    %v2204 = vpop.xlane.xlu0 %2203
    %v2205 = vld [vmem:[#allocation4] sm:$0x1]
    %v2207 = vlaneseq
    %v2208 = vshrl.u32 %v2207, 7
    %v2209 = vsub.s32 0, %v2208
    %v2210 = vrot.slane %v2205, %v2209
    %v2212 = vadd.f32 %v2190, %v2210
    %v2213 = vadd.f32 %v2192, %v2210
    %v2214 = vadd.f32 %v2194, %v2210
    %v2215 = vadd.f32 %v2196, %v2210
    %v2216 = vadd.f32 %v2198, %v2210
    %v2217 = vadd.f32 %v2200, %v2210
    %v2218 = vadd.f32 %v2202, %v2210
    %v2219 = vadd.f32 %v2204, %v2210
    %v2220 = vtanh.pop %v2212
    %v2221 = vtanh.pop %v2213
    %v2222 = vtanh.pop %v2214
    %v2223 = vtanh.pop %v2215
    %v2224 = vtanh.pop %v2216
    %v2225 = vtanh.pop %v2217
    %v2226 = vtanh.pop %v2218
    %v2227 = vtanh.pop %v2219
    %vm2228 = vcmask 7168
    %v2229 = vsel %vm2228, %v2220, -inf
    %v2230 = vsel %vm2228, %v2221, -inf
    %v2231 = vsel %vm2228, %v2222, -inf
    %v2232 = vsel %vm2228, %v2223, -inf
    %v2233 = vsel %vm2228, %v2224, -inf
    %v2234 = vmax.f32 %v2229, %v2233
    %v2235 = vsel %vm2228, %v2225, -inf
    %v2236 = vmax.f32 %v2230, %v2235
    %v2237 = vsel %vm2228, %v2226, -inf
    %v2238 = vmax.f32 %v2231, %v2237
    %v2239 = vsel %vm2228, %v2227, -inf
    %v2240 = vmax.f32 %v2232, %v2239
    %v2241 = vmax.f32 %v2234, %v2236
    %v2242 = vmax.f32 %v2238, %v2240
    %v2243 = vmax.f32 %v2241, %v2242
    %v2244 = vsub.f32 %v2220, %v2243
    %v2245 = vsub.f32 %v2221, %v2243
    %v2246 = vsub.f32 %v2222, %v2243
    %v2247 = vsub.f32 %v2223, %v2243
    %v2248 = vsub.f32 %v2224, %v2243
    %v2249 = vsub.f32 %v2225, %v2243
    %v2250 = vsub.f32 %v2226, %v2243
    %v2251 = vsub.f32 %v2227, %v2243
    %v2252 = vmul.f32 %v2244, 1.442695
    %v2253 = vpow.pop %v2252
    %v2254 = vmul.f32 %v2245, 1.442695
    %v2255 = vpow.pop %v2254
    %v2256 = vmul.f32 %v2246, 1.442695
    %v2257 = vpow.pop %v2256
    %v2258 = vmul.f32 %v2247, 1.442695
    %v2259 = vpow.pop %v2258
    %v2260 = vmul.f32 %v2248, 1.442695
    %v2261 = vpow.pop %v2260
    %v2262 = vmul.f32 %v2249, 1.442695
    %v2263 = vpow.pop %v2262
    %v2264 = vmul.f32 %v2250, 1.442695
    %v2265 = vpow.pop %v2264
    %v2266 = vmul.f32 %v2251, 1.442695
    %v2267 = vpow.pop %v2266
    %v2268 = vld [vmem:[%s2] sm:$0xff]
    %vm2269 = vcmp.gt.s32.totalorder %v2268, 0
    %vm2270 = vcmp.gt.s32.totalorder %v2268, 1
    %vm2271 = vcmp.gt.s32.totalorder %v2268, 2
    %vm2272 = vcmp.gt.s32.totalorder %v2268, 3
    %vm2273 = vcmp.gt.s32.totalorder %v2268, 4
    %vm2274 = vcmp.gt.s32.totalorder %v2268, 5
    %vm2275 = vcmp.gt.s32.totalorder %v2268, 6
    %vm2276 = vcmp.gt.s32.totalorder %v2268, 7
    %v2277 = vsel %vm2269, 1, 0
    %v2278 = vsel %vm2270, 1, 0
    %v2279 = vsel %vm2271, 1, 0
    %v2280 = vsel %vm2272, 1, 0
    %v2281 = vsel %vm2273, 1, 0
    %v2282 = vsel %vm2274, 1, 0
    %v2283 = vsel %vm2275, 1, 0
    %v2284 = vsel %vm2276, 1, 0
    %v2285 = vcvt.s32.f32 %v2277
    %v2286 = vcvt.s32.f32 %v2278
    %v2287 = vcvt.s32.f32 %v2279
    %v2288 = vcvt.s32.f32 %v2280
    %v2289 = vcvt.s32.f32 %v2281
    %v2290 = vcvt.s32.f32 %v2282
    %v2291 = vcvt.s32.f32 %v2283
    %v2292 = vcvt.s32.f32 %v2284
    %v2293 = vmul.f32 %v2253, %v2285
    %v2294 = vmul.f32 %v2255, %v2286
    %v2295 = vmul.f32 %v2257, %v2287
    %v2296 = vmul.f32 %v2259, %v2288
    %v2297 = vmul.f32 %v2261, %v2289
    %v2298 = vmul.f32 %v2263, %v2290
    %v2299 = vmul.f32 %v2265, %v2291
    %v2300 = vmul.f32 %v2267, %v2292
    %v2301 = vsel %vm2228, %v2293, 0.0
    %v2302 = vsel %vm2228, %v2294, 0.0
    %v2303 = vadd.f32 %v2301, %v2302
    %v2304 = vsel %vm2228, %v2295, 0.0
    %v2305 = vadd.f32 %v2303, %v2304
    %v2306 = vsel %vm2228, %v2296, 0.0
    %v2307 = vadd.f32 %v2305, %v2306
    %v2308 = vsel %vm2228, %v2297, 0.0
    %v2309 = vadd.f32 %v2307, %v2308
    %v2310 = vsel %vm2228, %v2298, 0.0
    %v2311 = vadd.f32 %v2309, %v2310
    %v2312 = vsel %vm2228, %v2299, 0.0
    %v2313 = vadd.f32 %v2311, %v2312
    %v2314 = vsel %vm2228, %v2300, 0.0
    %v2315 = vadd.f32 %v2313, %v2314
    %v2316 = vrcp.pop %v2315
    %v2317 = vmul.f32 %v2293, %v2316
    %v2318 = vmul.f32 %v2294, %v2316
    %v2319 = vmul.f32 %v2295, %v2316
    %v2320 = vmul.f32 %v2296, %v2316
    %v2321 = vmul.f32 %v2297, %v2316
    %v2322 = vmul.f32 %v2298, %v2316
    %v2323 = vmul.f32 %v2299, %v2316
    %v2324 = vmul.f32 %v2300, %v2316
    %2326 = vset.pattern.permute.xlu0 0
    %2327 = vperm.xlu0 %2326, %v2317
    %v2328 = vpop.permute.xlu0 %2327
    %2331 = vset.pattern.permute.xlu0 0
    %2332 = vperm.xlu0 %2331, %v2318
    %v2333 = vpop.permute.xlu0 %2332
    %2336 = vset.pattern.permute.xlu0 0
    %2337 = vperm.xlu0 %2336, %v2319
    %v2338 = vpop.permute.xlu0 %2337
    %2341 = vset.pattern.permute.xlu0 0
    %2342 = vperm.xlu0 %2341, %v2320
    %v2343 = vpop.permute.xlu0 %2342
    %2346 = vset.pattern.permute.xlu0 0
    %2347 = vperm.xlu0 %2346, %v2321
    %v2348 = vpop.permute.xlu0 %2347
    %2351 = vset.pattern.permute.xlu0 0
    %2352 = vperm.xlu0 %2351, %v2322
    %v2353 = vpop.permute.xlu0 %2352
    %2356 = vset.pattern.permute.xlu0 0
    %2357 = vperm.xlu0 %2356, %v2323
    %v2358 = vpop.permute.xlu0 %2357
    %2361 = vset.pattern.permute.xlu0 0
    %2362 = vperm.xlu0 %2361, %v2324
    %v2363 = vpop.permute.xlu0 %2362
    %v2365 = vmul.f32 %v1889, %v2328
    %v2366 = vmul.f32 %v1890, %v2333
    %v2367 = vmul.f32 %v1891, %v2338
    %v2368 = vmul.f32 %v1892, %v2343
    %v2369 = vmul.f32 %v1893, %v2348
    %v2370 = vmul.f32 %v1894, %v2353
    %v2371 = vmul.f32 %v1895, %v2358
    %v2372 = vmul.f32 %v1896, %v2363
    %v2373 = vadd.f32 %v2365, %v2366
    %v2374 = vadd.f32 %v2373, %v2367
    %v2375 = vadd.f32 %v2374, %v2368
    %v2376 = vadd.f32 %v2375, %v2369
    %v2377 = vadd.f32 %v2376, %v2370
    %v2378 = vadd.f32 %v2377, %v2371
    %v2379 = vadd.f32 %v2378, %v2372
    %v2380 = vld [vmem:[#allocation14] sm:$0xff]
    %v2381 = vld [vmem:[#allocation14 + $0x8] sm:$0xff]
    %v2382 = vld [vmem:[#allocation14 + $0x10] sm:$0xff]
    %v2383 = vld [vmem:[#allocation14 + $0x18] sm:$0xff]
    %v2384 = vld [vmem:[#allocation14 + $0x20] sm:$0xff]
    %v2385 = vld [vmem:[#allocation14 + $0x28] sm:$0xff]
    %v2386 = vld [vmem:[#allocation14 + $0x30] sm:$0xff]
    %v2387 = vld [vmem:[#allocation14 + $0x38] sm:$0xff]
    %v2388 = vld [vmem:[#allocation14 + $0x40] sm:$0xff]
    %v2389 = vld [vmem:[#allocation14 + $0x48] sm:$0xff]
    %v2390 = vld [vmem:[#allocation14 + $0x50] sm:$0xff]
    %v2391 = vld [vmem:[#allocation14 + $0x58] sm:$0xff]
    %v2392 = vld [vmem:[#allocation14 + $0x60] sm:$0xff]
    %v2393 = vld [vmem:[#allocation14 + $0x68] sm:$0xff]
    %v2394 = vld [vmem:[#allocation14 + $0x70] sm:$0xff]
    %v2395 = vld [vmem:[#allocation14 + $0x78] sm:$0xff]
    %v2396 = vld [vmem:[%s13] sm:$0x1]
    %v2398 = vlaneseq
    %v2399 = vshrl.u32 %v2398, 7
    %v2400 = vsub.s32 0, %v2399
    %v2401 = vrot.slane %v2396, %v2400
    %2403 = vmatprep.subr.mxu0 0.0
    %2404 = vmatpush1.msra.mxu0 %v2380
    %2405 = vmatprep.subr.mxu0 0.0
    %2406 = vmatpush1.msra.mxu0 %v2381
    %2407 = vmatprep.subr.mxu0 0.0
    %2408 = vmatpush1.msra.mxu0 %v2382
    %2409 = vmatprep.subr.mxu0 0.0
    %2410 = vmatpush1.msra.mxu0 %v2383
    %2411 = vmatprep.subr.mxu0 0.0
    %2412 = vmatpush1.msra.mxu0 %v2384
    %2413 = vmatprep.subr.mxu0 0.0
    %2414 = vmatpush1.msra.mxu0 %v2385
    %2415 = vmatprep.subr.mxu0 0.0
    %2416 = vmatpush1.msra.mxu0 %v2386
    %2417 = vmatprep.subr.mxu0 0.0
    %2418 = vmatpush1.msra.mxu0 %v2387
    %2419 = vmatprep.subr.mxu0 0.0
    %2420 = vmatpush1.msra.mxu0 %v2388
    %2421 = vmatprep.subr.mxu0 0.0
    %2422 = vmatpush1.msra.mxu0 %v2389
    %2423 = vmatprep.subr.mxu0 0.0
    %2424 = vmatpush1.msra.mxu0 %v2390
    %2425 = vmatprep.subr.mxu0 0.0
    %2426 = vmatpush1.msra.mxu0 %v2391
    %2427 = vmatprep.subr.mxu0 0.0
    %2428 = vmatpush1.msra.mxu0 %v2392
    %2429 = vmatprep.subr.mxu0 0.0
    %2430 = vmatpush1.msra.mxu0 %v2393
    %2431 = vmatprep.subr.mxu0 0.0
    %2432 = vmatpush1.msra.mxu0 %v2394
    %2433 = vmatprep.subr.mxu0 0.0
    %2434 = vmatpush1.msra.mxu0 %v2395
    %2435 = vmatprep.subr.mxu0 0.0
    %2436 = vmatpush1.msra.mxu0 0.0
    %2437 = vmatprep.subr.mxu0 0.0
    %2438 = vmatpush1.msra.mxu0 0.0
    %2439 = vmatprep.subr.mxu0 0.0
    %2440 = vmatpush1.msra.mxu0 0.0
    %2441 = vmatprep.subr.mxu0 0.0
    %2442 = vmatpush1.msra.mxu0 0.0
    %2443 = vmatprep.subr.mxu0 0.0
    %2444 = vmatpush1.msra.mxu0 0.0
    %2445 = vmatprep.subr.mxu0 0.0
    %2446 = vmatpush1.msra.mxu0 0.0
    %2447 = vmatprep.subr.mxu0 0.0
    %2448 = vmatpush1.msra.mxu0 0.0
    %2449 = vmatprep.subr.mxu0 0.0
    %2450 = vmatpush1.msra.mxu0 0.0
    %2451 = vmatprep.subr.mxu0 0.0
    %2452 = vmatpush1.msra.mxu0 0.0
    %2453 = vmatprep.subr.mxu0 0.0
    %2454 = vmatpush1.msra.mxu0 0.0
    %2455 = vmatprep.subr.mxu0 0.0
    %2456 = vmatpush1.msra.mxu0 0.0
    %2457 = vmatprep.subr.mxu0 0.0
    %2458 = vmatpush1.msra.mxu0 0.0
    %2459 = vmatprep.subr.mxu0 0.0
    %2460 = vmatpush1.msra.mxu0 0.0
    %2461 = vmatprep.subr.mxu0 0.0
    %2462 = vmatpush1.msra.mxu0 0.0
    %2463 = vmatprep.subr.mxu0 0.0
    %2464 = vmatpush1.msra.mxu0 0.0
    %2465 = vmatprep.subr.mxu0 0.0
    %2466 = vmatpush1.msra.mxu0 0.0
    %2467 = vmatprep.mubr.f32.mxu0 0.0
    %2468 = vmatmul.mubr.f32.gmra.mrb[0].mxu0 %v2379
    %v2469 = vpop.f32.mrb[0].mxu0
    %v2470 = vadd.f32 %v2401, %v2469
    %v2471 = vpop.f32.mrb[0].mxu0
    %2472 = vdwg.mxu0
    %v2473 = vlaneseq
    %v2474 = vand.u32 %v2473, 127
    %vm2475 = vcmp.eq.s32.totalorder %v2474, 0
    %v2476 = vsel %vm2475, %v2328, 0.0
    %v2477 = vadd.f32 %v2476, 0.0
    %vm2478 = vcmp.eq.s32.totalorder %v2474, 1
    %v2479 = vsel %vm2478, %v2333, 0.0
    %v2480 = vadd.f32 %v2477, %v2479
    %vm2481 = vcmp.eq.s32.totalorder %v2474, 2
    %v2482 = vsel %vm2481, %v2338, 0.0
    %v2483 = vadd.f32 %v2480, %v2482
    %vm2484 = vcmp.eq.s32.totalorder %v2474, 3
    %v2485 = vsel %vm2484, %v2343, 0.0
    %v2486 = vadd.f32 %v2483, %v2485
    %vm2487 = vcmp.eq.s32.totalorder %v2474, 4
    %v2488 = vsel %vm2487, %v2348, 0.0
    %v2489 = vadd.f32 %v2486, %v2488
    %vm2490 = vcmp.eq.s32.totalorder %v2474, 5
    %v2491 = vsel %vm2490, %v2353, 0.0
    %v2492 = vadd.f32 %v2489, %v2491
    %vm2493 = vcmp.eq.s32.totalorder %v2474, 6
    %v2494 = vsel %vm2493, %v2358, 0.0
    %v2495 = vadd.f32 %v2492, %v2494
    %vm2496 = vcmp.eq.s32.totalorder %v2474, 7
    %v2497 = vsel %vm2496, %v2363, 0.0
    %v2498 = vadd.f32 %v2495, %v2497
    %2499 = vst [vmem:[#allocation16] sm:$0xff] %v2379
    %2500 = vst [vmem:[#allocation16 + $0x8] sm:$0xff] %v2470
    %2501 = vst [vmem:[#allocation16 + $0x10] sm:$0xff] %v2498
    // Predicated region
    $region82: #{tpu_custom_call.1} parent=1 // pred_check
      _
    $region83: #{tpu_custom_call.1} parent=1 // pred_check_branch
      %2503 = sbr.rel (0) target = $region85
    $region84: #{tpu_custom_call.1} parent=1 // pred_region
      %s2505 = ssub.s32 384, 384
      %2506 = vsyncadd [#allocation7], %s2505
      %s2508 = sshll.u32 [#allocation16], 4
      %s2509 = int_to_ptr.vmem [resolvable:$true] %s2508
      %2511 = dma.vmem_to_hbm [thread:$0]  %s2509, 384, %s14, [#allocation7]
    $region85: #{tpu_custom_call.1} parent=1 // pred_fallthru
      _
    // Predicated region
    $region86: #{tpu_custom_call.1} parent=1 // pred_check
      _
    $region87: #{tpu_custom_call.1} parent=1 // pred_check_branch
      %2513 = sbr.rel (0) target = $region89
    $region88: #{tpu_custom_call.1} parent=1 // pred_region
      %2514 = dma.done [#allocation7], 384
    $region89: #{tpu_custom_call.1} parent=1 // pred_fallthru
      _
    %2515 = vsyncpa [#allocation6], 1
    %2516 = vsyncpa [#allocation9], 1
    %2517 = vsyncpa [#allocation12], 1
    %2518 = vsyncpa [#allocation15], 1
    %2519 = vsyncpa [#allocation7], 1

</llo_original>
